<compile_context>
chip_gen: v7x
topology: tpu7x:2x2x1
jax: 0.10.0
libtpu: 0.0.40
codegen_flags: <defaults>
</compile_context>

<pallas_src>
import functools

import jax
import jax.numpy as jnp
from jax import lax
from jax.experimental import pallas as pl
from jax.experimental.pallas import tpu as pltpu


# ---------------------------------------------------------------------------
# Fused Pallas kernel
# ---------------------------------------------------------------------------
def _fused_unet_inner_kernel(x_ref, bd_ref, bu_ref, o_ref, yp_ref, *, eps):
    """
    x_ref : [N, Hp, Wp, 4*Cin]     space-to-depth of the zero-padded input, Hp = H/2 + 1
    bd_ref: [4, 4*Cin, inner]      down-conv weights, one [4*Cin, inner] matrix per 2x2 tap (a,b)
    bu_ref: [4, 4, inner, outer]   up-conv weights: [phase p=2ph+pw, tap t=2dh+dw, inner, outer]
    o_ref : [4, N*Ho*Wo, outer]    per-phase (sub-pixel) BatchNorm'd outputs
    yp_ref: [N, Ho+2, Wo+2, inner] VMEM scratch holding zero-padded ReLU(y)
    """
    N, Hp, Wp, C4 = x_ref.shape
    Ho, Wo = Hp - 1, Wp - 1
    inner = yp_ref.shape[-1]
    outer = o_ref.shape[-1]
    M = N * Ho * Wo

    # ---- down path: LeakyReLU(0.2) applied ONCE, Conv2d(k4,s2,p1) as 4 tap-sum matmuls (MXU).
    x = x_ref[...]
    x = jnp.where(x > 0, x, 0.2 * x)          # leaky_relu(0)==0 -> exact w.r.t. zero padding
    y = jnp.zeros((M, inner), jnp.float32)
    t = 0
    for a in (0, 1):
        for b in (0, 1):
            patch = x[:, a:a + Ho, b:b + Wo, :].reshape(M, C4)
            y = y + jnp.dot(patch, bd_ref[t], preferred_element_type=jnp.float32)
            t += 1

    # ---- ReLU(y), kept zero-padded in VMEM (never leaves the chip).
    yp_ref[...] = jnp.zeros(yp_ref.shape, jnp.float32)
    yp_ref[:, 1:Ho + 1, 1:Wo + 1, :] = jnp.maximum(y, 0.0).reshape(N, Ho, Wo, inner)

    # ---- up path: ConvTranspose2d(k4,s2,p1) via sub-pixel decomposition.
    # Output parity (ph, pw) = a stride-1 2x2 conv over zero-padded y.
    # The 9 distinct shifted windows are loaded once and reused across phases/taps.
    win = {}
    for i in range(3):
        for j in range(3):
            win[(i, j)] = yp_ref[:, i:i + Ho, j:j + Wo, :].reshape(M, inner)

    z_phases = []
    for ph in (0, 1):
        for pw in (0, 1):
            p = 2 * ph + pw
            acc = jnp.zeros((M, outer), jnp.float32)
            for dh in (0, 1):
                for dw in (0, 1):
                    acc = acc + jnp.dot(win[(ph + dh, pw + dw)],
                                        bu_ref[p, 2 * dh + dw],
                                        preferred_element_type=jnp.float32)
            z_phases.append(acc)

    # ---- BatchNorm2d: exact batch statistics over all N*H*W = 4*M elements per channel
    # (training-mode BN: gamma=1, beta=0, biased variance).
    cnt = 4.0 * M
    total = z_phases[0].sum(axis=0, keepdims=True)
    for z in z_phases[1:]:
        total = total + z.sum(axis=0, keepdims=True)
    mean = total / cnt
    sq = jnp.square(z_phases[0] - mean).sum(axis=0, keepdims=True)
    for z in z_phases[1:]:
        sq = sq + jnp.square(z - mean).sum(axis=0, keepdims=True)
    inv = lax.rsqrt(sq / cnt + eps)
    for p, z in enumerate(z_phases):
        o_ref[p] = (z - mean) * inv


# ---------------------------------------------------------------------------
# Wrapper: layout plumbing only (1x traffic), all conv/activation/BN work is in-kernel
# ---------------------------------------------------------------------------
def unet_innermost_block(x_nchw, w_down, w_up, eps=1e-5):
    N, cin, H, W = x_nchw.shape
    inner = w_down.shape[0]
    outer = w_up.shape[1]
    Ho, Wo = H // 2, W // 2
    Hp, Wp = Ho + 1, Wo + 1          # = (H + 2) // 2
    M = N * Ho * Wo

    # Input: NCHW -> NHWC, zero-pad (conv padding; activation happens in-kernel, leaky(0)=0 so
    # order is exact), then space-to-depth so the strided conv needs only contiguous 2x2 windows.
    x_nhwc = jnp.transpose(x_nchw, (0, 2, 3, 1))
    xp = jnp.pad(x_nhwc, ((0, 0), (1, 1), (1, 1), (0, 0)))
    xs = (xp.reshape(N, Hp, 2, Wp, 2, cin)
            .transpose(0, 1, 3, 2, 4, 5)
            .reshape(N, Hp, Wp, 4 * cin))

    # Down-conv weights [inner, cin, kh, kw] -> Bd[t=2a+b, (2r+s)*cin+ic, oc], kh=2a+r, kw=2b+s
    # (matches the space-to-depth channel order).
    bd = (w_down.reshape(inner, cin, 2, 2, 2, 2)
                .transpose(2, 4, 3, 5, 1, 0)
                .reshape(4, 4 * cin, inner))

    # Up-conv weights (sub-pixel decomposition): phase (ph,pw), tap (dh,dw) uses
    # W_up[:, :, 3-ph-2*dh, 3-pw-2*dw].  Bu: [phase, tap, inner, outer].
    bu = jnp.stack([
        jnp.stack([w_up[:, :, 3 - ph - 2 * dh, 3 - pw - 2 * dw]
                   for dh in (0, 1) for dw in (0, 1)], axis=0)
        for ph in (0, 1) for pw in (0, 1)], axis=0)

    z_ph = pl.pallas_call(
        functools.partial(_fused_unet_inner_kernel, eps=eps),
        out_shape=jax.ShapeDtypeStruct((4, M, outer), jnp.float32),
        grid=(1,),
        in_specs=[
            pl.BlockSpec((N, Hp, Wp, 4 * cin), lambda i: (0, 0, 0, 0)),
            pl.BlockSpec((4, 4 * cin, inner), lambda i: (0, 0, 0)),
            pl.BlockSpec((4, 4, inner, outer), lambda i: (0, 0, 0, 0)),
        ],
        out_specs=pl.BlockSpec((4, M, outer), lambda i: (0, 0, 0)),
        scratch_shapes=[pltpu.VMEM((N, Ho + 2, Wo + 2, inner), jnp.float32)],
        compiler_params=pltpu.CompilerParams(dimension_semantics=("arbitrary",)),
    )(xs, bd, bu)

    # Un-scramble the 4 sub-pixel phases back to NCHW, then the U-Net skip concat.
    z = z_ph.reshape(2, 2, N, Ho, Wo, outer)                 # [ph, pw, n, m, n', oc]
    z = jnp.transpose(z, (2, 5, 3, 0, 4, 1)).reshape(N, outer, H, W)
    return jnp.concatenate([x_nchw, z], axis=1)


# ---------------------------------------------------------------------------
# Pure-XLA reference (for in-script validation)
# ---------------------------------------------------------------------------
def _reference(x, w_down, w_up, eps=1e-5):
    xa = jnp.where(x > 0, x, 0.2 * x)
    y = lax.conv_general_dilated(xa, w_down, (2, 2), ((1, 1), (1, 1)),
                                 dimension_numbers=("NCHW", "OIHW", "NCHW"))
    ya = jnp.maximum(y, 0.0)
    # ConvT(k4,s2,p1) == lhs-dilated (x2) stride-1 conv with flipped, channel-swapped kernel.
    w_eq = jnp.transpose(jnp.flip(w_up, (2, 3)), (1, 0, 2, 3))
    z = lax.conv_general_dilated(ya, w_eq, (1, 1), ((2, 2), (2, 2)),
                                 lhs_dilation=(2, 2),
                                 dimension_numbers=("NCHW", "OIHW", "NCHW"))
    mean = jnp.mean(z, axis=(0, 2, 3), keepdims=True)
    var = jnp.mean(jnp.square(z - mean), axis=(0, 2, 3), keepdims=True)
    zn = (z - mean) * lax.rsqrt(var + eps)
    return jnp.concatenate([x, zn], axis=1)


# ---------------------------------------------------------------------------
# Driver
# ---------------------------------------------------------------------------
if __name__ == "__main__":
    outer_nc, inner_nc = 4, 8
    input_nc = outer_nc          # input_nc=None in the module -> input_nc = outer_nc
    N, H, W = 2, 16, 16

    key = jax.random.PRNGKey(0)
    kx, kd, ku = jax.random.split(key, 3)

    x = jax.random.normal(kx, (N, input_nc, H, W), dtype=jnp.float32)
    # Conv2d(input_nc, inner_nc, 4, 2, 1, bias=False): weight [inner_nc, input_nc, 4, 4]
    w_down = 0.1 * jax.random.normal(kd, (inner_nc, input_nc, 4, 4), dtype=jnp.float32)
    # ConvTranspose2d(inner_nc, outer_nc, 4, 2, 1, bias=False): weight [inner_nc, outer_nc, 4, 4]
    w_up = 0.1 * jax.random.normal(ku, (inner_nc, outer_nc, 4, 4), dtype=jnp.float32)

    out = jax.jit(unet_innermost_block)(x, w_down, w_up)
    out = jax.block_until_ready(out)

    assert out.shape == (N, input_nc + outer_nc, H, W), out.shape
    assert out.dtype == jnp.float32

    ref = jax.block_until_ready(jax.jit(_reference)(x, w_down, w_up))
    max_err = float(jnp.max(jnp.abs(out - ref)))
    # loose tolerance: both paths may use reduced-precision MXU passes for f32 matmuls
    assert max_err < 5e-2, f"max abs error vs XLA reference: {max_err}"

    print("KERNEL_OK")
</pallas_src>

<mosaic_0001>
module attributes {stable_mosaic.version = 11 : i64} {
  func.func @_fused_unet_inner_kernel(%arg0: i32, %arg1: memref<2x9x9x16xf32, #tpu.memory_space<vmem>>, %arg2: memref<4x16x8xf32, #tpu.memory_space<vmem>>, %arg3: memref<4x4x8x4xf32, #tpu.memory_space<vmem>>, %arg4: memref<4x128x4xf32, #tpu.memory_space<vmem>>, %arg5: memref<2x10x10x8xf32, #tpu.memory_space<vmem>>) attributes {dimension_semantics = [#tpu.dimension_semantics<arbitrary>], iteration_bounds = array<i64: 1>, scalar_prefetch = 0 : i64, scratch_operands = 1 : i64, tpu.core_type = #tpu.core_type<tc>, window_params = [{pipeline_mode = #tpu.pipeline_mode<synchronous>, transform_indices = @transform_0, window_bounds = array<i64: 2, 9, 9, 16>}, {pipeline_mode = #tpu.pipeline_mode<synchronous>, transform_indices = @transform_1, window_bounds = array<i64: 4, 16, 8>}, {pipeline_mode = #tpu.pipeline_mode<synchronous>, transform_indices = @transform_2, window_bounds = array<i64: 4, 4, 8, 4>}, {pipeline_mode = #tpu.pipeline_mode<synchronous>, transform_indices = @transform_3, window_bounds = array<i64: 4, 128, 4>}]} {
    %c0 = arith.constant 0 : index
    %c0_0 = arith.constant 0 : index
    %c0_1 = arith.constant 0 : index
    %c0_2 = arith.constant 0 : index
    %0 = vector.load %arg1[%c0, %c0_0, %c0_1, %c0_2] : memref<2x9x9x16xf32, #tpu.memory_space<vmem>>, vector<2x9x9x16xf32>
    %cst = arith.constant 0.000000e+00 : f32
    %1 = vector.broadcast %cst : f32 to vector<2x9x9x16xf32>
    %2 = arith.cmpf ogt, %0, %1 : vector<2x9x9x16xf32>
    %cst_3 = arith.constant 2.000000e-01 : f32
    %3 = vector.broadcast %cst_3 : f32 to vector<2x9x9x16xf32>
    %4 = arith.mulf %3, %0 : vector<2x9x9x16xf32>
    %5 = arith.select %2, %0, %4 : vector<2x9x9x16xi1>, vector<2x9x9x16xf32>
    %cst_4 = arith.constant 0.000000e+00 : f32
    %6 = vector.broadcast %cst_4 : f32 to vector<128x8xf32>
    %7 = vector.extract_strided_slice %5 {offsets = [0, 0, 0, 0], sizes = [2, 8, 8, 16], strides = [1, 1, 1, 1]} : vector<2x9x9x16xf32> to vector<2x8x8x16xf32>
    %8 = vector.shape_cast %7 : vector<2x8x8x16xf32> to vector<128x16xf32>
    %c0_5 = arith.constant 0 : index
    %c0_6 = arith.constant 0 : index
    %c0_7 = arith.constant 0 : index
    %9 = vector.load %arg2[%c0_5, %c0_6, %c0_7] : memref<4x16x8xf32, #tpu.memory_space<vmem>>, vector<1x16x8xf32>
    %10 = vector.shape_cast %9 : vector<1x16x8xf32> to vector<16x8xf32>
    %cst_8 = arith.constant dense<0.000000e+00> : vector<128x8xf32>
    %11 = tpu.matmul %8, %10, %cst_8 {dimension_numbers = #tpu.dot_dimension_numbers<[1], [0], [0], [1], [0, 0, 1, 1], [], []>} : vector<128x16xf32>, vector<16x8xf32>, vector<128x8xf32> -> vector<128x8xf32>
    %12 = arith.addf %6, %11 : vector<128x8xf32>
    %13 = vector.extract_strided_slice %5 {offsets = [0, 0, 1, 0], sizes = [2, 8, 8, 16], strides = [1, 1, 1, 1]} : vector<2x9x9x16xf32> to vector<2x8x8x16xf32>
    %14 = vector.shape_cast %13 : vector<2x8x8x16xf32> to vector<128x16xf32>
    %c1 = arith.constant 1 : index
    %c0_9 = arith.constant 0 : index
    %c0_10 = arith.constant 0 : index
    %15 = vector.load %arg2[%c1, %c0_9, %c0_10] : memref<4x16x8xf32, #tpu.memory_space<vmem>>, vector<1x16x8xf32>
    %16 = vector.shape_cast %15 : vector<1x16x8xf32> to vector<16x8xf32>
    %cst_11 = arith.constant dense<0.000000e+00> : vector<128x8xf32>
    %17 = tpu.matmul %14, %16, %cst_11 {dimension_numbers = #tpu.dot_dimension_numbers<[1], [0], [0], [1], [0, 0, 1, 1], [], []>} : vector<128x16xf32>, vector<16x8xf32>, vector<128x8xf32> -> vector<128x8xf32>
    %18 = arith.addf %12, %17 : vector<128x8xf32>
    %19 = vector.extract_strided_slice %5 {offsets = [0, 1, 0, 0], sizes = [2, 8, 8, 16], strides = [1, 1, 1, 1]} : vector<2x9x9x16xf32> to vector<2x8x8x16xf32>
    %20 = vector.shape_cast %19 : vector<2x8x8x16xf32> to vector<128x16xf32>
    %c2 = arith.constant 2 : index
    %c0_12 = arith.constant 0 : index
    %c0_13 = arith.constant 0 : index
    %21 = vector.load %arg2[%c2, %c0_12, %c0_13] : memref<4x16x8xf32, #tpu.memory_space<vmem>>, vector<1x16x8xf32>
    %22 = vector.shape_cast %21 : vector<1x16x8xf32> to vector<16x8xf32>
    %cst_14 = arith.constant dense<0.000000e+00> : vector<128x8xf32>
    %23 = tpu.matmul %20, %22, %cst_14 {dimension_numbers = #tpu.dot_dimension_numbers<[1], [0], [0], [1], [0, 0, 1, 1], [], []>} : vector<128x16xf32>, vector<16x8xf32>, vector<128x8xf32> -> vector<128x8xf32>
    %24 = arith.addf %18, %23 : vector<128x8xf32>
    %25 = vector.extract_strided_slice %5 {offsets = [0, 1, 1, 0], sizes = [2, 8, 8, 16], strides = [1, 1, 1, 1]} : vector<2x9x9x16xf32> to vector<2x8x8x16xf32>
    %26 = vector.shape_cast %25 : vector<2x8x8x16xf32> to vector<128x16xf32>
    %c3 = arith.constant 3 : index
    %c0_15 = arith.constant 0 : index
    %c0_16 = arith.constant 0 : index
    %27 = vector.load %arg2[%c3, %c0_15, %c0_16] : memref<4x16x8xf32, #tpu.memory_space<vmem>>, vector<1x16x8xf32>
    %28 = vector.shape_cast %27 : vector<1x16x8xf32> to vector<16x8xf32>
    %cst_17 = arith.constant dense<0.000000e+00> : vector<128x8xf32>
    %29 = tpu.matmul %26, %28, %cst_17 {dimension_numbers = #tpu.dot_dimension_numbers<[1], [0], [0], [1], [0, 0, 1, 1], [], []>} : vector<128x16xf32>, vector<16x8xf32>, vector<128x8xf32> -> vector<128x8xf32>
    %30 = arith.addf %24, %29 : vector<128x8xf32>
    %cst_18 = arith.constant 0.000000e+00 : f32
    %31 = vector.broadcast %cst_18 : f32 to vector<2x10x10x8xf32>
    %c0_19 = arith.constant 0 : index
    %c0_20 = arith.constant 0 : index
    %c0_21 = arith.constant 0 : index
    %c0_22 = arith.constant 0 : index
    %32 = vector.load %arg5[%c0_19, %c0_20, %c0_21, %c0_22] : memref<2x10x10x8xf32, #tpu.memory_space<vmem>>, vector<2x10x10x8xf32>
    tpu.vector_store %arg5[%c0_19, %c0_20, %c0_21, %c0_22], %31 {strides = array<i32>} : memref<2x10x10x8xf32, #tpu.memory_space<vmem>>, vector<2x10x10x8xf32>,
    %cst_23 = arith.constant 0.000000e+00 : f32
    %33 = vector.broadcast %cst_23 : f32 to vector<128x8xf32>
    %34 = arith.maximumf %30, %33 : vector<128x8xf32>
    %35 = vector.shape_cast %34 : vector<128x8xf32> to vector<2x8x8x8xf32>
    %c0_24 = arith.constant 0 : index
    %c1_25 = arith.constant 1 : index
    %c1_26 = arith.constant 1 : index
    %c0_27 = arith.constant 0 : index
    %36 = vector.load %arg5[%c0_24, %c1_25, %c1_26, %c0_27] : memref<2x10x10x8xf32, #tpu.memory_space<vmem>>, vector<2x8x8x8xf32>
    tpu.vector_store %arg5[%c0_24, %c1_25, %c1_26, %c0_27], %35 {strides = array<i32>} : memref<2x10x10x8xf32, #tpu.memory_space<vmem>>, vector<2x8x8x8xf32>,
    %c0_28 = arith.constant 0 : index
    %c0_29 = arith.constant 0 : index
    %c0_30 = arith.constant 0 : index
    %c0_31 = arith.constant 0 : index
    %37 = vector.load %arg5[%c0_28, %c0_29, %c0_30, %c0_31] : memref<2x10x10x8xf32, #tpu.memory_space<vmem>>, vector<2x8x8x8xf32>
    %38 = vector.shape_cast %37 : vector<2x8x8x8xf32> to vector<128x8xf32>
    %c0_32 = arith.constant 0 : index
    %c0_33 = arith.constant 0 : index
    %c1_34 = arith.constant 1 : index
    %c0_35 = arith.constant 0 : index
    %39 = vector.load %arg5[%c0_32, %c0_33, %c1_34, %c0_35] : memref<2x10x10x8xf32, #tpu.memory_space<vmem>>, vector<2x8x8x8xf32>
    %40 = vector.shape_cast %39 : vector<2x8x8x8xf32> to vector<128x8xf32>
    %c0_36 = arith.constant 0 : index
    %c0_37 = arith.constant 0 : index
    %c2_38 = arith.constant 2 : index
    %c0_39 = arith.constant 0 : index
    %41 = vector.load %arg5[%c0_36, %c0_37, %c2_38, %c0_39] : memref<2x10x10x8xf32, #tpu.memory_space<vmem>>, vector<2x8x8x8xf32>
    %42 = vector.shape_cast %41 : vector<2x8x8x8xf32> to vector<128x8xf32>
    %c0_40 = arith.constant 0 : index
    %c1_41 = arith.constant 1 : index
    %c0_42 = arith.constant 0 : index
    %c0_43 = arith.constant 0 : index
    %43 = vector.load %arg5[%c0_40, %c1_41, %c0_42, %c0_43] : memref<2x10x10x8xf32, #tpu.memory_space<vmem>>, vector<2x8x8x8xf32>
    %44 = vector.shape_cast %43 : vector<2x8x8x8xf32> to vector<128x8xf32>
    %c0_44 = arith.constant 0 : index
    %c1_45 = arith.constant 1 : index
    %c1_46 = arith.constant 1 : index
    %c0_47 = arith.constant 0 : index
    %45 = vector.load %arg5[%c0_44, %c1_45, %c1_46, %c0_47] : memref<2x10x10x8xf32, #tpu.memory_space<vmem>>, vector<2x8x8x8xf32>
    %46 = vector.shape_cast %45 : vector<2x8x8x8xf32> to vector<128x8xf32>
    %c0_48 = arith.constant 0 : index
    %c1_49 = arith.constant 1 : index
    %c2_50 = arith.constant 2 : index
    %c0_51 = arith.constant 0 : index
    %47 = vector.load %arg5[%c0_48, %c1_49, %c2_50, %c0_51] : memref<2x10x10x8xf32, #tpu.memory_space<vmem>>, vector<2x8x8x8xf32>
    %48 = vector.shape_cast %47 : vector<2x8x8x8xf32> to vector<128x8xf32>
    %c0_52 = arith.constant 0 : index
    %c2_53 = arith.constant 2 : index
    %c0_54 = arith.constant 0 : index
    %c0_55 = arith.constant 0 : index
    %49 = vector.load %arg5[%c0_52, %c2_53, %c0_54, %c0_55] : memref<2x10x10x8xf32, #tpu.memory_space<vmem>>, vector<2x8x8x8xf32>
    %50 = vector.shape_cast %49 : vector<2x8x8x8xf32> to vector<128x8xf32>
    %c0_56 = arith.constant 0 : index
    %c2_57 = arith.constant 2 : index
    %c1_58 = arith.constant 1 : index
    %c0_59 = arith.constant 0 : index
    %51 = vector.load %arg5[%c0_56, %c2_57, %c1_58, %c0_59] : memref<2x10x10x8xf32, #tpu.memory_space<vmem>>, vector<2x8x8x8xf32>
    %52 = vector.shape_cast %51 : vector<2x8x8x8xf32> to vector<128x8xf32>
    %c0_60 = arith.constant 0 : index
    %c2_61 = arith.constant 2 : index
    %c2_62 = arith.constant 2 : index
    %c0_63 = arith.constant 0 : index
    %53 = vector.load %arg5[%c0_60, %c2_61, %c2_62, %c0_63] : memref<2x10x10x8xf32, #tpu.memory_space<vmem>>, vector<2x8x8x8xf32>
    %54 = vector.shape_cast %53 : vector<2x8x8x8xf32> to vector<128x8xf32>
    %cst_64 = arith.constant 0.000000e+00 : f32
    %55 = vector.broadcast %cst_64 : f32 to vector<128x4xf32>
    %c0_65 = arith.constant 0 : index
    %c0_66 = arith.constant 0 : index
    %c0_67 = arith.constant 0 : index
    %c0_68 = arith.constant 0 : index
    %56 = vector.load %arg3[%c0_65, %c0_66, %c0_67, %c0_68] : memref<4x4x8x4xf32, #tpu.memory_space<vmem>>, vector<1x1x8x4xf32>
    %57 = vector.shape_cast %56 : vector<1x1x8x4xf32> to vector<8x4xf32>
    %cst_69 = arith.constant dense<0.000000e+00> : vector<128x4xf32>
    %58 = tpu.matmul %38, %57, %cst_69 {dimension_numbers = #tpu.dot_dimension_numbers<[1], [0], [0], [1], [0, 0, 1, 1], [], []>} : vector<128x8xf32>, vector<8x4xf32>, vector<128x4xf32> -> vector<128x4xf32>
    %59 = arith.addf %55, %58 : vector<128x4xf32>
    %c0_70 = arith.constant 0 : index
    %c1_71 = arith.constant 1 : index
    %c0_72 = arith.constant 0 : index
    %c0_73 = arith.constant 0 : index
    %60 = vector.load %arg3[%c0_70, %c1_71, %c0_72, %c0_73] : memref<4x4x8x4xf32, #tpu.memory_space<vmem>>, vector<1x1x8x4xf32>
    %61 = vector.shape_cast %60 : vector<1x1x8x4xf32> to vector<8x4xf32>
    %cst_74 = arith.constant dense<0.000000e+00> : vector<128x4xf32>
    %62 = tpu.matmul %40, %61, %cst_74 {dimension_numbers = #tpu.dot_dimension_numbers<[1], [0], [0], [1], [0, 0, 1, 1], [], []>} : vector<128x8xf32>, vector<8x4xf32>, vector<128x4xf32> -> vector<128x4xf32>
    %63 = arith.addf %59, %62 : vector<128x4xf32>
    %c0_75 = arith.constant 0 : index
    %c2_76 = arith.constant 2 : index
    %c0_77 = arith.constant 0 : index
    %c0_78 = arith.constant 0 : index
    %64 = vector.load %arg3[%c0_75, %c2_76, %c0_77, %c0_78] : memref<4x4x8x4xf32, #tpu.memory_space<vmem>>, vector<1x1x8x4xf32>
    %65 = vector.shape_cast %64 : vector<1x1x8x4xf32> to vector<8x4xf32>
    %cst_79 = arith.constant dense<0.000000e+00> : vector<128x4xf32>
    %66 = tpu.matmul %44, %65, %cst_79 {dimension_numbers = #tpu.dot_dimension_numbers<[1], [0], [0], [1], [0, 0, 1, 1], [], []>} : vector<128x8xf32>, vector<8x4xf32>, vector<128x4xf32> -> vector<128x4xf32>
    %67 = arith.addf %63, %66 : vector<128x4xf32>
    %c0_80 = arith.constant 0 : index
    %c3_81 = arith.constant 3 : index
    %c0_82 = arith.constant 0 : index
    %c0_83 = arith.constant 0 : index
    %68 = vector.load %arg3[%c0_80, %c3_81, %c0_82, %c0_83] : memref<4x4x8x4xf32, #tpu.memory_space<vmem>>, vector<1x1x8x4xf32>
    %69 = vector.shape_cast %68 : vector<1x1x8x4xf32> to vector<8x4xf32>
    %cst_84 = arith.constant dense<0.000000e+00> : vector<128x4xf32>
    %70 = tpu.matmul %46, %69, %cst_84 {dimension_numbers = #tpu.dot_dimension_numbers<[1], [0], [0], [1], [0, 0, 1, 1], [], []>} : vector<128x8xf32>, vector<8x4xf32>, vector<128x4xf32> -> vector<128x4xf32>
    %71 = arith.addf %67, %70 : vector<128x4xf32>
    %cst_85 = arith.constant 0.000000e+00 : f32
    %72 = vector.broadcast %cst_85 : f32 to vector<128x4xf32>
    %c1_86 = arith.constant 1 : index
    %c0_87 = arith.constant 0 : index
    %c0_88 = arith.constant 0 : index
    %c0_89 = arith.constant 0 : index
    %73 = vector.load %arg3[%c1_86, %c0_87, %c0_88, %c0_89] : memref<4x4x8x4xf32, #tpu.memory_space<vmem>>, vector<1x1x8x4xf32>
    %74 = vector.shape_cast %73 : vector<1x1x8x4xf32> to vector<8x4xf32>
    %cst_90 = arith.constant dense<0.000000e+00> : vector<128x4xf32>
    %75 = tpu.matmul %40, %74, %cst_90 {dimension_numbers = #tpu.dot_dimension_numbers<[1], [0], [0], [1], [0, 0, 1, 1], [], []>} : vector<128x8xf32>, vector<8x4xf32>, vector<128x4xf32> -> vector<128x4xf32>
    %76 = arith.addf %72, %75 : vector<128x4xf32>
    %c1_91 = arith.constant 1 : index
    %c1_92 = arith.constant 1 : index
    %c0_93 = arith.constant 0 : index
    %c0_94 = arith.constant 0 : index
    %77 = vector.load %arg3[%c1_91, %c1_92, %c0_93, %c0_94] : memref<4x4x8x4xf32, #tpu.memory_space<vmem>>, vector<1x1x8x4xf32>
    %78 = vector.shape_cast %77 : vector<1x1x8x4xf32> to vector<8x4xf32>
    %cst_95 = arith.constant dense<0.000000e+00> : vector<128x4xf32>
    %79 = tpu.matmul %42, %78, %cst_95 {dimension_numbers = #tpu.dot_dimension_numbers<[1], [0], [0], [1], [0, 0, 1, 1], [], []>} : vector<128x8xf32>, vector<8x4xf32>, vector<128x4xf32> -> vector<128x4xf32>
    %80 = arith.addf %76, %79 : vector<128x4xf32>
    %c1_96 = arith.constant 1 : index
    %c2_97 = arith.constant 2 : index
    %c0_98 = arith.constant 0 : index
    %c0_99 = arith.constant 0 : index
    %81 = vector.load %arg3[%c1_96, %c2_97, %c0_98, %c0_99] : memref<4x4x8x4xf32, #tpu.memory_space<vmem>>, vector<1x1x8x4xf32>
    %82 = vector.shape_cast %81 : vector<1x1x8x4xf32> to vector<8x4xf32>
    %cst_100 = arith.constant dense<0.000000e+00> : vector<128x4xf32>
    %83 = tpu.matmul %46, %82, %cst_100 {dimension_numbers = #tpu.dot_dimension_numbers<[1], [0], [0], [1], [0, 0, 1, 1], [], []>} : vector<128x8xf32>, vector<8x4xf32>, vector<128x4xf32> -> vector<128x4xf32>
    %84 = arith.addf %80, %83 : vector<128x4xf32>
    %c1_101 = arith.constant 1 : index
    %c3_102 = arith.constant 3 : index
    %c0_103 = arith.constant 0 : index
    %c0_104 = arith.constant 0 : index
    %85 = vector.load %arg3[%c1_101, %c3_102, %c0_103, %c0_104] : memref<4x4x8x4xf32, #tpu.memory_space<vmem>>, vector<1x1x8x4xf32>
    %86 = vector.shape_cast %85 : vector<1x1x8x4xf32> to vector<8x4xf32>
    %cst_105 = arith.constant dense<0.000000e+00> : vector<128x4xf32>
    %87 = tpu.matmul %48, %86, %cst_105 {dimension_numbers = #tpu.dot_dimension_numbers<[1], [0], [0], [1], [0, 0, 1, 1], [], []>} : vector<128x8xf32>, vector<8x4xf32>, vector<128x4xf32> -> vector<128x4xf32>
    %88 = arith.addf %84, %87 : vector<128x4xf32>
    %cst_106 = arith.constant 0.000000e+00 : f32
    %89 = vector.broadcast %cst_106 : f32 to vector<128x4xf32>
    %c2_107 = arith.constant 2 : index
    %c0_108 = arith.constant 0 : index
    %c0_109 = arith.constant 0 : index
    %c0_110 = arith.constant 0 : index
    %90 = vector.load %arg3[%c2_107, %c0_108, %c0_109, %c0_110] : memref<4x4x8x4xf32, #tpu.memory_space<vmem>>, vector<1x1x8x4xf32>
    %91 = vector.shape_cast %90 : vector<1x1x8x4xf32> to vector<8x4xf32>
    %cst_111 = arith.constant dense<0.000000e+00> : vector<128x4xf32>
    %92 = tpu.matmul %44, %91, %cst_111 {dimension_numbers = #tpu.dot_dimension_numbers<[1], [0], [0], [1], [0, 0, 1, 1], [], []>} : vector<128x8xf32>, vector<8x4xf32>, vector<128x4xf32> -> vector<128x4xf32>
    %93 = arith.addf %89, %92 : vector<128x4xf32>
    %c2_112 = arith.constant 2 : index
    %c1_113 = arith.constant 1 : index
    %c0_114 = arith.constant 0 : index
    %c0_115 = arith.constant 0 : index
    %94 = vector.load %arg3[%c2_112, %c1_113, %c0_114, %c0_115] : memref<4x4x8x4xf32, #tpu.memory_space<vmem>>, vector<1x1x8x4xf32>
    %95 = vector.shape_cast %94 : vector<1x1x8x4xf32> to vector<8x4xf32>
    %cst_116 = arith.constant dense<0.000000e+00> : vector<128x4xf32>
    %96 = tpu.matmul %46, %95, %cst_116 {dimension_numbers = #tpu.dot_dimension_numbers<[1], [0], [0], [1], [0, 0, 1, 1], [], []>} : vector<128x8xf32>, vector<8x4xf32>, vector<128x4xf32> -> vector<128x4xf32>
    %97 = arith.addf %93, %96 : vector<128x4xf32>
    %c2_117 = arith.constant 2 : index
    %c2_118 = arith.constant 2 : index
    %c0_119 = arith.constant 0 : index
    %c0_120 = arith.constant 0 : index
    %98 = vector.load %arg3[%c2_117, %c2_118, %c0_119, %c0_120] : memref<4x4x8x4xf32, #tpu.memory_space<vmem>>, vector<1x1x8x4xf32>
    %99 = vector.shape_cast %98 : vector<1x1x8x4xf32> to vector<8x4xf32>
    %cst_121 = arith.constant dense<0.000000e+00> : vector<128x4xf32>
    %100 = tpu.matmul %50, %99, %cst_121 {dimension_numbers = #tpu.dot_dimension_numbers<[1], [0], [0], [1], [0, 0, 1, 1], [], []>} : vector<128x8xf32>, vector<8x4xf32>, vector<128x4xf32> -> vector<128x4xf32>
    %101 = arith.addf %97, %100 : vector<128x4xf32>
    %c2_122 = arith.constant 2 : index
    %c3_123 = arith.constant 3 : index
    %c0_124 = arith.constant 0 : index
    %c0_125 = arith.constant 0 : index
    %102 = vector.load %arg3[%c2_122, %c3_123, %c0_124, %c0_125] : memref<4x4x8x4xf32, #tpu.memory_space<vmem>>, vector<1x1x8x4xf32>
    %103 = vector.shape_cast %102 : vector<1x1x8x4xf32> to vector<8x4xf32>
    %cst_126 = arith.constant dense<0.000000e+00> : vector<128x4xf32>
    %104 = tpu.matmul %52, %103, %cst_126 {dimension_numbers = #tpu.dot_dimension_numbers<[1], [0], [0], [1], [0, 0, 1, 1], [], []>} : vector<128x8xf32>, vector<8x4xf32>, vector<128x4xf32> -> vector<128x4xf32>
    %105 = arith.addf %101, %104 : vector<128x4xf32>
    %cst_127 = arith.constant 0.000000e+00 : f32
    %106 = vector.broadcast %cst_127 : f32 to vector<128x4xf32>
    %c3_128 = arith.constant 3 : index
    %c0_129 = arith.constant 0 : index
    %c0_130 = arith.constant 0 : index
    %c0_131 = arith.constant 0 : index
    %107 = vector.load %arg3[%c3_128, %c0_129, %c0_130, %c0_131] : memref<4x4x8x4xf32, #tpu.memory_space<vmem>>, vector<1x1x8x4xf32>
    %108 = vector.shape_cast %107 : vector<1x1x8x4xf32> to vector<8x4xf32>
    %cst_132 = arith.constant dense<0.000000e+00> : vector<128x4xf32>
    %109 = tpu.matmul %46, %108, %cst_132 {dimension_numbers = #tpu.dot_dimension_numbers<[1], [0], [0], [1], [0, 0, 1, 1], [], []>} : vector<128x8xf32>, vector<8x4xf32>, vector<128x4xf32> -> vector<128x4xf32>
    %110 = arith.addf %106, %109 : vector<128x4xf32>
    %c3_133 = arith.constant 3 : index
    %c1_134 = arith.constant 1 : index
    %c0_135 = arith.constant 0 : index
    %c0_136 = arith.constant 0 : index
    %111 = vector.load %arg3[%c3_133, %c1_134, %c0_135, %c0_136] : memref<4x4x8x4xf32, #tpu.memory_space<vmem>>, vector<1x1x8x4xf32>
    %112 = vector.shape_cast %111 : vector<1x1x8x4xf32> to vector<8x4xf32>
    %cst_137 = arith.constant dense<0.000000e+00> : vector<128x4xf32>
    %113 = tpu.matmul %48, %112, %cst_137 {dimension_numbers = #tpu.dot_dimension_numbers<[1], [0], [0], [1], [0, 0, 1, 1], [], []>} : vector<128x8xf32>, vector<8x4xf32>, vector<128x4xf32> -> vector<128x4xf32>
    %114 = arith.addf %110, %113 : vector<128x4xf32>
    %c3_138 = arith.constant 3 : index
    %c2_139 = arith.constant 2 : index
    %c0_140 = arith.constant 0 : index
    %c0_141 = arith.constant 0 : index
    %115 = vector.load %arg3[%c3_138, %c2_139, %c0_140, %c0_141] : memref<4x4x8x4xf32, #tpu.memory_space<vmem>>, vector<1x1x8x4xf32>
    %116 = vector.shape_cast %115 : vector<1x1x8x4xf32> to vector<8x4xf32>
    %cst_142 = arith.constant dense<0.000000e+00> : vector<128x4xf32>
    %117 = tpu.matmul %52, %116, %cst_142 {dimension_numbers = #tpu.dot_dimension_numbers<[1], [0], [0], [1], [0, 0, 1, 1], [], []>} : vector<128x8xf32>, vector<8x4xf32>, vector<128x4xf32> -> vector<128x4xf32>
    %118 = arith.addf %114, %117 : vector<128x4xf32>
    %c3_143 = arith.constant 3 : index
    %c3_144 = arith.constant 3 : index
    %c0_145 = arith.constant 0 : index
    %c0_146 = arith.constant 0 : index
    %119 = vector.load %arg3[%c3_143, %c3_144, %c0_145, %c0_146] : memref<4x4x8x4xf32, #tpu.memory_space<vmem>>, vector<1x1x8x4xf32>
    %120 = vector.shape_cast %119 : vector<1x1x8x4xf32> to vector<8x4xf32>
    %cst_147 = arith.constant dense<0.000000e+00> : vector<128x4xf32>
    %121 = tpu.matmul %54, %120, %cst_147 {dimension_numbers = #tpu.dot_dimension_numbers<[1], [0], [0], [1], [0, 0, 1, 1], [], []>} : vector<128x8xf32>, vector<8x4xf32>, vector<128x4xf32> -> vector<128x4xf32>
    %122 = arith.addf %118, %121 : vector<128x4xf32>
    %cst_148 = arith.constant dense<0.000000e+00> : vector<4xf32>
    %123 = vector.multi_reduction <add>, %71, %cst_148 [0] : vector<128x4xf32> to vector<4xf32>
    %124 = vector.shape_cast %123 : vector<4xf32> to vector<1x4xf32>
    %cst_149 = arith.constant dense<0.000000e+00> : vector<4xf32>
    %125 = vector.multi_reduction <add>, %88, %cst_149 [0] : vector<128x4xf32> to vector<4xf32>
    %126 = vector.shape_cast %125 : vector<4xf32> to vector<1x4xf32>
    %127 = arith.addf %124, %126 : vector<1x4xf32>
    %cst_150 = arith.constant dense<0.000000e+00> : vector<4xf32>
    %128 = vector.multi_reduction <add>, %105, %cst_150 [0] : vector<128x4xf32> to vector<4xf32>
    %129 = vector.shape_cast %128 : vector<4xf32> to vector<1x4xf32>
    %130 = arith.addf %127, %129 : vector<1x4xf32>
    %cst_151 = arith.constant dense<0.000000e+00> : vector<4xf32>
    %131 = vector.multi_reduction <add>, %122, %cst_151 [0] : vector<128x4xf32> to vector<4xf32>
    %132 = vector.shape_cast %131 : vector<4xf32> to vector<1x4xf32>
    %133 = arith.addf %130, %132 : vector<1x4xf32>
    %cst_152 = arith.constant 5.120000e+02 : f32
    %134 = vector.broadcast %cst_152 : f32 to vector<1x4xf32>
    %135 = arith.divf %133, %134 : vector<1x4xf32>
    %136 = vector.broadcast %135 : vector<1x4xf32> to vector<128x4xf32>
    %137 = arith.subf %71, %136 : vector<128x4xf32>
    %138 = arith.mulf %137, %137 : vector<128x4xf32>
    %cst_153 = arith.constant dense<0.000000e+00> : vector<4xf32>
    %139 = vector.multi_reduction <add>, %138, %cst_153 [0] : vector<128x4xf32> to vector<4xf32>
    %140 = vector.shape_cast %139 : vector<4xf32> to vector<1x4xf32>
    %141 = vector.broadcast %135 : vector<1x4xf32> to vector<128x4xf32>
    %142 = arith.subf %88, %141 : vector<128x4xf32>
    %143 = arith.mulf %142, %142 : vector<128x4xf32>
    %cst_154 = arith.constant dense<0.000000e+00> : vector<4xf32>
    %144 = vector.multi_reduction <add>, %143, %cst_154 [0] : vector<128x4xf32> to vector<4xf32>
    %145 = vector.shape_cast %144 : vector<4xf32> to vector<1x4xf32>
    %146 = arith.addf %140, %145 : vector<1x4xf32>
    %147 = vector.broadcast %135 : vector<1x4xf32> to vector<128x4xf32>
    %148 = arith.subf %105, %147 : vector<128x4xf32>
    %149 = arith.mulf %148, %148 : vector<128x4xf32>
    %cst_155 = arith.constant dense<0.000000e+00> : vector<4xf32>
    %150 = vector.multi_reduction <add>, %149, %cst_155 [0] : vector<128x4xf32> to vector<4xf32>
    %151 = vector.shape_cast %150 : vector<4xf32> to vector<1x4xf32>
    %152 = arith.addf %146, %151 : vector<1x4xf32>
    %153 = vector.broadcast %135 : vector<1x4xf32> to vector<128x4xf32>
    %154 = arith.subf %122, %153 : vector<128x4xf32>
    %155 = arith.mulf %154, %154 : vector<128x4xf32>
    %cst_156 = arith.constant dense<0.000000e+00> : vector<4xf32>
    %156 = vector.multi_reduction <add>, %155, %cst_156 [0] : vector<128x4xf32> to vector<4xf32>
    %157 = vector.shape_cast %156 : vector<4xf32> to vector<1x4xf32>
    %158 = arith.addf %152, %157 : vector<1x4xf32>
    %cst_157 = arith.constant 5.120000e+02 : f32
    %159 = vector.broadcast %cst_157 : f32 to vector<1x4xf32>
    %160 = arith.divf %158, %159 : vector<1x4xf32>
    %cst_158 = arith.constant 9.99999974E-6 : f32
    %161 = vector.broadcast %cst_158 : f32 to vector<1x4xf32>
    %162 = arith.addf %160, %161 : vector<1x4xf32>
    %163 = math.rsqrt %162 : vector<1x4xf32>
    %164 = vector.broadcast %135 : vector<1x4xf32> to vector<128x4xf32>
    %165 = arith.subf %71, %164 : vector<128x4xf32>
    %166 = vector.broadcast %163 : vector<1x4xf32> to vector<128x4xf32>
    %167 = arith.mulf %165, %166 : vector<128x4xf32>
    %c0_159 = arith.constant 0 : index
    %c0_160 = arith.constant 0 : index
    %c0_161 = arith.constant 0 : index
    %168 = vector.load %arg4[%c0_159, %c0_160, %c0_161] : memref<4x128x4xf32, #tpu.memory_space<vmem>>, vector<1x128x4xf32>
    %169 = vector.shape_cast %168 : vector<1x128x4xf32> to vector<128x4xf32>
    %170 = vector.shape_cast %167 : vector<128x4xf32> to vector<1x128x4xf32>
    tpu.vector_store %arg4[%c0_159, %c0_160, %c0_161], %170 {strides = array<i32>} : memref<4x128x4xf32, #tpu.memory_space<vmem>>, vector<1x128x4xf32>,
    %171 = vector.broadcast %135 : vector<1x4xf32> to vector<128x4xf32>
    %172 = arith.subf %88, %171 : vector<128x4xf32>
    %173 = vector.broadcast %163 : vector<1x4xf32> to vector<128x4xf32>
    %174 = arith.mulf %172, %173 : vector<128x4xf32>
    %c1_162 = arith.constant 1 : index
    %c0_163 = arith.constant 0 : index
    %c0_164 = arith.constant 0 : index
    %175 = vector.load %arg4[%c1_162, %c0_163, %c0_164] : memref<4x128x4xf32, #tpu.memory_space<vmem>>, vector<1x128x4xf32>
    %176 = vector.shape_cast %175 : vector<1x128x4xf32> to vector<128x4xf32>
    %177 = vector.shape_cast %174 : vector<128x4xf32> to vector<1x128x4xf32>
    tpu.vector_store %arg4[%c1_162, %c0_163, %c0_164], %177 {strides = array<i32>} : memref<4x128x4xf32, #tpu.memory_space<vmem>>, vector<1x128x4xf32>,
    %178 = vector.broadcast %135 : vector<1x4xf32> to vector<128x4xf32>
    %179 = arith.subf %105, %178 : vector<128x4xf32>
    %180 = vector.broadcast %163 : vector<1x4xf32> to vector<128x4xf32>
    %181 = arith.mulf %179, %180 : vector<128x4xf32>
    %c2_165 = arith.constant 2 : index
    %c0_166 = arith.constant 0 : index
    %c0_167 = arith.constant 0 : index
    %182 = vector.load %arg4[%c2_165, %c0_166, %c0_167] : memref<4x128x4xf32, #tpu.memory_space<vmem>>, vector<1x128x4xf32>
    %183 = vector.shape_cast %182 : vector<1x128x4xf32> to vector<128x4xf32>
    %184 = vector.shape_cast %181 : vector<128x4xf32> to vector<1x128x4xf32>
    tpu.vector_store %arg4[%c2_165, %c0_166, %c0_167], %184 {strides = array<i32>} : memref<4x128x4xf32, #tpu.memory_space<vmem>>, vector<1x128x4xf32>,
    %185 = vector.broadcast %135 : vector<1x4xf32> to vector<128x4xf32>
    %186 = arith.subf %122, %185 : vector<128x4xf32>
    %187 = vector.broadcast %163 : vector<1x4xf32> to vector<128x4xf32>
    %188 = arith.mulf %186, %187 : vector<128x4xf32>
    %c3_168 = arith.constant 3 : index
    %c0_169 = arith.constant 0 : index
    %c0_170 = arith.constant 0 : index
    %189 = vector.load %arg4[%c3_168, %c0_169, %c0_170] : memref<4x128x4xf32, #tpu.memory_space<vmem>>, vector<1x128x4xf32>
    %190 = vector.shape_cast %189 : vector<1x128x4xf32> to vector<128x4xf32>
    %191 = vector.shape_cast %188 : vector<128x4xf32> to vector<1x128x4xf32>
    tpu.vector_store %arg4[%c3_168, %c0_169, %c0_170], %191 {strides = array<i32>} : memref<4x128x4xf32, #tpu.memory_space<vmem>>, vector<1x128x4xf32>,
    return
  }
  func.func @transform_0(%arg0: i32) -> (i32, i32, i32, i32) {
    %c0_i32 = arith.constant 0 : i32
    %c0_i32_0 = arith.constant 0 : i32
    %c0_i32_1 = arith.constant 0 : i32
    %c0_i32_2 = arith.constant 0 : i32
    %c0_i32_3 = arith.constant 0 : i32
    return %c0_i32, %c0_i32_0, %c0_i32_1, %c0_i32_2 : i32, i32, i32, i32
  }
  func.func @transform_1(%arg0: i32) -> (i32, i32, i32) {
    %c0_i32 = arith.constant 0 : i32
    %c0_i32_0 = arith.constant 0 : i32
    %c0_i32_1 = arith.constant 0 : i32
    %c0_i32_2 = arith.constant 0 : i32
    return %c0_i32, %c0_i32_0, %c0_i32_1 : i32, i32, i32
  }
  func.func @transform_2(%arg0: i32) -> (i32, i32, i32, i32) {
    %c0_i32 = arith.constant 0 : i32
    %c0_i32_0 = arith.constant 0 : i32
    %c0_i32_1 = arith.constant 0 : i32
    %c0_i32_2 = arith.constant 0 : i32
    %c0_i32_3 = arith.constant 0 : i32
    return %c0_i32, %c0_i32_0, %c0_i32_1, %c0_i32_2 : i32, i32, i32, i32
  }
  func.func @transform_3(%arg0: i32) -> (i32, i32, i32) {
    %c0_i32 = arith.constant 0 : i32
    %c0_i32_0 = arith.constant 0 : i32
    %c0_i32_1 = arith.constant 0 : i32
    %c0_i32_2 = arith.constant 0 : i32
    return %c0_i32, %c0_i32_0, %c0_i32_1 : i32, i32, i32
  }
}

</mosaic_0001>

<llo_original>
// kernel: unet_innermost_block.1
$region0: #{unet_innermost_block.1}
  #allocation0 [shape = 'u32[]', space=smem, size = 0x4, offset = 0x4, fixed_abs, tag = 'smem constant byte address 0x4 - core index']
  #allocation1 [shape = 'u32[144,128]{1,0:T(1,128)}', space=vmem, size = 0x12000, scoped, tag = 'internal scratch']
  #allocation2 [shape = 'f32[2,10,10,8]{3,2,1,0:T(8,128)}', space=vmem, size = 0x28000, scoped, tag = 'scratch operand']
  %s0 = inlined_call_operand.vmem [shape: f32[2,9,9,16], index: 0, kind: input, shape index: {}]
  %s1 = inlined_call_operand.vmem [shape: f32[4,16,8], index: 1, kind: input, shape index: {}]
  %s2 = inlined_call_operand.vmem [shape: f32[4,4,8,4], index: 2, kind: input, shape index: {}]
  %s3 = inlined_call_operand.vmem [shape: f32[4,128,4], index: 3, kind: output, shape index: {}]
  %s4 = sld [smem:[#allocation0]]
  $region22: #{unet_innermost_block.1} parent=0
    _
  %s6 = ssub.s32 1, %s4
  %s7 = scalar_select 0, %s6, %s4
  // Predicated region
  $region2: #{unet_innermost_block.1} parent=0 // pred_check
    _
  $region3: #{unet_innermost_block.1} parent=0 // pred_check_branch
    %9 = sbr.rel (0) target = $region5
  $region4: #{unet_innermost_block.1} parent=0 // pred_region
    _
  $region5: #{unet_innermost_block.1} parent=0 // pred_fallthru
    _
  // Predicated region
  $region6: #{unet_innermost_block.1} parent=0 // pred_check
    _
  $region7: #{unet_innermost_block.1} parent=0 // pred_check_branch
    %11 = sbr.rel (0) target = $region9
  $region8: #{unet_innermost_block.1} parent=0 // pred_region
    _
  $region9: #{unet_innermost_block.1} parent=0 // pred_fallthru
    _
  // Predicated region
  $region10: #{unet_innermost_block.1} parent=0 // pred_check
    _
  $region11: #{unet_innermost_block.1} parent=0 // pred_check_branch
    %13 = sbr.rel (0) target = $region13
  $region12: #{unet_innermost_block.1} parent=0 // pred_region
    _
  $region13: #{unet_innermost_block.1} parent=0 // pred_fallthru
    _
  %v14 = vld [vmem:[%s0] sm:$0xff]
  %v15 = vld [vmem:[%s0 + $0x8] sm:$0x1]
  %v16 = vld [vmem:[%s0 + $0x10] sm:$0xff]
  %v17 = vld [vmem:[%s0 + $0x18] sm:$0x1]
  %v18 = vld [vmem:[%s0 + $0x20] sm:$0xff]
  %v19 = vld [vmem:[%s0 + $0x28] sm:$0x1]
  %v20 = vld [vmem:[%s0 + $0x30] sm:$0xff]
  %v21 = vld [vmem:[%s0 + $0x38] sm:$0x1]
  %v22 = vld [vmem:[%s0 + $0x40] sm:$0xff]
  %v23 = vld [vmem:[%s0 + $0x48] sm:$0x1]
  %v24 = vld [vmem:[%s0 + $0x50] sm:$0xff]
  %v25 = vld [vmem:[%s0 + $0x58] sm:$0x1]
  %v26 = vld [vmem:[%s0 + $0x60] sm:$0xff]
  %v27 = vld [vmem:[%s0 + $0x68] sm:$0x1]
  %v28 = vld [vmem:[%s0 + $0x70] sm:$0xff]
  %v29 = vld [vmem:[%s0 + $0x78] sm:$0x1]
  %v30 = vld [vmem:[%s0 + $0x80] sm:$0xff]
  %v31 = vld [vmem:[%s0 + $0x88] sm:$0x1]
  %v32 = vld [vmem:[%s0 + $0x90] sm:$0xff]
  %v33 = vld [vmem:[%s0 + $0x98] sm:$0x1]
  %v34 = vld [vmem:[%s0 + $0xa0] sm:$0xff]
  %v35 = vld [vmem:[%s0 + $0xa8] sm:$0x1]
  %v36 = vld [vmem:[%s0 + $0xb0] sm:$0xff]
  %v37 = vld [vmem:[%s0 + $0xb8] sm:$0x1]
  %v38 = vld [vmem:[%s0 + $0xc0] sm:$0xff]
  %v39 = vld [vmem:[%s0 + $0xc8] sm:$0x1]
  %v40 = vld [vmem:[%s0 + $0xd0] sm:$0xff]
  %v41 = vld [vmem:[%s0 + $0xd8] sm:$0x1]
  %v42 = vld [vmem:[%s0 + $0xe0] sm:$0xff]
  %v43 = vld [vmem:[%s0 + $0xe8] sm:$0x1]
  %v44 = vld [vmem:[%s0 + $0xf0] sm:$0xff]
  %v45 = vld [vmem:[%s0 + $0xf8] sm:$0x1]
  %v46 = vld [vmem:[%s0 + $0x100] sm:$0xff]
  %v47 = vld [vmem:[%s0 + $0x108] sm:$0x1]
  %v48 = vld [vmem:[%s0 + $0x110] sm:$0xff]
  %v49 = vld [vmem:[%s0 + $0x118] sm:$0x1]
  %vm50 = vcmp.gt.f32.partialorder %v14, 0.0
  %vm51 = vcmp.gt.f32.partialorder %v15, 0.0
  %vm52 = vcmp.gt.f32.partialorder %v16, 0.0
  %vm53 = vcmp.gt.f32.partialorder %v17, 0.0
  %vm54 = vcmp.gt.f32.partialorder %v18, 0.0
  %vm55 = vcmp.gt.f32.partialorder %v19, 0.0
  %vm56 = vcmp.gt.f32.partialorder %v20, 0.0
  %vm57 = vcmp.gt.f32.partialorder %v21, 0.0
  %vm58 = vcmp.gt.f32.partialorder %v22, 0.0
  %vm59 = vcmp.gt.f32.partialorder %v23, 0.0
  %vm60 = vcmp.gt.f32.partialorder %v24, 0.0
  %vm61 = vcmp.gt.f32.partialorder %v25, 0.0
  %vm62 = vcmp.gt.f32.partialorder %v26, 0.0
  %vm63 = vcmp.gt.f32.partialorder %v27, 0.0
  %vm64 = vcmp.gt.f32.partialorder %v28, 0.0
  %vm65 = vcmp.gt.f32.partialorder %v29, 0.0
  %vm66 = vcmp.gt.f32.partialorder %v30, 0.0
  %vm67 = vcmp.gt.f32.partialorder %v31, 0.0
  %vm68 = vcmp.gt.f32.partialorder %v32, 0.0
  %vm69 = vcmp.gt.f32.partialorder %v33, 0.0
  %vm70 = vcmp.gt.f32.partialorder %v34, 0.0
  %vm71 = vcmp.gt.f32.partialorder %v35, 0.0
  %vm72 = vcmp.gt.f32.partialorder %v36, 0.0
  %vm73 = vcmp.gt.f32.partialorder %v37, 0.0
  %vm74 = vcmp.gt.f32.partialorder %v38, 0.0
  %vm75 = vcmp.gt.f32.partialorder %v39, 0.0
  %vm76 = vcmp.gt.f32.partialorder %v40, 0.0
  %vm77 = vcmp.gt.f32.partialorder %v41, 0.0
  %vm78 = vcmp.gt.f32.partialorder %v42, 0.0
  %vm79 = vcmp.gt.f32.partialorder %v43, 0.0
  %vm80 = vcmp.gt.f32.partialorder %v44, 0.0
  %vm81 = vcmp.gt.f32.partialorder %v45, 0.0
  %vm82 = vcmp.gt.f32.partialorder %v46, 0.0
  %vm83 = vcmp.gt.f32.partialorder %v47, 0.0
  %vm84 = vcmp.gt.f32.partialorder %v48, 0.0
  %vm85 = vcmp.gt.f32.partialorder %v49, 0.0
  %v86 = vmul.f32 %v14, 0.2
  %v87 = vmul.f32 %v15, 0.2
  %v88 = vmul.f32 %v16, 0.2
  %v89 = vmul.f32 %v17, 0.2
  %v90 = vmul.f32 %v18, 0.2
  %v91 = vmul.f32 %v19, 0.2
  %v92 = vmul.f32 %v20, 0.2
  %v93 = vmul.f32 %v21, 0.2
  %v94 = vmul.f32 %v22, 0.2
  %v95 = vmul.f32 %v23, 0.2
  %v96 = vmul.f32 %v24, 0.2
  %v97 = vmul.f32 %v25, 0.2
  %v98 = vmul.f32 %v26, 0.2
  %v99 = vmul.f32 %v27, 0.2
  %v100 = vmul.f32 %v28, 0.2
  %v101 = vmul.f32 %v29, 0.2
  %v102 = vmul.f32 %v30, 0.2
  %v103 = vmul.f32 %v31, 0.2
  %v104 = vmul.f32 %v32, 0.2
  %v105 = vmul.f32 %v33, 0.2
  %v106 = vmul.f32 %v34, 0.2
  %v107 = vmul.f32 %v35, 0.2
  %v108 = vmul.f32 %v36, 0.2
  %v109 = vmul.f32 %v37, 0.2
  %v110 = vmul.f32 %v38, 0.2
  %v111 = vmul.f32 %v39, 0.2
  %v112 = vmul.f32 %v40, 0.2
  %v113 = vmul.f32 %v41, 0.2
  %v114 = vmul.f32 %v42, 0.2
  %v115 = vmul.f32 %v43, 0.2
  %v116 = vmul.f32 %v44, 0.2
  %v117 = vmul.f32 %v45, 0.2
  %v118 = vmul.f32 %v46, 0.2
  %v119 = vmul.f32 %v47, 0.2
  %v120 = vmul.f32 %v48, 0.2
  %v121 = vmul.f32 %v49, 0.2
  %v122 = vsel %vm50, %v14, %v86
  %v123 = vsel %vm51, %v15, %v87
  %v124 = vsel %vm52, %v16, %v88
  %v125 = vsel %vm53, %v17, %v89
  %v126 = vsel %vm54, %v18, %v90
  %v127 = vsel %vm55, %v19, %v91
  %v128 = vsel %vm56, %v20, %v92
  %v129 = vsel %vm57, %v21, %v93
  %v130 = vsel %vm58, %v22, %v94
  %v131 = vsel %vm59, %v23, %v95
  %v132 = vsel %vm60, %v24, %v96
  %v133 = vsel %vm61, %v25, %v97
  %v134 = vsel %vm62, %v26, %v98
  %v135 = vsel %vm63, %v27, %v99
  %v136 = vsel %vm64, %v28, %v100
  %v137 = vsel %vm65, %v29, %v101
  %v138 = vsel %vm66, %v30, %v102
  %v139 = vsel %vm67, %v31, %v103
  %v140 = vsel %vm68, %v32, %v104
  %v141 = vsel %vm69, %v33, %v105
  %v142 = vsel %vm70, %v34, %v106
  %v143 = vsel %vm71, %v35, %v107
  %v144 = vsel %vm72, %v36, %v108
  %v145 = vsel %vm73, %v37, %v109
  %v146 = vsel %vm74, %v38, %v110
  %v147 = vsel %vm75, %v39, %v111
  %v148 = vsel %vm76, %v40, %v112
  %v149 = vsel %vm77, %v41, %v113
  %v150 = vsel %vm78, %v42, %v114
  %v151 = vsel %vm79, %v43, %v115
  %v152 = vsel %vm80, %v44, %v116
  %v153 = vsel %vm81, %v45, %v117
  %v154 = vsel %vm82, %v46, %v118
  %v155 = vsel %vm83, %v47, %v119
  %v156 = vsel %vm84, %v48, %v120
  %v157 = vsel %vm85, %v49, %v121
  %v158 = vld [vmem:[%s1] sm:$0xff]
  %v159 = vld [vmem:[%s1 + $0x8] sm:$0xff]
  %vm192 = vcmask 1046528
  %v193 = vrot.slane %v122, 1
  %v194 = vrot.slane %v123, 1
  %v195 = vsel %vm192, %v193, %v194
  %v196 = vrot.slane %v124, 1
  %v197 = vrot.slane %v125, 1
  %v198 = vsel %vm192, %v196, %v197
  %v199 = vrot.slane %v126, 1
  %v200 = vrot.slane %v127, 1
  %v201 = vsel %vm192, %v199, %v200
  %v202 = vrot.slane %v128, 1
  %v203 = vrot.slane %v129, 1
  %v204 = vsel %vm192, %v202, %v203
  %v205 = vrot.slane %v130, 1
  %v206 = vrot.slane %v131, 1
  %v207 = vsel %vm192, %v205, %v206
  %v208 = vrot.slane %v132, 1
  %v209 = vrot.slane %v133, 1
  %v210 = vsel %vm192, %v208, %v209
  %v211 = vrot.slane %v134, 1
  %v212 = vrot.slane %v135, 1
  %v213 = vsel %vm192, %v211, %v212
  %v214 = vrot.slane %v136, 1
  %v215 = vrot.slane %v137, 1
  %v216 = vsel %vm192, %v214, %v215
  %v217 = vrot.slane %v140, 1
  %v218 = vrot.slane %v141, 1
  %v219 = vsel %vm192, %v217, %v218
  %v220 = vrot.slane %v142, 1
  %v221 = vrot.slane %v143, 1
  %v222 = vsel %vm192, %v220, %v221
  %v223 = vrot.slane %v144, 1
  %v224 = vrot.slane %v145, 1
  %v225 = vsel %vm192, %v223, %v224
  %v226 = vrot.slane %v146, 1
  %v227 = vrot.slane %v147, 1
  %v228 = vsel %vm192, %v226, %v227
  %v229 = vrot.slane %v148, 1
  %v230 = vrot.slane %v149, 1
  %v231 = vsel %vm192, %v229, %v230
  %v232 = vrot.slane %v150, 1
  %v233 = vrot.slane %v151, 1
  %v234 = vsel %vm192, %v232, %v233
  %v235 = vrot.slane %v152, 1
  %v236 = vrot.slane %v153, 1
  %v237 = vsel %vm192, %v235, %v236
  %v238 = vrot.slane %v154, 1
  %v239 = vrot.slane %v155, 1
  %v240 = vsel %vm192, %v238, %v239
  %s241 = scalar_lea.vmem %s1, 16
  %v242 = vld [vmem:[%s241] sm:$0xff]
  %v243 = vld [vmem:[%s241 + $0x8] sm:$0xff]
  %vm244 = vcmask 130048
  %v245 = vsel %vm244, %v195, 0
  %v247 = vsel %vm244, %v198, 0
  %v249 = vsel %vm244, %v201, 0
  %v251 = vsel %vm244, %v204, 0
  %v253 = vsel %vm244, %v207, 0
  %v255 = vsel %vm244, %v210, 0
  %v257 = vsel %vm244, %v213, 0
  %v259 = vsel %vm244, %v216, 0
  %v261 = vsel %vm244, %v219, 0
  %v263 = vsel %vm244, %v222, 0
  %v265 = vsel %vm244, %v225, 0
  %v267 = vsel %vm244, %v228, 0
  %v269 = vsel %vm244, %v231, 0
  %v271 = vsel %vm244, %v234, 0
  %v273 = vsel %vm244, %v237, 0
  %v275 = vsel %vm244, %v240, 0
  %277 = vmatprep.subr.mxu0 0.0
  %278 = vmatpush1.msra.mxu0 %v242
  %279 = vmatprep.subr.mxu0 0.0
  %280 = vmatpush1.msra.mxu0 %v243
  %281 = vmatprep.subr.mxu0 0.0
  %282 = vmatpush1.msra.mxu0 0.0
  %283 = vmatprep.subr.mxu0 0.0
  %284 = vmatpush1.msra.mxu0 0.0
  %285 = vmatprep.subr.mxu0 0.0
  %286 = vmatpush1.msra.mxu0 0.0
  %287 = vmatprep.subr.mxu0 0.0
  %288 = vmatpush1.msra.mxu0 0.0
  %289 = vmatprep.subr.mxu0 0.0
  %290 = vmatpush1.msra.mxu0 0.0
  %291 = vmatprep.subr.mxu0 0.0
  %292 = vmatpush1.msra.mxu0 0.0
  %293 = vmatprep.subr.mxu0 0.0
  %294 = vmatpush1.msra.mxu0 0.0
  %295 = vmatprep.subr.mxu0 0.0
  %296 = vmatpush1.msra.mxu0 0.0
  %297 = vmatprep.subr.mxu0 0.0
  %298 = vmatpush1.msra.mxu0 0.0
  %299 = vmatprep.subr.mxu0 0.0
  %300 = vmatpush1.msra.mxu0 0.0
  %301 = vmatprep.subr.mxu0 0.0
  %302 = vmatpush1.msra.mxu0 0.0
  %303 = vmatprep.subr.mxu0 0.0
  %304 = vmatpush1.msra.mxu0 0.0
  %305 = vmatprep.subr.mxu0 0.0
  %306 = vmatpush1.msra.mxu0 0.0
  %307 = vmatprep.subr.mxu0 0.0
  %308 = vmatpush1.msra.mxu0 0.0
  %309 = vmatprep.subr.mxu0 0.0
  %310 = vmatpush1.msra.mxu0 0.0
  %311 = vmatprep.subr.mxu0 0.0
  %312 = vmatpush1.msra.mxu0 0.0
  %313 = vmatprep.subr.mxu0 0.0
  %314 = vmatpush1.msra.mxu0 0.0
  %315 = vmatprep.subr.mxu0 0.0
  %316 = vmatpush1.msra.mxu0 0.0
  %317 = vmatprep.subr.mxu0 0.0
  %318 = vmatpush1.msra.mxu0 0.0
  %319 = vmatprep.subr.mxu0 0.0
  %320 = vmatpush1.msra.mxu0 0.0
  %321 = vmatprep.subr.mxu0 0.0
  %322 = vmatpush1.msra.mxu0 0.0
  %323 = vmatprep.subr.mxu0 0.0
  %324 = vmatpush1.msra.mxu0 0.0
  %325 = vmatprep.subr.mxu0 0.0
  %326 = vmatpush1.msra.mxu0 0.0
  %327 = vmatprep.subr.mxu0 0.0
  %328 = vmatpush1.msra.mxu0 0.0
  %329 = vmatprep.subr.mxu0 0.0
  %330 = vmatpush1.msra.mxu0 0.0
  %331 = vmatprep.subr.mxu0 0.0
  %332 = vmatpush1.msra.mxu0 0.0
  %333 = vmatprep.subr.mxu0 0.0
  %334 = vmatpush1.msra.mxu0 0.0
  %335 = vmatprep.subr.mxu0 0.0
  %336 = vmatpush1.msra.mxu0 0.0
  %337 = vmatprep.subr.mxu0 0.0
  %338 = vmatpush1.msra.mxu0 0.0
  %339 = vmatprep.subr.mxu0 0.0
  %340 = vmatpush1.msra.mxu0 0.0
  %341 = vmatprep.mubr.f32.mxu0 0.0
  %342 = vmatmul.mubr.f32.gmra.mrb[0].mxu0 %v245
  %v343 = vpop.f32.mrb[0].mxu0
  %v344 = vadd.f32 0.0, %v343
  %v345 = vpop.f32.mrb[0].mxu0
  %346 = vmatprep.mubr.f32.mxu0 0.0
  %347 = vmatmul.mubr.f32.gmra.mrb[0].mxu0 %v247
  %v348 = vpop.f32.mrb[0].mxu0
  %v349 = vadd.f32 0.0, %v348
  %v350 = vpop.f32.mrb[0].mxu0
  %351 = vmatprep.mubr.f32.mxu0 0.0
  %352 = vmatmul.mubr.f32.gmra.mrb[0].mxu0 %v249
  %v353 = vpop.f32.mrb[0].mxu0
  %v354 = vadd.f32 0.0, %v353
  %v355 = vpop.f32.mrb[0].mxu0
  %356 = vmatprep.mubr.f32.mxu0 0.0
  %357 = vmatmul.mubr.f32.gmra.mrb[0].mxu0 %v251
  %v358 = vpop.f32.mrb[0].mxu0
  %v359 = vadd.f32 0.0, %v358
  %v360 = vpop.f32.mrb[0].mxu0
  %361 = vmatprep.mubr.f32.mxu0 0.0
  %362 = vmatmul.mubr.f32.gmra.mrb[0].mxu0 %v253
  %v363 = vpop.f32.mrb[0].mxu0
  %v364 = vadd.f32 0.0, %v363
  %v365 = vpop.f32.mrb[0].mxu0
  %366 = vmatprep.mubr.f32.mxu0 0.0
  %367 = vmatmul.mubr.f32.gmra.mrb[0].mxu0 %v255
  %v368 = vpop.f32.mrb[0].mxu0
  %v369 = vadd.f32 0.0, %v368
  %v370 = vpop.f32.mrb[0].mxu0
  %371 = vmatprep.mubr.f32.mxu0 0.0
  %372 = vmatmul.mubr.f32.gmra.mrb[0].mxu0 %v257
  %v373 = vpop.f32.mrb[0].mxu0
  %v374 = vadd.f32 0.0, %v373
  %v375 = vpop.f32.mrb[0].mxu0
  %376 = vmatprep.mubr.f32.mxu0 0.0
  %377 = vmatmul.mubr.f32.gmra.mrb[0].mxu0 %v259
  %v378 = vpop.f32.mrb[0].mxu0
  %v379 = vadd.f32 0.0, %v378
  %v380 = vpop.f32.mrb[0].mxu0
  %381 = vmatprep.mubr.f32.mxu0 0.0
  %382 = vmatmul.mubr.f32.gmra.mrb[0].mxu0 %v261
  %v383 = vpop.f32.mrb[0].mxu0
  %v384 = vadd.f32 0.0, %v383
  %v385 = vpop.f32.mrb[0].mxu0
  %386 = vmatprep.mubr.f32.mxu0 0.0
  %387 = vmatmul.mubr.f32.gmra.mrb[0].mxu0 %v263
  %v388 = vpop.f32.mrb[0].mxu0
  %v389 = vadd.f32 0.0, %v388
  %v390 = vpop.f32.mrb[0].mxu0
  %391 = vmatprep.mubr.f32.mxu0 0.0
  %392 = vmatmul.mubr.f32.gmra.mrb[0].mxu0 %v265
  %v393 = vpop.f32.mrb[0].mxu0
  %v394 = vadd.f32 0.0, %v393
  %v395 = vpop.f32.mrb[0].mxu0
  %396 = vmatprep.mubr.f32.mxu0 0.0
  %397 = vmatmul.mubr.f32.gmra.mrb[0].mxu0 %v267
  %v398 = vpop.f32.mrb[0].mxu0
  %v399 = vadd.f32 0.0, %v398
  %v400 = vpop.f32.mrb[0].mxu0
  %401 = vmatprep.mubr.f32.mxu0 0.0
  %402 = vmatmul.mubr.f32.gmra.mrb[0].mxu0 %v269
  %v403 = vpop.f32.mrb[0].mxu0
  %v404 = vadd.f32 0.0, %v403
  %v405 = vpop.f32.mrb[0].mxu0
  %406 = vmatprep.mubr.f32.mxu0 0.0
  %407 = vmatmul.mubr.f32.gmra.mrb[0].mxu0 %v271
  %v408 = vpop.f32.mrb[0].mxu0
  %v409 = vadd.f32 0.0, %v408
  %v410 = vpop.f32.mrb[0].mxu0
  %411 = vmatprep.mubr.f32.mxu0 0.0
  %412 = vmatmul.mubr.f32.gmra.mrb[0].mxu0 %v273
  %v413 = vpop.f32.mrb[0].mxu0
  %v414 = vadd.f32 0.0, %v413
  %v415 = vpop.f32.mrb[0].mxu0
  %416 = vmatprep.mubr.f32.mxu0 0.0
  %417 = vmatmul.mubr.f32.gmra.mrb[0].mxu0 %v275
  %v418 = vpop.f32.mrb[0].mxu0
  %v419 = vadd.f32 0.0, %v418
  %v420 = vpop.f32.mrb[0].mxu0
  %421 = vdwg.mxu0
  %v422 = vsel %vm244, %v122, 0
  %v424 = vsel %vm244, %v124, 0
  %v426 = vsel %vm244, %v126, 0
  %v428 = vsel %vm244, %v128, 0
  %v430 = vsel %vm244, %v130, 0
  %v432 = vsel %vm244, %v132, 0
  %v434 = vsel %vm244, %v134, 0
  %v436 = vsel %vm244, %v136, 0
  %v438 = vsel %vm244, %v140, 0
  %v440 = vsel %vm244, %v142, 0
  %v442 = vsel %vm244, %v144, 0
  %v444 = vsel %vm244, %v146, 0
  %v446 = vsel %vm244, %v148, 0
  %v448 = vsel %vm244, %v150, 0
  %v450 = vsel %vm244, %v152, 0
  %v452 = vsel %vm244, %v154, 0
  %454 = vmatprep.subr.mxu0 0.0
  %455 = vmatpush1.msra.mxu0 %v158
  %456 = vmatprep.subr.mxu0 0.0
  %457 = vmatpush1.msra.mxu0 %v159
  %458 = vmatprep.subr.mxu0 0.0
  %459 = vmatpush1.msra.mxu0 0.0
  %460 = vmatprep.subr.mxu0 0.0
  %461 = vmatpush1.msra.mxu0 0.0
  %462 = vmatprep.subr.mxu0 0.0
  %463 = vmatpush1.msra.mxu0 0.0
  %464 = vmatprep.subr.mxu0 0.0
  %465 = vmatpush1.msra.mxu0 0.0
  %466 = vmatprep.subr.mxu0 0.0
  %467 = vmatpush1.msra.mxu0 0.0
  %468 = vmatprep.subr.mxu0 0.0
  %469 = vmatpush1.msra.mxu0 0.0
  %470 = vmatprep.subr.mxu0 0.0
  %471 = vmatpush1.msra.mxu0 0.0
  %472 = vmatprep.subr.mxu0 0.0
  %473 = vmatpush1.msra.mxu0 0.0
  %474 = vmatprep.subr.mxu0 0.0
  %475 = vmatpush1.msra.mxu0 0.0
  %476 = vmatprep.subr.mxu0 0.0
  %477 = vmatpush1.msra.mxu0 0.0
  %478 = vmatprep.subr.mxu0 0.0
  %479 = vmatpush1.msra.mxu0 0.0
  %480 = vmatprep.subr.mxu0 0.0
  %481 = vmatpush1.msra.mxu0 0.0
  %482 = vmatprep.subr.mxu0 0.0
  %483 = vmatpush1.msra.mxu0 0.0
  %484 = vmatprep.subr.mxu0 0.0
  %485 = vmatpush1.msra.mxu0 0.0
  %486 = vmatprep.subr.mxu0 0.0
  %487 = vmatpush1.msra.mxu0 0.0
  %488 = vmatprep.subr.mxu0 0.0
  %489 = vmatpush1.msra.mxu0 0.0
  %490 = vmatprep.subr.mxu0 0.0
  %491 = vmatpush1.msra.mxu0 0.0
  %492 = vmatprep.subr.mxu0 0.0
  %493 = vmatpush1.msra.mxu0 0.0
  %494 = vmatprep.subr.mxu0 0.0
  %495 = vmatpush1.msra.mxu0 0.0
  %496 = vmatprep.subr.mxu0 0.0
  %497 = vmatpush1.msra.mxu0 0.0
  %498 = vmatprep.subr.mxu0 0.0
  %499 = vmatpush1.msra.mxu0 0.0
  %500 = vmatprep.subr.mxu0 0.0
  %501 = vmatpush1.msra.mxu0 0.0
  %502 = vmatprep.subr.mxu0 0.0
  %503 = vmatpush1.msra.mxu0 0.0
  %504 = vmatprep.subr.mxu0 0.0
  %505 = vmatpush1.msra.mxu0 0.0
  %506 = vmatprep.subr.mxu0 0.0
  %507 = vmatpush1.msra.mxu0 0.0
  %508 = vmatprep.subr.mxu0 0.0
  %509 = vmatpush1.msra.mxu0 0.0
  %510 = vmatprep.subr.mxu0 0.0
  %511 = vmatpush1.msra.mxu0 0.0
  %512 = vmatprep.subr.mxu0 0.0
  %513 = vmatpush1.msra.mxu0 0.0
  %514 = vmatprep.subr.mxu0 0.0
  %515 = vmatpush1.msra.mxu0 0.0
  %516 = vmatprep.subr.mxu0 0.0
  %517 = vmatpush1.msra.mxu0 0.0
  %518 = vmatprep.mubr.f32.mxu0 0.0
  %519 = vmatmul.mubr.f32.gmra.mrb[0].mxu0 %v422
  %v520 = vpop.f32.mrb[0].mxu0
  %v521 = vadd.f32 %v344, %v520
  %v522 = vpop.f32.mrb[0].mxu0
  %523 = vmatprep.mubr.f32.mxu0 0.0
  %524 = vmatmul.mubr.f32.gmra.mrb[0].mxu0 %v424
  %v525 = vpop.f32.mrb[0].mxu0
  %v526 = vadd.f32 %v349, %v525
  %v527 = vpop.f32.mrb[0].mxu0
  %528 = vmatprep.mubr.f32.mxu0 0.0
  %529 = vmatmul.mubr.f32.gmra.mrb[0].mxu0 %v426
  %v530 = vpop.f32.mrb[0].mxu0
  %v531 = vadd.f32 %v354, %v530
  %v532 = vpop.f32.mrb[0].mxu0
  %533 = vmatprep.mubr.f32.mxu0 0.0
  %534 = vmatmul.mubr.f32.gmra.mrb[0].mxu0 %v428
  %v535 = vpop.f32.mrb[0].mxu0
  %v536 = vadd.f32 %v359, %v535
  %v537 = vpop.f32.mrb[0].mxu0
  %538 = vmatprep.mubr.f32.mxu0 0.0
  %539 = vmatmul.mubr.f32.gmra.mrb[0].mxu0 %v430
  %v540 = vpop.f32.mrb[0].mxu0
  %v541 = vadd.f32 %v364, %v540
  %v542 = vpop.f32.mrb[0].mxu0
  %543 = vmatprep.mubr.f32.mxu0 0.0
  %544 = vmatmul.mubr.f32.gmra.mrb[0].mxu0 %v432
  %v545 = vpop.f32.mrb[0].mxu0
  %v546 = vadd.f32 %v369, %v545
  %v547 = vpop.f32.mrb[0].mxu0
  %548 = vmatprep.mubr.f32.mxu0 0.0
  %549 = vmatmul.mubr.f32.gmra.mrb[0].mxu0 %v434
  %v550 = vpop.f32.mrb[0].mxu0
  %v551 = vadd.f32 %v374, %v550
  %v552 = vpop.f32.mrb[0].mxu0
  %553 = vmatprep.mubr.f32.mxu0 0.0
  %554 = vmatmul.mubr.f32.gmra.mrb[0].mxu0 %v436
  %v555 = vpop.f32.mrb[0].mxu0
  %v556 = vadd.f32 %v379, %v555
  %v557 = vpop.f32.mrb[0].mxu0
  %558 = vmatprep.mubr.f32.mxu0 0.0
  %559 = vmatmul.mubr.f32.gmra.mrb[0].mxu0 %v438
  %v560 = vpop.f32.mrb[0].mxu0
  %v561 = vadd.f32 %v384, %v560
  %v562 = vpop.f32.mrb[0].mxu0
  %563 = vmatprep.mubr.f32.mxu0 0.0
  %564 = vmatmul.mubr.f32.gmra.mrb[0].mxu0 %v440
  %v565 = vpop.f32.mrb[0].mxu0
  %v566 = vadd.f32 %v389, %v565
  %v567 = vpop.f32.mrb[0].mxu0
  %568 = vmatprep.mubr.f32.mxu0 0.0
  %569 = vmatmul.mubr.f32.gmra.mrb[0].mxu0 %v442
  %v570 = vpop.f32.mrb[0].mxu0
  %v571 = vadd.f32 %v394, %v570
  %v572 = vpop.f32.mrb[0].mxu0
  %573 = vmatprep.mubr.f32.mxu0 0.0
  %574 = vmatmul.mubr.f32.gmra.mrb[0].mxu0 %v444
  %v575 = vpop.f32.mrb[0].mxu0
  %v576 = vadd.f32 %v399, %v575
  %v577 = vpop.f32.mrb[0].mxu0
  %578 = vmatprep.mubr.f32.mxu0 0.0
  %579 = vmatmul.mubr.f32.gmra.mrb[0].mxu0 %v446
  %v580 = vpop.f32.mrb[0].mxu0
  %v581 = vadd.f32 %v404, %v580
  %v582 = vpop.f32.mrb[0].mxu0
  %583 = vmatprep.mubr.f32.mxu0 0.0
  %584 = vmatmul.mubr.f32.gmra.mrb[0].mxu0 %v448
  %v585 = vpop.f32.mrb[0].mxu0
  %v586 = vadd.f32 %v409, %v585
  %v587 = vpop.f32.mrb[0].mxu0
  %588 = vmatprep.mubr.f32.mxu0 0.0
  %589 = vmatmul.mubr.f32.gmra.mrb[0].mxu0 %v450
  %v590 = vpop.f32.mrb[0].mxu0
  %v591 = vadd.f32 %v414, %v590
  %v592 = vpop.f32.mrb[0].mxu0
  %593 = vmatprep.mubr.f32.mxu0 0.0
  %594 = vmatmul.mubr.f32.gmra.mrb[0].mxu0 %v452
  %v595 = vpop.f32.mrb[0].mxu0
  %v596 = vadd.f32 %v419, %v595
  %v597 = vpop.f32.mrb[0].mxu0
  %598 = vdwg.mxu0
  %s599 = scalar_lea.vmem %s1, 32
  %v600 = vld [vmem:[%s599] sm:$0xff]
  %v601 = vld [vmem:[%s599 + $0x8] sm:$0xff]
  %v603 = vsel %vm244, %v138, 0
  %v606 = vsel %vm244, %v156, 0
  %608 = vmatprep.subr.mxu0 0.0
  %609 = vmatpush1.msra.mxu0 %v600
  %610 = vmatprep.subr.mxu0 0.0
  %611 = vmatpush1.msra.mxu0 %v601
  %612 = vmatprep.subr.mxu0 0.0
  %613 = vmatpush1.msra.mxu0 0.0
  %614 = vmatprep.subr.mxu0 0.0
  %615 = vmatpush1.msra.mxu0 0.0
  %616 = vmatprep.subr.mxu0 0.0
  %617 = vmatpush1.msra.mxu0 0.0
  %618 = vmatprep.subr.mxu0 0.0
  %619 = vmatpush1.msra.mxu0 0.0
  %620 = vmatprep.subr.mxu0 0.0
  %621 = vmatpush1.msra.mxu0 0.0
  %622 = vmatprep.subr.mxu0 0.0
  %623 = vmatpush1.msra.mxu0 0.0
  %624 = vmatprep.subr.mxu0 0.0
  %625 = vmatpush1.msra.mxu0 0.0
  %626 = vmatprep.subr.mxu0 0.0
  %627 = vmatpush1.msra.mxu0 0.0
  %628 = vmatprep.subr.mxu0 0.0
  %629 = vmatpush1.msra.mxu0 0.0
  %630 = vmatprep.subr.mxu0 0.0
  %631 = vmatpush1.msra.mxu0 0.0
  %632 = vmatprep.subr.mxu0 0.0
  %633 = vmatpush1.msra.mxu0 0.0
  %634 = vmatprep.subr.mxu0 0.0
  %635 = vmatpush1.msra.mxu0 0.0
  %636 = vmatprep.subr.mxu0 0.0
  %637 = vmatpush1.msra.mxu0 0.0
  %638 = vmatprep.subr.mxu0 0.0
  %639 = vmatpush1.msra.mxu0 0.0
  %640 = vmatprep.subr.mxu0 0.0
  %641 = vmatpush1.msra.mxu0 0.0
  %642 = vmatprep.subr.mxu0 0.0
  %643 = vmatpush1.msra.mxu0 0.0
  %644 = vmatprep.subr.mxu0 0.0
  %645 = vmatpush1.msra.mxu0 0.0
  %646 = vmatprep.subr.mxu0 0.0
  %647 = vmatpush1.msra.mxu0 0.0
  %648 = vmatprep.subr.mxu0 0.0
  %649 = vmatpush1.msra.mxu0 0.0
  %650 = vmatprep.subr.mxu0 0.0
  %651 = vmatpush1.msra.mxu0 0.0
  %652 = vmatprep.subr.mxu0 0.0
  %653 = vmatpush1.msra.mxu0 0.0
  %654 = vmatprep.subr.mxu0 0.0
  %655 = vmatpush1.msra.mxu0 0.0
  %656 = vmatprep.subr.mxu0 0.0
  %657 = vmatpush1.msra.mxu0 0.0
  %658 = vmatprep.subr.mxu0 0.0
  %659 = vmatpush1.msra.mxu0 0.0
  %660 = vmatprep.subr.mxu0 0.0
  %661 = vmatpush1.msra.mxu0 0.0
  %662 = vmatprep.subr.mxu0 0.0
  %663 = vmatpush1.msra.mxu0 0.0
  %664 = vmatprep.subr.mxu0 0.0
  %665 = vmatpush1.msra.mxu0 0.0
  %666 = vmatprep.subr.mxu0 0.0
  %667 = vmatpush1.msra.mxu0 0.0
  %668 = vmatprep.subr.mxu0 0.0
  %669 = vmatpush1.msra.mxu0 0.0
  %670 = vmatprep.subr.mxu0 0.0
  %671 = vmatpush1.msra.mxu0 0.0
  %672 = vmatprep.mubr.f32.mxu0 0.0
  %673 = vmatmul.mubr.f32.gmra.mrb[0].mxu0 %v424
  %v674 = vpop.f32.mrb[0].mxu0
  %v675 = vadd.f32 0.0, %v674
  %v676 = vpop.f32.mrb[0].mxu0
  %677 = vmatprep.mubr.f32.mxu0 0.0
  %678 = vmatmul.mubr.f32.gmra.mrb[0].mxu0 %v426
  %v679 = vpop.f32.mrb[0].mxu0
  %v680 = vadd.f32 0.0, %v679
  %v681 = vpop.f32.mrb[0].mxu0
  %682 = vmatprep.mubr.f32.mxu0 0.0
  %683 = vmatmul.mubr.f32.gmra.mrb[0].mxu0 %v428
  %v684 = vpop.f32.mrb[0].mxu0
  %v685 = vadd.f32 0.0, %v684
  %v686 = vpop.f32.mrb[0].mxu0
  %687 = vmatprep.mubr.f32.mxu0 0.0
  %688 = vmatmul.mubr.f32.gmra.mrb[0].mxu0 %v430
  %v689 = vpop.f32.mrb[0].mxu0
  %v690 = vadd.f32 0.0, %v689
  %v691 = vpop.f32.mrb[0].mxu0
  %692 = vmatprep.mubr.f32.mxu0 0.0
  %693 = vmatmul.mubr.f32.gmra.mrb[0].mxu0 %v432
  %v694 = vpop.f32.mrb[0].mxu0
  %v695 = vadd.f32 0.0, %v694
  %v696 = vpop.f32.mrb[0].mxu0
  %697 = vmatprep.mubr.f32.mxu0 0.0
  %698 = vmatmul.mubr.f32.gmra.mrb[0].mxu0 %v434
  %v699 = vpop.f32.mrb[0].mxu0
  %v700 = vadd.f32 0.0, %v699
  %v701 = vpop.f32.mrb[0].mxu0
  %702 = vmatprep.mubr.f32.mxu0 0.0
  %703 = vmatmul.mubr.f32.gmra.mrb[0].mxu0 %v436
  %v704 = vpop.f32.mrb[0].mxu0
  %v705 = vadd.f32 0.0, %v704
  %v706 = vpop.f32.mrb[0].mxu0
  %707 = vmatprep.mubr.f32.mxu0 0.0
  %708 = vmatmul.mubr.f32.gmra.mrb[0].mxu0 %v603
  %v709 = vpop.f32.mrb[0].mxu0
  %v710 = vadd.f32 0.0, %v709
  %v711 = vpop.f32.mrb[0].mxu0
  %712 = vmatprep.mubr.f32.mxu0 0.0
  %713 = vmatmul.mubr.f32.gmra.mrb[0].mxu0 %v440
  %v714 = vpop.f32.mrb[0].mxu0
  %v715 = vadd.f32 0.0, %v714
  %v716 = vpop.f32.mrb[0].mxu0
  %717 = vmatprep.mubr.f32.mxu0 0.0
  %718 = vmatmul.mubr.f32.gmra.mrb[0].mxu0 %v442
  %v719 = vpop.f32.mrb[0].mxu0
  %v720 = vadd.f32 0.0, %v719
  %v721 = vpop.f32.mrb[0].mxu0
  %722 = vmatprep.mubr.f32.mxu0 0.0
  %723 = vmatmul.mubr.f32.gmra.mrb[0].mxu0 %v444
  %v724 = vpop.f32.mrb[0].mxu0
  %v725 = vadd.f32 0.0, %v724
  %v726 = vpop.f32.mrb[0].mxu0
  %727 = vmatprep.mubr.f32.mxu0 0.0
  %728 = vmatmul.mubr.f32.gmra.mrb[0].mxu0 %v446
  %v729 = vpop.f32.mrb[0].mxu0
  %v730 = vadd.f32 0.0, %v729
  %v731 = vpop.f32.mrb[0].mxu0
  %732 = vmatprep.mubr.f32.mxu0 0.0
  %733 = vmatmul.mubr.f32.gmra.mrb[0].mxu0 %v448
  %v734 = vpop.f32.mrb[0].mxu0
  %v735 = vadd.f32 0.0, %v734
  %v736 = vpop.f32.mrb[0].mxu0
  %737 = vmatprep.mubr.f32.mxu0 0.0
  %738 = vmatmul.mubr.f32.gmra.mrb[0].mxu0 %v450
  %v739 = vpop.f32.mrb[0].mxu0
  %v740 = vadd.f32 0.0, %v739
  %v741 = vpop.f32.mrb[0].mxu0
  %742 = vmatprep.mubr.f32.mxu0 0.0
  %743 = vmatmul.mubr.f32.gmra.mrb[0].mxu0 %v452
  %v744 = vpop.f32.mrb[0].mxu0
  %v745 = vadd.f32 0.0, %v744
  %v746 = vpop.f32.mrb[0].mxu0
  %747 = vmatprep.mubr.f32.mxu0 0.0
  %748 = vmatmul.mubr.f32.gmra.mrb[0].mxu0 %v606
  %v749 = vpop.f32.mrb[0].mxu0
  %v750 = vadd.f32 0.0, %v749
  %v751 = vpop.f32.mrb[0].mxu0
  %752 = vdwg.mxu0
  %v753 = vadd.f32 %v521, %v675
  %v754 = vadd.f32 %v526, %v680
  %v755 = vadd.f32 %v531, %v685
  %v756 = vadd.f32 %v536, %v690
  %v757 = vadd.f32 %v541, %v695
  %v758 = vadd.f32 %v546, %v700
  %v759 = vadd.f32 %v551, %v705
  %v760 = vadd.f32 %v556, %v710
  %v761 = vadd.f32 %v561, %v715
  %v762 = vadd.f32 %v566, %v720
  %v763 = vadd.f32 %v571, %v725
  %v764 = vadd.f32 %v576, %v730
  %v765 = vadd.f32 %v581, %v735
  %v766 = vadd.f32 %v586, %v740
  %v767 = vadd.f32 %v591, %v745
  %v768 = vadd.f32 %v596, %v750
  %v771 = vrot.slane %v138, 1
  %v772 = vrot.slane %v139, 1
  %v773 = vsel %vm192, %v771, %v772
  %v774 = vrot.slane %v156, 1
  %v775 = vrot.slane %v157, 1
  %v776 = vsel %vm192, %v774, %v775
  %s777 = scalar_lea.vmem %s1, 48
  %v778 = vld [vmem:[%s777] sm:$0xff]
  %v779 = vld [vmem:[%s777 + $0x8] sm:$0xff]
  %v780 = vsel %vm244, %v773, 0
  %v782 = vsel %vm244, %v776, 0
  %784 = vmatprep.subr.mxu0 0.0
  %785 = vmatpush1.msra.mxu0 %v778
  %786 = vmatprep.subr.mxu0 0.0
  %787 = vmatpush1.msra.mxu0 %v779
  %788 = vmatprep.subr.mxu0 0.0
  %789 = vmatpush1.msra.mxu0 0.0
  %790 = vmatprep.subr.mxu0 0.0
  %791 = vmatpush1.msra.mxu0 0.0
  %792 = vmatprep.subr.mxu0 0.0
  %793 = vmatpush1.msra.mxu0 0.0
  %794 = vmatprep.subr.mxu0 0.0
  %795 = vmatpush1.msra.mxu0 0.0
  %796 = vmatprep.subr.mxu0 0.0
  %797 = vmatpush1.msra.mxu0 0.0
  %798 = vmatprep.subr.mxu0 0.0
  %799 = vmatpush1.msra.mxu0 0.0
  %800 = vmatprep.subr.mxu0 0.0
  %801 = vmatpush1.msra.mxu0 0.0
  %802 = vmatprep.subr.mxu0 0.0
  %803 = vmatpush1.msra.mxu0 0.0
  %804 = vmatprep.subr.mxu0 0.0
  %805 = vmatpush1.msra.mxu0 0.0
  %806 = vmatprep.subr.mxu0 0.0
  %807 = vmatpush1.msra.mxu0 0.0
  %808 = vmatprep.subr.mxu0 0.0
  %809 = vmatpush1.msra.mxu0 0.0
  %810 = vmatprep.subr.mxu0 0.0
  %811 = vmatpush1.msra.mxu0 0.0
  %812 = vmatprep.subr.mxu0 0.0
  %813 = vmatpush1.msra.mxu0 0.0
  %814 = vmatprep.subr.mxu0 0.0
  %815 = vmatpush1.msra.mxu0 0.0
  %816 = vmatprep.subr.mxu0 0.0
  %817 = vmatpush1.msra.mxu0 0.0
  %818 = vmatprep.subr.mxu0 0.0
  %819 = vmatpush1.msra.mxu0 0.0
  %820 = vmatprep.subr.mxu0 0.0
  %821 = vmatpush1.msra.mxu0 0.0
  %822 = vmatprep.subr.mxu0 0.0
  %823 = vmatpush1.msra.mxu0 0.0
  %824 = vmatprep.subr.mxu0 0.0
  %825 = vmatpush1.msra.mxu0 0.0
  %826 = vmatprep.subr.mxu0 0.0
  %827 = vmatpush1.msra.mxu0 0.0
  %828 = vmatprep.subr.mxu0 0.0
  %829 = vmatpush1.msra.mxu0 0.0
  %830 = vmatprep.subr.mxu0 0.0
  %831 = vmatpush1.msra.mxu0 0.0
  %832 = vmatprep.subr.mxu0 0.0
  %833 = vmatpush1.msra.mxu0 0.0
  %834 = vmatprep.subr.mxu0 0.0
  %835 = vmatpush1.msra.mxu0 0.0
  %836 = vmatprep.subr.mxu0 0.0
  %837 = vmatpush1.msra.mxu0 0.0
  %838 = vmatprep.subr.mxu0 0.0
  %839 = vmatpush1.msra.mxu0 0.0
  %840 = vmatprep.subr.mxu0 0.0
  %841 = vmatpush1.msra.mxu0 0.0
  %842 = vmatprep.subr.mxu0 0.0
  %843 = vmatpush1.msra.mxu0 0.0
  %844 = vmatprep.subr.mxu0 0.0
  %845 = vmatpush1.msra.mxu0 0.0
  %846 = vmatprep.subr.mxu0 0.0
  %847 = vmatpush1.msra.mxu0 0.0
  %848 = vmatprep.mubr.f32.mxu0 0.0
  %849 = vmatmul.mubr.f32.gmra.mrb[0].mxu0 %v247
  %v850 = vpop.f32.mrb[0].mxu0
  %v851 = vadd.f32 0.0, %v850
  %v852 = vpop.f32.mrb[0].mxu0
  %853 = vmatprep.mubr.f32.mxu0 0.0
  %854 = vmatmul.mubr.f32.gmra.mrb[0].mxu0 %v249
  %v855 = vpop.f32.mrb[0].mxu0
  %v856 = vadd.f32 0.0, %v855
  %v857 = vpop.f32.mrb[0].mxu0
  %858 = vmatprep.mubr.f32.mxu0 0.0
  %859 = vmatmul.mubr.f32.gmra.mrb[0].mxu0 %v251
  %v860 = vpop.f32.mrb[0].mxu0
  %v861 = vadd.f32 0.0, %v860
  %v862 = vpop.f32.mrb[0].mxu0
  %863 = vmatprep.mubr.f32.mxu0 0.0
  %864 = vmatmul.mubr.f32.gmra.mrb[0].mxu0 %v253
  %v865 = vpop.f32.mrb[0].mxu0
  %v866 = vadd.f32 0.0, %v865
  %v867 = vpop.f32.mrb[0].mxu0
  %868 = vmatprep.mubr.f32.mxu0 0.0
  %869 = vmatmul.mubr.f32.gmra.mrb[0].mxu0 %v255
  %v870 = vpop.f32.mrb[0].mxu0
  %v871 = vadd.f32 0.0, %v870
  %v872 = vpop.f32.mrb[0].mxu0
  %873 = vmatprep.mubr.f32.mxu0 0.0
  %874 = vmatmul.mubr.f32.gmra.mrb[0].mxu0 %v257
  %v875 = vpop.f32.mrb[0].mxu0
  %v876 = vadd.f32 0.0, %v875
  %v877 = vpop.f32.mrb[0].mxu0
  %878 = vmatprep.mubr.f32.mxu0 0.0
  %879 = vmatmul.mubr.f32.gmra.mrb[0].mxu0 %v259
  %v880 = vpop.f32.mrb[0].mxu0
  %v881 = vadd.f32 0.0, %v880
  %v882 = vpop.f32.mrb[0].mxu0
  %883 = vmatprep.mubr.f32.mxu0 0.0
  %884 = vmatmul.mubr.f32.gmra.mrb[0].mxu0 %v780
  %v885 = vpop.f32.mrb[0].mxu0
  %v886 = vadd.f32 0.0, %v885
  %v887 = vpop.f32.mrb[0].mxu0
  %888 = vmatprep.mubr.f32.mxu0 0.0
  %889 = vmatmul.mubr.f32.gmra.mrb[0].mxu0 %v263
  %v890 = vpop.f32.mrb[0].mxu0
  %v891 = vadd.f32 0.0, %v890
  %v892 = vpop.f32.mrb[0].mxu0
  %893 = vmatprep.mubr.f32.mxu0 0.0
  %894 = vmatmul.mubr.f32.gmra.mrb[0].mxu0 %v265
  %v895 = vpop.f32.mrb[0].mxu0
  %v896 = vadd.f32 0.0, %v895
  %v897 = vpop.f32.mrb[0].mxu0
  %898 = vmatprep.mubr.f32.mxu0 0.0
  %899 = vmatmul.mubr.f32.gmra.mrb[0].mxu0 %v267
  %v900 = vpop.f32.mrb[0].mxu0
  %v901 = vadd.f32 0.0, %v900
  %v902 = vpop.f32.mrb[0].mxu0
  %903 = vmatprep.mubr.f32.mxu0 0.0
  %904 = vmatmul.mubr.f32.gmra.mrb[0].mxu0 %v269
  %v905 = vpop.f32.mrb[0].mxu0
  %v906 = vadd.f32 0.0, %v905
  %v907 = vpop.f32.mrb[0].mxu0
  %908 = vmatprep.mubr.f32.mxu0 0.0
  %909 = vmatmul.mubr.f32.gmra.mrb[0].mxu0 %v271
  %v910 = vpop.f32.mrb[0].mxu0
  %v911 = vadd.f32 0.0, %v910
  %v912 = vpop.f32.mrb[0].mxu0
  %913 = vmatprep.mubr.f32.mxu0 0.0
  %914 = vmatmul.mubr.f32.gmra.mrb[0].mxu0 %v273
  %v915 = vpop.f32.mrb[0].mxu0
  %v916 = vadd.f32 0.0, %v915
  %v917 = vpop.f32.mrb[0].mxu0
  %918 = vmatprep.mubr.f32.mxu0 0.0
  %919 = vmatmul.mubr.f32.gmra.mrb[0].mxu0 %v275
  %v920 = vpop.f32.mrb[0].mxu0
  %v921 = vadd.f32 0.0, %v920
  %v922 = vpop.f32.mrb[0].mxu0
  %923 = vmatprep.mubr.f32.mxu0 0.0
  %924 = vmatmul.mubr.f32.gmra.mrb[0].mxu0 %v782
  %v925 = vpop.f32.mrb[0].mxu0
  %v926 = vadd.f32 0.0, %v925
  %v927 = vpop.f32.mrb[0].mxu0
  %928 = vdwg.mxu0
  %v929 = vadd.f32 %v753, %v851
  %v930 = vadd.f32 %v754, %v856
  %v931 = vadd.f32 %v755, %v861
  %v932 = vadd.f32 %v756, %v866
  %v933 = vadd.f32 %v757, %v871
  %v934 = vadd.f32 %v758, %v876
  %v935 = vadd.f32 %v759, %v881
  %v936 = vadd.f32 %v760, %v886
  %v937 = vadd.f32 %v761, %v891
  %v938 = vadd.f32 %v762, %v896
  %v939 = vadd.f32 %v763, %v901
  %v940 = vadd.f32 %v764, %v906
  %v941 = vadd.f32 %v765, %v911
  %v942 = vadd.f32 %v766, %v916
  %v943 = vadd.f32 %v767, %v921
  %v944 = vadd.f32 %v768, %v926
  %vm945 = vcmask 64512
  %946 = vst.msk [vmem:[#allocation2] sm:$0xff] %vm945, 0.0
  %vm947 = vcmask 58368
  %948 = vst.msk [vmem:[#allocation2 + $0x8] sm:$0x3] %vm947, 0.0
  %949 = vst.msk [vmem:[#allocation2 + $0x10] sm:$0xff] %vm945, 0.0
  %950 = vst.msk [vmem:[#allocation2 + $0x18] sm:$0x3] %vm947, 0.0
  %951 = vst.msk [vmem:[#allocation2 + $0x20] sm:$0xff] %vm945, 0.0
  %952 = vst.msk [vmem:[#allocation2 + $0x28] sm:$0x3] %vm947, 0.0
  %953 = vst.msk [vmem:[#allocation2 + $0x30] sm:$0xff] %vm945, 0.0
  %954 = vst.msk [vmem:[#allocation2 + $0x38] sm:$0x3] %vm947, 0.0
  %955 = vst.msk [vmem:[#allocation2 + $0x40] sm:$0xff] %vm945, 0.0
  %956 = vst.msk [vmem:[#allocation2 + $0x48] sm:$0x3] %vm947, 0.0
  %957 = vst.msk [vmem:[#allocation2 + $0x50] sm:$0xff] %vm945, 0.0
  %958 = vst.msk [vmem:[#allocation2 + $0x58] sm:$0x3] %vm947, 0.0
  %959 = vst.msk [vmem:[#allocation2 + $0x60] sm:$0xff] %vm945, 0.0
  %960 = vst.msk [vmem:[#allocation2 + $0x68] sm:$0x3] %vm947, 0.0
  %961 = vst.msk [vmem:[#allocation2 + $0x70] sm:$0xff] %vm945, 0.0
  %962 = vst.msk [vmem:[#allocation2 + $0x78] sm:$0x3] %vm947, 0.0
  %963 = vst.msk [vmem:[#allocation2 + $0x80] sm:$0xff] %vm945, 0.0
  %964 = vst.msk [vmem:[#allocation2 + $0x88] sm:$0x3] %vm947, 0.0
  %965 = vst.msk [vmem:[#allocation2 + $0x90] sm:$0xff] %vm945, 0.0
  %966 = vst.msk [vmem:[#allocation2 + $0x98] sm:$0x3] %vm947, 0.0
  %967 = vst.msk [vmem:[#allocation2 + $0xa0] sm:$0xff] %vm945, 0.0
  %968 = vst.msk [vmem:[#allocation2 + $0xa8] sm:$0x3] %vm947, 0.0
  %969 = vst.msk [vmem:[#allocation2 + $0xb0] sm:$0xff] %vm945, 0.0
  %970 = vst.msk [vmem:[#allocation2 + $0xb8] sm:$0x3] %vm947, 0.0
  %971 = vst.msk [vmem:[#allocation2 + $0xc0] sm:$0xff] %vm945, 0.0
  %972 = vst.msk [vmem:[#allocation2 + $0xc8] sm:$0x3] %vm947, 0.0
  %973 = vst.msk [vmem:[#allocation2 + $0xd0] sm:$0xff] %vm945, 0.0
  %974 = vst.msk [vmem:[#allocation2 + $0xd8] sm:$0x3] %vm947, 0.0
  %975 = vst.msk [vmem:[#allocation2 + $0xe0] sm:$0xff] %vm945, 0.0
  %976 = vst.msk [vmem:[#allocation2 + $0xe8] sm:$0x3] %vm947, 0.0
  %977 = vst.msk [vmem:[#allocation2 + $0xf0] sm:$0xff] %vm945, 0.0
  %978 = vst.msk [vmem:[#allocation2 + $0xf8] sm:$0x3] %vm947, 0.0
  %979 = vst.msk [vmem:[#allocation2 + $0x100] sm:$0xff] %vm945, 0.0
  %980 = vst.msk [vmem:[#allocation2 + $0x108] sm:$0x3] %vm947, 0.0
  %981 = vst.msk [vmem:[#allocation2 + $0x110] sm:$0xff] %vm945, 0.0
  %982 = vst.msk [vmem:[#allocation2 + $0x118] sm:$0x3] %vm947, 0.0
  %983 = vst.msk [vmem:[#allocation2 + $0x120] sm:$0xff] %vm945, 0.0
  %984 = vst.msk [vmem:[#allocation2 + $0x128] sm:$0x3] %vm947, 0.0
  %985 = vst.msk [vmem:[#allocation2 + $0x130] sm:$0xff] %vm945, 0.0
  %986 = vst.msk [vmem:[#allocation2 + $0x138] sm:$0x3] %vm947, 0.0
  %v987 = vmax.f32 %v929, 0.0
  %v988 = vmax.f32 %v930, 0.0
  %v989 = vmax.f32 %v931, 0.0
  %v990 = vmax.f32 %v932, 0.0
  %v991 = vmax.f32 %v933, 0.0
  %v992 = vmax.f32 %v934, 0.0
  %v993 = vmax.f32 %v935, 0.0
  %v994 = vmax.f32 %v936, 0.0
  %v995 = vmax.f32 %v937, 0.0
  %v996 = vmax.f32 %v938, 0.0
  %v997 = vmax.f32 %v939, 0.0
  %v998 = vmax.f32 %v940, 0.0
  %v999 = vmax.f32 %v941, 0.0
  %v1000 = vmax.f32 %v942, 0.0
  %v1001 = vmax.f32 %v943, 0.0
  %v1002 = vmax.f32 %v944, 0.0
  %s1003 = scalar_lea.vmem [#allocation2], 16
  %1004 = vst.msk [vmem:[%s1003 + $0x1] sm:$0xff] %vm945, %v987
  %1005 = vst.msk [vmem:[%s1003 + $0x11] sm:$0xff] %vm945, %v988
  %1006 = vst.msk [vmem:[%s1003 + $0x21] sm:$0xff] %vm945, %v989
  %1007 = vst.msk [vmem:[%s1003 + $0x31] sm:$0xff] %vm945, %v990
  %1008 = vst.msk [vmem:[%s1003 + $0x41] sm:$0xff] %vm945, %v991
  %1009 = vst.msk [vmem:[%s1003 + $0x51] sm:$0xff] %vm945, %v992
  %1010 = vst.msk [vmem:[%s1003 + $0x61] sm:$0xff] %vm945, %v993
  %1011 = vst.msk [vmem:[%s1003 + $0x71] sm:$0xff] %vm945, %v994
  %1012 = vst.msk [vmem:[%s1003 + $0xa1] sm:$0xff] %vm945, %v995
  %1013 = vst.msk [vmem:[%s1003 + $0xb1] sm:$0xff] %vm945, %v996
  %1014 = vst.msk [vmem:[%s1003 + $0xc1] sm:$0xff] %vm945, %v997
  %1015 = vst.msk [vmem:[%s1003 + $0xd1] sm:$0xff] %vm945, %v998
  %1016 = vst.msk [vmem:[%s1003 + $0xe1] sm:$0xff] %vm945, %v999
  %1017 = vst.msk [vmem:[%s1003 + $0xf1] sm:$0xff] %vm945, %v1000
  %1018 = vst.msk [vmem:[%s1003 + $0x101] sm:$0xff] %vm945, %v1001
  %1019 = vst.msk [vmem:[%s1003 + $0x111] sm:$0xff] %vm945, %v1002
  %v1020 = vld [vmem:[#allocation2] sm:$0xff]
  %v1021 = vld [vmem:[#allocation2 + $0x10] sm:$0xff]
  %v1022 = vld [vmem:[#allocation2 + $0x20] sm:$0xff]
  %v1023 = vld [vmem:[#allocation2 + $0x30] sm:$0xff]
  %v1024 = vld [vmem:[#allocation2 + $0x40] sm:$0xff]
  %v1025 = vld [vmem:[#allocation2 + $0x50] sm:$0xff]
  %v1026 = vld [vmem:[#allocation2 + $0x60] sm:$0xff]
  %v1027 = vld [vmem:[#allocation2 + $0x70] sm:$0xff]
  %v1028 = vld [vmem:[#allocation2 + $0xa0] sm:$0xff]
  %v1029 = vld [vmem:[#allocation2 + $0xb0] sm:$0xff]
  %v1030 = vld [vmem:[#allocation2 + $0xc0] sm:$0xff]
  %v1031 = vld [vmem:[#allocation2 + $0xd0] sm:$0xff]
  %v1032 = vld [vmem:[#allocation2 + $0xe0] sm:$0xff]
  %v1033 = vld [vmem:[#allocation2 + $0xf0] sm:$0xff]
  %v1034 = vld [vmem:[#allocation2 + $0x100] sm:$0xff]
  %v1035 = vld [vmem:[#allocation2 + $0x110] sm:$0xff]
  %v1036 = vld [vmem:[#allocation2 + $0x1] sm:$0xff]
  %v1037 = vld [vmem:[#allocation2 + $0x11] sm:$0xff]
  %v1038 = vld [vmem:[#allocation2 + $0x21] sm:$0xff]
  %v1039 = vld [vmem:[#allocation2 + $0x31] sm:$0xff]
  %v1040 = vld [vmem:[#allocation2 + $0x41] sm:$0xff]
  %v1041 = vld [vmem:[#allocation2 + $0x51] sm:$0xff]
  %v1042 = vld [vmem:[#allocation2 + $0x61] sm:$0xff]
  %v1043 = vld [vmem:[#allocation2 + $0x71] sm:$0xff]
  %v1044 = vld [vmem:[#allocation2 + $0xa1] sm:$0xff]
  %v1045 = vld [vmem:[#allocation2 + $0xb1] sm:$0xff]
  %v1046 = vld [vmem:[#allocation2 + $0xc1] sm:$0xff]
  %v1047 = vld [vmem:[#allocation2 + $0xd1] sm:$0xff]
  %v1048 = vld [vmem:[#allocation2 + $0xe1] sm:$0xff]
  %v1049 = vld [vmem:[#allocation2 + $0xf1] sm:$0xff]
  %v1050 = vld [vmem:[#allocation2 + $0x101] sm:$0xff]
  %v1051 = vld [vmem:[#allocation2 + $0x111] sm:$0xff]
  %v1052 = vld [vmem:[#allocation2 + $0x2] sm:$0xff]
  %v1053 = vld [vmem:[#allocation2 + $0x12] sm:$0xff]
  %v1054 = vld [vmem:[#allocation2 + $0x22] sm:$0xff]
  %v1055 = vld [vmem:[#allocation2 + $0x32] sm:$0xff]
  %v1056 = vld [vmem:[#allocation2 + $0x42] sm:$0xff]
  %v1057 = vld [vmem:[#allocation2 + $0x52] sm:$0xff]
  %v1058 = vld [vmem:[#allocation2 + $0x62] sm:$0xff]
  %v1059 = vld [vmem:[#allocation2 + $0x72] sm:$0xff]
  %v1060 = vld [vmem:[#allocation2 + $0xa2] sm:$0xff]
  %v1061 = vld [vmem:[#allocation2 + $0xb2] sm:$0xff]
  %v1062 = vld [vmem:[#allocation2 + $0xc2] sm:$0xff]
  %v1063 = vld [vmem:[#allocation2 + $0xd2] sm:$0xff]
  %v1064 = vld [vmem:[#allocation2 + $0xe2] sm:$0xff]
  %v1065 = vld [vmem:[#allocation2 + $0xf2] sm:$0xff]
  %v1066 = vld [vmem:[#allocation2 + $0x102] sm:$0xff]
  %v1067 = vld [vmem:[#allocation2 + $0x112] sm:$0xff]
  %v1068 = vld [vmem:[%s1003] sm:$0xff]
  %v1069 = vld [vmem:[%s1003 + $0x10] sm:$0xff]
  %v1070 = vld [vmem:[%s1003 + $0x20] sm:$0xff]
  %v1071 = vld [vmem:[%s1003 + $0x30] sm:$0xff]
  %v1072 = vld [vmem:[%s1003 + $0x40] sm:$0xff]
  %v1073 = vld [vmem:[%s1003 + $0x50] sm:$0xff]
  %v1074 = vld [vmem:[%s1003 + $0x60] sm:$0xff]
  %v1075 = vld [vmem:[%s1003 + $0x70] sm:$0xff]
  %v1076 = vld [vmem:[%s1003 + $0xa0] sm:$0xff]
  %v1077 = vld [vmem:[%s1003 + $0xb0] sm:$0xff]
  %v1078 = vld [vmem:[%s1003 + $0xc0] sm:$0xff]
  %v1079 = vld [vmem:[%s1003 + $0xd0] sm:$0xff]
  %v1080 = vld [vmem:[%s1003 + $0xe0] sm:$0xff]
  %v1081 = vld [vmem:[%s1003 + $0xf0] sm:$0xff]
  %v1082 = vld [vmem:[%s1003 + $0x100] sm:$0xff]
  %v1083 = vld [vmem:[%s1003 + $0x110] sm:$0xff]
  %v1084 = vld [vmem:[%s1003 + $0x1] sm:$0xff]
  %v1085 = vld [vmem:[%s1003 + $0x11] sm:$0xff]
  %v1086 = vld [vmem:[%s1003 + $0x21] sm:$0xff]
  %v1087 = vld [vmem:[%s1003 + $0x31] sm:$0xff]
  %v1088 = vld [vmem:[%s1003 + $0x41] sm:$0xff]
  %v1089 = vld [vmem:[%s1003 + $0x51] sm:$0xff]
  %v1090 = vld [vmem:[%s1003 + $0x61] sm:$0xff]
  %v1091 = vld [vmem:[%s1003 + $0x71] sm:$0xff]
  %v1092 = vld [vmem:[%s1003 + $0xa1] sm:$0xff]
  %v1093 = vld [vmem:[%s1003 + $0xb1] sm:$0xff]
  %v1094 = vld [vmem:[%s1003 + $0xc1] sm:$0xff]
  %v1095 = vld [vmem:[%s1003 + $0xd1] sm:$0xff]
  %v1096 = vld [vmem:[%s1003 + $0xe1] sm:$0xff]
  %v1097 = vld [vmem:[%s1003 + $0xf1] sm:$0xff]
  %v1098 = vld [vmem:[%s1003 + $0x101] sm:$0xff]
  %v1099 = vld [vmem:[%s1003 + $0x111] sm:$0xff]
  %v1100 = vld [vmem:[%s1003 + $0x2] sm:$0xff]
  %v1101 = vld [vmem:[%s1003 + $0x12] sm:$0xff]
  %v1102 = vld [vmem:[%s1003 + $0x22] sm:$0xff]
  %v1103 = vld [vmem:[%s1003 + $0x32] sm:$0xff]
  %v1104 = vld [vmem:[%s1003 + $0x42] sm:$0xff]
  %v1105 = vld [vmem:[%s1003 + $0x52] sm:$0xff]
  %v1106 = vld [vmem:[%s1003 + $0x62] sm:$0xff]
  %v1107 = vld [vmem:[%s1003 + $0x72] sm:$0xff]
  %v1108 = vld [vmem:[%s1003 + $0xa2] sm:$0xff]
  %v1109 = vld [vmem:[%s1003 + $0xb2] sm:$0xff]
  %v1110 = vld [vmem:[%s1003 + $0xc2] sm:$0xff]
  %v1111 = vld [vmem:[%s1003 + $0xd2] sm:$0xff]
  %v1112 = vld [vmem:[%s1003 + $0xe2] sm:$0xff]
  %v1113 = vld [vmem:[%s1003 + $0xf2] sm:$0xff]
  %v1114 = vld [vmem:[%s1003 + $0x102] sm:$0xff]
  %v1115 = vld [vmem:[%s1003 + $0x112] sm:$0xff]
  %s1116 = scalar_lea.vmem [#allocation2], 32
  %v1117 = vld [vmem:[%s1116] sm:$0xff]
  %v1118 = vld [vmem:[%s1116 + $0x10] sm:$0xff]
  %v1119 = vld [vmem:[%s1116 + $0x20] sm:$0xff]
  %v1120 = vld [vmem:[%s1116 + $0x30] sm:$0xff]
  %v1121 = vld [vmem:[%s1116 + $0x40] sm:$0xff]
  %v1122 = vld [vmem:[%s1116 + $0x50] sm:$0xff]
  %v1123 = vld [vmem:[%s1116 + $0x60] sm:$0xff]
  %v1124 = vld [vmem:[%s1116 + $0x70] sm:$0xff]
  %v1125 = vld [vmem:[%s1116 + $0xa0] sm:$0xff]
  %v1126 = vld [vmem:[%s1116 + $0xb0] sm:$0xff]
  %v1127 = vld [vmem:[%s1116 + $0xc0] sm:$0xff]
  %v1128 = vld [vmem:[%s1116 + $0xd0] sm:$0xff]
  %v1129 = vld [vmem:[%s1116 + $0xe0] sm:$0xff]
  %v1130 = vld [vmem:[%s1116 + $0xf0] sm:$0xff]
  %v1131 = vld [vmem:[%s1116 + $0x100] sm:$0xff]
  %v1132 = vld [vmem:[%s1116 + $0x110] sm:$0xff]
  %v1133 = vld [vmem:[%s1116 + $0x1] sm:$0xff]
  %v1134 = vld [vmem:[%s1116 + $0x11] sm:$0xff]
  %v1135 = vld [vmem:[%s1116 + $0x21] sm:$0xff]
  %v1136 = vld [vmem:[%s1116 + $0x31] sm:$0xff]
  %v1137 = vld [vmem:[%s1116 + $0x41] sm:$0xff]
  %v1138 = vld [vmem:[%s1116 + $0x51] sm:$0xff]
  %v1139 = vld [vmem:[%s1116 + $0x61] sm:$0xff]
  %v1140 = vld [vmem:[%s1116 + $0x71] sm:$0xff]
  %v1141 = vld [vmem:[%s1116 + $0xa1] sm:$0xff]
  %v1142 = vld [vmem:[%s1116 + $0xb1] sm:$0xff]
  %v1143 = vld [vmem:[%s1116 + $0xc1] sm:$0xff]
  %v1144 = vld [vmem:[%s1116 + $0xd1] sm:$0xff]
  %v1145 = vld [vmem:[%s1116 + $0xe1] sm:$0xff]
  %v1146 = vld [vmem:[%s1116 + $0xf1] sm:$0xff]
  %v1147 = vld [vmem:[%s1116 + $0x101] sm:$0xff]
  %v1148 = vld [vmem:[%s1116 + $0x111] sm:$0xff]
  %v1149 = vld [vmem:[%s1116 + $0x2] sm:$0xff]
  %v1150 = vld [vmem:[%s1116 + $0x12] sm:$0xff]
  %v1151 = vld [vmem:[%s1116 + $0x22] sm:$0xff]
  %v1152 = vld [vmem:[%s1116 + $0x32] sm:$0xff]
  %v1153 = vld [vmem:[%s1116 + $0x42] sm:$0xff]
  %v1154 = vld [vmem:[%s1116 + $0x52] sm:$0xff]
  %v1155 = vld [vmem:[%s1116 + $0x62] sm:$0xff]
  %v1156 = vld [vmem:[%s1116 + $0x72] sm:$0xff]
  %v1157 = vld [vmem:[%s1116 + $0xa2] sm:$0xff]
  %v1158 = vld [vmem:[%s1116 + $0xb2] sm:$0xff]
  %v1159 = vld [vmem:[%s1116 + $0xc2] sm:$0xff]
  %v1160 = vld [vmem:[%s1116 + $0xd2] sm:$0xff]
  %v1161 = vld [vmem:[%s1116 + $0xe2] sm:$0xff]
  %v1162 = vld [vmem:[%s1116 + $0xf2] sm:$0xff]
  %v1163 = vld [vmem:[%s1116 + $0x102] sm:$0xff]
  %v1164 = vld [vmem:[%s1116 + $0x112] sm:$0xff]
  %v1165 = vld [vmem:[%s2] sm:$0xff]
  %s1166 = scalar_lea.vmem %s2, 8
  %v1167 = vld [vmem:[%s1166] sm:$0xff]
  %v1169 = vsel %vm945, %v1036, 0
  %v1172 = vsel %vm945, %v1037, 0
  %v1175 = vsel %vm945, %v1038, 0
  %v1178 = vsel %vm945, %v1039, 0
  %v1181 = vsel %vm945, %v1040, 0
  %v1184 = vsel %vm945, %v1041, 0
  %v1187 = vsel %vm945, %v1042, 0
  %v1190 = vsel %vm945, %v1043, 0
  %v1193 = vsel %vm945, %v1044, 0
  %v1196 = vsel %vm945, %v1045, 0
  %v1199 = vsel %vm945, %v1046, 0
  %v1202 = vsel %vm945, %v1047, 0
  %v1205 = vsel %vm945, %v1048, 0
  %v1208 = vsel %vm945, %v1049, 0
  %v1211 = vsel %vm945, %v1050, 0
  %v1214 = vsel %vm945, %v1051, 0
  %1216 = vmatprep.subr.mxu0 0.0
  %1217 = vmatpush1.msra.mxu0 %v1167
  %1218 = vmatprep.subr.mxu0 0.0
  %1219 = vmatpush1.msra.mxu0 0.0
  %1220 = vmatprep.subr.mxu0 0.0
  %1221 = vmatpush1.msra.mxu0 0.0
  %1222 = vmatprep.subr.mxu0 0.0
  %1223 = vmatpush1.msra.mxu0 0.0
  %1224 = vmatprep.subr.mxu0 0.0
  %1225 = vmatpush1.msra.mxu0 0.0
  %1226 = vmatprep.subr.mxu0 0.0
  %1227 = vmatpush1.msra.mxu0 0.0
  %1228 = vmatprep.subr.mxu0 0.0
  %1229 = vmatpush1.msra.mxu0 0.0
  %1230 = vmatprep.subr.mxu0 0.0
  %1231 = vmatpush1.msra.mxu0 0.0
  %1232 = vmatprep.subr.mxu0 0.0
  %1233 = vmatpush1.msra.mxu0 0.0
  %1234 = vmatprep.subr.mxu0 0.0
  %1235 = vmatpush1.msra.mxu0 0.0
  %1236 = vmatprep.subr.mxu0 0.0
  %1237 = vmatpush1.msra.mxu0 0.0
  %1238 = vmatprep.subr.mxu0 0.0
  %1239 = vmatpush1.msra.mxu0 0.0
  %1240 = vmatprep.subr.mxu0 0.0
  %1241 = vmatpush1.msra.mxu0 0.0
  %1242 = vmatprep.subr.mxu0 0.0
  %1243 = vmatpush1.msra.mxu0 0.0
  %1244 = vmatprep.subr.mxu0 0.0
  %1245 = vmatpush1.msra.mxu0 0.0
  %1246 = vmatprep.subr.mxu0 0.0
  %1247 = vmatpush1.msra.mxu0 0.0
  %1248 = vmatprep.subr.mxu0 0.0
  %1249 = vmatpush1.msra.mxu0 0.0
  %1250 = vmatprep.subr.mxu0 0.0
  %1251 = vmatpush1.msra.mxu0 0.0
  %1252 = vmatprep.subr.mxu0 0.0
  %1253 = vmatpush1.msra.mxu0 0.0
  %1254 = vmatprep.subr.mxu0 0.0
  %1255 = vmatpush1.msra.mxu0 0.0
  %1256 = vmatprep.subr.mxu0 0.0
  %1257 = vmatpush1.msra.mxu0 0.0
  %1258 = vmatprep.subr.mxu0 0.0
  %1259 = vmatpush1.msra.mxu0 0.0
  %1260 = vmatprep.subr.mxu0 0.0
  %1261 = vmatpush1.msra.mxu0 0.0
  %1262 = vmatprep.subr.mxu0 0.0
  %1263 = vmatpush1.msra.mxu0 0.0
  %1264 = vmatprep.subr.mxu0 0.0
  %1265 = vmatpush1.msra.mxu0 0.0
  %1266 = vmatprep.subr.mxu0 0.0
  %1267 = vmatpush1.msra.mxu0 0.0
  %1268 = vmatprep.subr.mxu0 0.0
  %1269 = vmatpush1.msra.mxu0 0.0
  %1270 = vmatprep.subr.mxu0 0.0
  %1271 = vmatpush1.msra.mxu0 0.0
  %1272 = vmatprep.subr.mxu0 0.0
  %1273 = vmatpush1.msra.mxu0 0.0
  %1274 = vmatprep.subr.mxu0 0.0
  %1275 = vmatpush1.msra.mxu0 0.0
  %1276 = vmatprep.subr.mxu0 0.0
  %1277 = vmatpush1.msra.mxu0 0.0
  %1278 = vmatprep.subr.mxu0 0.0
  %1279 = vmatpush1.msra.mxu0 0.0
  %1280 = vmatprep.mubr.f32.mxu0 0.0
  %1281 = vmatmul.mubr.f32.gmra.mrb[0].mxu0 %v1169
  %v1282 = vpop.f32.mrb[0].mxu0
  %v1283 = vadd.f32 0.0, %v1282
  %v1284 = vpop.f32.mrb[0].mxu0
  %1285 = vmatprep.mubr.f32.mxu0 0.0
  %1286 = vmatmul.mubr.f32.gmra.mrb[0].mxu0 %v1172
  %v1287 = vpop.f32.mrb[0].mxu0
  %v1288 = vadd.f32 0.0, %v1287
  %v1289 = vpop.f32.mrb[0].mxu0
  %1290 = vmatprep.mubr.f32.mxu0 0.0
  %1291 = vmatmul.mubr.f32.gmra.mrb[0].mxu0 %v1175
  %v1292 = vpop.f32.mrb[0].mxu0
  %v1293 = vadd.f32 0.0, %v1292
  %v1294 = vpop.f32.mrb[0].mxu0
  %1295 = vmatprep.mubr.f32.mxu0 0.0
  %1296 = vmatmul.mubr.f32.gmra.mrb[0].mxu0 %v1178
  %v1297 = vpop.f32.mrb[0].mxu0
  %v1298 = vadd.f32 0.0, %v1297
  %v1299 = vpop.f32.mrb[0].mxu0
  %1300 = vmatprep.mubr.f32.mxu0 0.0
  %1301 = vmatmul.mubr.f32.gmra.mrb[0].mxu0 %v1181
  %v1302 = vpop.f32.mrb[0].mxu0
  %v1303 = vadd.f32 0.0, %v1302
  %v1304 = vpop.f32.mrb[0].mxu0
  %1305 = vmatprep.mubr.f32.mxu0 0.0
  %1306 = vmatmul.mubr.f32.gmra.mrb[0].mxu0 %v1184
  %v1307 = vpop.f32.mrb[0].mxu0
  %v1308 = vadd.f32 0.0, %v1307
  %v1309 = vpop.f32.mrb[0].mxu0
  %1310 = vmatprep.mubr.f32.mxu0 0.0
  %1311 = vmatmul.mubr.f32.gmra.mrb[0].mxu0 %v1187
  %v1312 = vpop.f32.mrb[0].mxu0
  %v1313 = vadd.f32 0.0, %v1312
  %v1314 = vpop.f32.mrb[0].mxu0
  %1315 = vmatprep.mubr.f32.mxu0 0.0
  %1316 = vmatmul.mubr.f32.gmra.mrb[0].mxu0 %v1190
  %v1317 = vpop.f32.mrb[0].mxu0
  %v1318 = vadd.f32 0.0, %v1317
  %v1319 = vpop.f32.mrb[0].mxu0
  %1320 = vmatprep.mubr.f32.mxu0 0.0
  %1321 = vmatmul.mubr.f32.gmra.mrb[0].mxu0 %v1193
  %v1322 = vpop.f32.mrb[0].mxu0
  %v1323 = vadd.f32 0.0, %v1322
  %v1324 = vpop.f32.mrb[0].mxu0
  %1325 = vmatprep.mubr.f32.mxu0 0.0
  %1326 = vmatmul.mubr.f32.gmra.mrb[0].mxu0 %v1196
  %v1327 = vpop.f32.mrb[0].mxu0
  %v1328 = vadd.f32 0.0, %v1327
  %v1329 = vpop.f32.mrb[0].mxu0
  %1330 = vmatprep.mubr.f32.mxu0 0.0
  %1331 = vmatmul.mubr.f32.gmra.mrb[0].mxu0 %v1199
  %v1332 = vpop.f32.mrb[0].mxu0
  %v1333 = vadd.f32 0.0, %v1332
  %v1334 = vpop.f32.mrb[0].mxu0
  %1335 = vmatprep.mubr.f32.mxu0 0.0
  %1336 = vmatmul.mubr.f32.gmra.mrb[0].mxu0 %v1202
  %v1337 = vpop.f32.mrb[0].mxu0
  %v1338 = vadd.f32 0.0, %v1337
  %v1339 = vpop.f32.mrb[0].mxu0
  %1340 = vmatprep.mubr.f32.mxu0 0.0
  %1341 = vmatmul.mubr.f32.gmra.mrb[0].mxu0 %v1205
  %v1342 = vpop.f32.mrb[0].mxu0
  %v1343 = vadd.f32 0.0, %v1342
  %v1344 = vpop.f32.mrb[0].mxu0
  %1345 = vmatprep.mubr.f32.mxu0 0.0
  %1346 = vmatmul.mubr.f32.gmra.mrb[0].mxu0 %v1208
  %v1347 = vpop.f32.mrb[0].mxu0
  %v1348 = vadd.f32 0.0, %v1347
  %v1349 = vpop.f32.mrb[0].mxu0
  %1350 = vmatprep.mubr.f32.mxu0 0.0
  %1351 = vmatmul.mubr.f32.gmra.mrb[0].mxu0 %v1211
  %v1352 = vpop.f32.mrb[0].mxu0
  %v1353 = vadd.f32 0.0, %v1352
  %v1354 = vpop.f32.mrb[0].mxu0
  %1355 = vmatprep.mubr.f32.mxu0 0.0
  %1356 = vmatmul.mubr.f32.gmra.mrb[0].mxu0 %v1214
  %v1357 = vpop.f32.mrb[0].mxu0
  %v1358 = vadd.f32 0.0, %v1357
  %v1359 = vpop.f32.mrb[0].mxu0
  %1360 = vdwg.mxu0
  %v1362 = vsel %vm945, %v1020, 0
  %v1365 = vsel %vm945, %v1021, 0
  %v1368 = vsel %vm945, %v1022, 0
  %v1371 = vsel %vm945, %v1023, 0
  %v1374 = vsel %vm945, %v1024, 0
  %v1377 = vsel %vm945, %v1025, 0
  %v1380 = vsel %vm945, %v1026, 0
  %v1383 = vsel %vm945, %v1027, 0
  %v1386 = vsel %vm945, %v1028, 0
  %v1389 = vsel %vm945, %v1029, 0
  %v1392 = vsel %vm945, %v1030, 0
  %v1395 = vsel %vm945, %v1031, 0
  %v1398 = vsel %vm945, %v1032, 0
  %v1401 = vsel %vm945, %v1033, 0
  %v1404 = vsel %vm945, %v1034, 0
  %v1407 = vsel %vm945, %v1035, 0
  %1409 = vmatprep.subr.mxu0 0.0
  %1410 = vmatpush1.msra.mxu0 %v1165
  %1411 = vmatprep.subr.mxu0 0.0
  %1412 = vmatpush1.msra.mxu0 0.0
  %1413 = vmatprep.subr.mxu0 0.0
  %1414 = vmatpush1.msra.mxu0 0.0
  %1415 = vmatprep.subr.mxu0 0.0
  %1416 = vmatpush1.msra.mxu0 0.0
  %1417 = vmatprep.subr.mxu0 0.0
  %1418 = vmatpush1.msra.mxu0 0.0
  %1419 = vmatprep.subr.mxu0 0.0
  %1420 = vmatpush1.msra.mxu0 0.0
  %1421 = vmatprep.subr.mxu0 0.0
  %1422 = vmatpush1.msra.mxu0 0.0
  %1423 = vmatprep.subr.mxu0 0.0
  %1424 = vmatpush1.msra.mxu0 0.0
  %1425 = vmatprep.subr.mxu0 0.0
  %1426 = vmatpush1.msra.mxu0 0.0
  %1427 = vmatprep.subr.mxu0 0.0
  %1428 = vmatpush1.msra.mxu0 0.0
  %1429 = vmatprep.subr.mxu0 0.0
  %1430 = vmatpush1.msra.mxu0 0.0
  %1431 = vmatprep.subr.mxu0 0.0
  %1432 = vmatpush1.msra.mxu0 0.0
  %1433 = vmatprep.subr.mxu0 0.0
  %1434 = vmatpush1.msra.mxu0 0.0
  %1435 = vmatprep.subr.mxu0 0.0
  %1436 = vmatpush1.msra.mxu0 0.0
  %1437 = vmatprep.subr.mxu0 0.0
  %1438 = vmatpush1.msra.mxu0 0.0
  %1439 = vmatprep.subr.mxu0 0.0
  %1440 = vmatpush1.msra.mxu0 0.0
  %1441 = vmatprep.subr.mxu0 0.0
  %1442 = vmatpush1.msra.mxu0 0.0
  %1443 = vmatprep.subr.mxu0 0.0
  %1444 = vmatpush1.msra.mxu0 0.0
  %1445 = vmatprep.subr.mxu0 0.0
  %1446 = vmatpush1.msra.mxu0 0.0
  %1447 = vmatprep.subr.mxu0 0.0
  %1448 = vmatpush1.msra.mxu0 0.0
  %1449 = vmatprep.subr.mxu0 0.0
  %1450 = vmatpush1.msra.mxu0 0.0
  %1451 = vmatprep.subr.mxu0 0.0
  %1452 = vmatpush1.msra.mxu0 0.0
  %1453 = vmatprep.subr.mxu0 0.0
  %1454 = vmatpush1.msra.mxu0 0.0
  %1455 = vmatprep.subr.mxu0 0.0
  %1456 = vmatpush1.msra.mxu0 0.0
  %1457 = vmatprep.subr.mxu0 0.0
  %1458 = vmatpush1.msra.mxu0 0.0
  %1459 = vmatprep.subr.mxu0 0.0
  %1460 = vmatpush1.msra.mxu0 0.0
  %1461 = vmatprep.subr.mxu0 0.0
  %1462 = vmatpush1.msra.mxu0 0.0
  %1463 = vmatprep.subr.mxu0 0.0
  %1464 = vmatpush1.msra.mxu0 0.0
  %1465 = vmatprep.subr.mxu0 0.0
  %1466 = vmatpush1.msra.mxu0 0.0
  %1467 = vmatprep.subr.mxu0 0.0
  %1468 = vmatpush1.msra.mxu0 0.0
  %1469 = vmatprep.subr.mxu0 0.0
  %1470 = vmatpush1.msra.mxu0 0.0
  %1471 = vmatprep.subr.mxu0 0.0
  %1472 = vmatpush1.msra.mxu0 0.0
  %1473 = vmatprep.mubr.f32.mxu0 0.0
  %1474 = vmatmul.mubr.f32.gmra.mrb[0].mxu0 %v1362
  %v1475 = vpop.f32.mrb[0].mxu0
  %v1476 = vadd.f32 %v1283, %v1475
  %v1477 = vpop.f32.mrb[0].mxu0
  %1478 = vmatprep.mubr.f32.mxu0 0.0
  %1479 = vmatmul.mubr.f32.gmra.mrb[0].mxu0 %v1365
  %v1480 = vpop.f32.mrb[0].mxu0
  %v1481 = vadd.f32 %v1288, %v1480
  %v1482 = vpop.f32.mrb[0].mxu0
  %1483 = vmatprep.mubr.f32.mxu0 0.0
  %1484 = vmatmul.mubr.f32.gmra.mrb[0].mxu0 %v1368
  %v1485 = vpop.f32.mrb[0].mxu0
  %v1486 = vadd.f32 %v1293, %v1485
  %v1487 = vpop.f32.mrb[0].mxu0
  %1488 = vmatprep.mubr.f32.mxu0 0.0
  %1489 = vmatmul.mubr.f32.gmra.mrb[0].mxu0 %v1371
  %v1490 = vpop.f32.mrb[0].mxu0
  %v1491 = vadd.f32 %v1298, %v1490
  %v1492 = vpop.f32.mrb[0].mxu0
  %1493 = vmatprep.mubr.f32.mxu0 0.0
  %1494 = vmatmul.mubr.f32.gmra.mrb[0].mxu0 %v1374
  %v1495 = vpop.f32.mrb[0].mxu0
  %v1496 = vadd.f32 %v1303, %v1495
  %v1497 = vpop.f32.mrb[0].mxu0
  %1498 = vmatprep.mubr.f32.mxu0 0.0
  %1499 = vmatmul.mubr.f32.gmra.mrb[0].mxu0 %v1377
  %v1500 = vpop.f32.mrb[0].mxu0
  %v1501 = vadd.f32 %v1308, %v1500
  %v1502 = vpop.f32.mrb[0].mxu0
  %1503 = vmatprep.mubr.f32.mxu0 0.0
  %1504 = vmatmul.mubr.f32.gmra.mrb[0].mxu0 %v1380
  %v1505 = vpop.f32.mrb[0].mxu0
  %v1506 = vadd.f32 %v1313, %v1505
  %v1507 = vpop.f32.mrb[0].mxu0
  %1508 = vmatprep.mubr.f32.mxu0 0.0
  %1509 = vmatmul.mubr.f32.gmra.mrb[0].mxu0 %v1383
  %v1510 = vpop.f32.mrb[0].mxu0
  %v1511 = vadd.f32 %v1318, %v1510
  %v1512 = vpop.f32.mrb[0].mxu0
  %1513 = vmatprep.mubr.f32.mxu0 0.0
  %1514 = vmatmul.mubr.f32.gmra.mrb[0].mxu0 %v1386
  %v1515 = vpop.f32.mrb[0].mxu0
  %v1516 = vadd.f32 %v1323, %v1515
  %v1517 = vpop.f32.mrb[0].mxu0
  %1518 = vmatprep.mubr.f32.mxu0 0.0
  %1519 = vmatmul.mubr.f32.gmra.mrb[0].mxu0 %v1389
  %v1520 = vpop.f32.mrb[0].mxu0
  %v1521 = vadd.f32 %v1328, %v1520
  %v1522 = vpop.f32.mrb[0].mxu0
  %1523 = vmatprep.mubr.f32.mxu0 0.0
  %1524 = vmatmul.mubr.f32.gmra.mrb[0].mxu0 %v1392
  %v1525 = vpop.f32.mrb[0].mxu0
  %v1526 = vadd.f32 %v1333, %v1525
  %v1527 = vpop.f32.mrb[0].mxu0
  %1528 = vmatprep.mubr.f32.mxu0 0.0
  %1529 = vmatmul.mubr.f32.gmra.mrb[0].mxu0 %v1395
  %v1530 = vpop.f32.mrb[0].mxu0
  %v1531 = vadd.f32 %v1338, %v1530
  %v1532 = vpop.f32.mrb[0].mxu0
  %1533 = vmatprep.mubr.f32.mxu0 0.0
  %1534 = vmatmul.mubr.f32.gmra.mrb[0].mxu0 %v1398
  %v1535 = vpop.f32.mrb[0].mxu0
  %v1536 = vadd.f32 %v1343, %v1535
  %v1537 = vpop.f32.mrb[0].mxu0
  %1538 = vmatprep.mubr.f32.mxu0 0.0
  %1539 = vmatmul.mubr.f32.gmra.mrb[0].mxu0 %v1401
  %v1540 = vpop.f32.mrb[0].mxu0
  %v1541 = vadd.f32 %v1348, %v1540
  %v1542 = vpop.f32.mrb[0].mxu0
  %1543 = vmatprep.mubr.f32.mxu0 0.0
  %1544 = vmatmul.mubr.f32.gmra.mrb[0].mxu0 %v1404
  %v1545 = vpop.f32.mrb[0].mxu0
  %v1546 = vadd.f32 %v1353, %v1545
  %v1547 = vpop.f32.mrb[0].mxu0
  %1548 = vmatprep.mubr.f32.mxu0 0.0
  %1549 = vmatmul.mubr.f32.gmra.mrb[0].mxu0 %v1407
  %v1550 = vpop.f32.mrb[0].mxu0
  %v1551 = vadd.f32 %v1358, %v1550
  %v1552 = vpop.f32.mrb[0].mxu0
  %1553 = vdwg.mxu0
  %s1554 = scalar_lea.vmem %s2, 16
  %v1555 = vld [vmem:[%s1554] sm:$0xff]
  %v1557 = vsel %vm945, %v1068, 0
  %v1560 = vsel %vm945, %v1069, 0
  %v1563 = vsel %vm945, %v1070, 0
  %v1566 = vsel %vm945, %v1071, 0
  %v1569 = vsel %vm945, %v1072, 0
  %v1572 = vsel %vm945, %v1073, 0
  %v1575 = vsel %vm945, %v1074, 0
  %v1578 = vsel %vm945, %v1075, 0
  %v1581 = vsel %vm945, %v1076, 0
  %v1584 = vsel %vm945, %v1077, 0
  %v1587 = vsel %vm945, %v1078, 0
  %v1590 = vsel %vm945, %v1079, 0
  %v1593 = vsel %vm945, %v1080, 0
  %v1596 = vsel %vm945, %v1081, 0
  %v1599 = vsel %vm945, %v1082, 0
  %v1602 = vsel %vm945, %v1083, 0
  %1604 = vmatprep.subr.mxu0 0.0
  %1605 = vmatpush1.msra.mxu0 %v1555
  %1606 = vmatprep.subr.mxu0 0.0
  %1607 = vmatpush1.msra.mxu0 0.0
  %1608 = vmatprep.subr.mxu0 0.0
  %1609 = vmatpush1.msra.mxu0 0.0
  %1610 = vmatprep.subr.mxu0 0.0
  %1611 = vmatpush1.msra.mxu0 0.0
  %1612 = vmatprep.subr.mxu0 0.0
  %1613 = vmatpush1.msra.mxu0 0.0
  %1614 = vmatprep.subr.mxu0 0.0
  %1615 = vmatpush1.msra.mxu0 0.0
  %1616 = vmatprep.subr.mxu0 0.0
  %1617 = vmatpush1.msra.mxu0 0.0
  %1618 = vmatprep.subr.mxu0 0.0
  %1619 = vmatpush1.msra.mxu0 0.0
  %1620 = vmatprep.subr.mxu0 0.0
  %1621 = vmatpush1.msra.mxu0 0.0
  %1622 = vmatprep.subr.mxu0 0.0
  %1623 = vmatpush1.msra.mxu0 0.0
  %1624 = vmatprep.subr.mxu0 0.0
  %1625 = vmatpush1.msra.mxu0 0.0
  %1626 = vmatprep.subr.mxu0 0.0
  %1627 = vmatpush1.msra.mxu0 0.0
  %1628 = vmatprep.subr.mxu0 0.0
  %1629 = vmatpush1.msra.mxu0 0.0
  %1630 = vmatprep.subr.mxu0 0.0
  %1631 = vmatpush1.msra.mxu0 0.0
  %1632 = vmatprep.subr.mxu0 0.0
  %1633 = vmatpush1.msra.mxu0 0.0
  %1634 = vmatprep.subr.mxu0 0.0
  %1635 = vmatpush1.msra.mxu0 0.0
  %1636 = vmatprep.subr.mxu0 0.0
  %1637 = vmatpush1.msra.mxu0 0.0
  %1638 = vmatprep.subr.mxu0 0.0
  %1639 = vmatpush1.msra.mxu0 0.0
  %1640 = vmatprep.subr.mxu0 0.0
  %1641 = vmatpush1.msra.mxu0 0.0
  %1642 = vmatprep.subr.mxu0 0.0
  %1643 = vmatpush1.msra.mxu0 0.0
  %1644 = vmatprep.subr.mxu0 0.0
  %1645 = vmatpush1.msra.mxu0 0.0
  %1646 = vmatprep.subr.mxu0 0.0
  %1647 = vmatpush1.msra.mxu0 0.0
  %1648 = vmatprep.subr.mxu0 0.0
  %1649 = vmatpush1.msra.mxu0 0.0
  %1650 = vmatprep.subr.mxu0 0.0
  %1651 = vmatpush1.msra.mxu0 0.0
  %1652 = vmatprep.subr.mxu0 0.0
  %1653 = vmatpush1.msra.mxu0 0.0
  %1654 = vmatprep.subr.mxu0 0.0
  %1655 = vmatpush1.msra.mxu0 0.0
  %1656 = vmatprep.subr.mxu0 0.0
  %1657 = vmatpush1.msra.mxu0 0.0
  %1658 = vmatprep.subr.mxu0 0.0
  %1659 = vmatpush1.msra.mxu0 0.0
  %1660 = vmatprep.subr.mxu0 0.0
  %1661 = vmatpush1.msra.mxu0 0.0
  %1662 = vmatprep.subr.mxu0 0.0
  %1663 = vmatpush1.msra.mxu0 0.0
  %1664 = vmatprep.subr.mxu0 0.0
  %1665 = vmatpush1.msra.mxu0 0.0
  %1666 = vmatprep.subr.mxu0 0.0
  %1667 = vmatpush1.msra.mxu0 0.0
  %1668 = vmatprep.mubr.f32.mxu0 0.0
  %1669 = vmatmul.mubr.f32.gmra.mrb[0].mxu0 %v1557
  %v1670 = vpop.f32.mrb[0].mxu0
  %v1671 = vadd.f32 0.0, %v1670
  %v1672 = vpop.f32.mrb[0].mxu0
  %1673 = vmatprep.mubr.f32.mxu0 0.0
  %1674 = vmatmul.mubr.f32.gmra.mrb[0].mxu0 %v1560
  %v1675 = vpop.f32.mrb[0].mxu0
  %v1676 = vadd.f32 0.0, %v1675
  %v1677 = vpop.f32.mrb[0].mxu0
  %1678 = vmatprep.mubr.f32.mxu0 0.0
  %1679 = vmatmul.mubr.f32.gmra.mrb[0].mxu0 %v1563
  %v1680 = vpop.f32.mrb[0].mxu0
  %v1681 = vadd.f32 0.0, %v1680
  %v1682 = vpop.f32.mrb[0].mxu0
  %1683 = vmatprep.mubr.f32.mxu0 0.0
  %1684 = vmatmul.mubr.f32.gmra.mrb[0].mxu0 %v1566
  %v1685 = vpop.f32.mrb[0].mxu0
  %v1686 = vadd.f32 0.0, %v1685
  %v1687 = vpop.f32.mrb[0].mxu0
  %1688 = vmatprep.mubr.f32.mxu0 0.0
  %1689 = vmatmul.mubr.f32.gmra.mrb[0].mxu0 %v1569
  %v1690 = vpop.f32.mrb[0].mxu0
  %v1691 = vadd.f32 0.0, %v1690
  %v1692 = vpop.f32.mrb[0].mxu0
  %1693 = vmatprep.mubr.f32.mxu0 0.0
  %1694 = vmatmul.mubr.f32.gmra.mrb[0].mxu0 %v1572
  %v1695 = vpop.f32.mrb[0].mxu0
  %v1696 = vadd.f32 0.0, %v1695
  %v1697 = vpop.f32.mrb[0].mxu0
  %1698 = vmatprep.mubr.f32.mxu0 0.0
  %1699 = vmatmul.mubr.f32.gmra.mrb[0].mxu0 %v1575
  %v1700 = vpop.f32.mrb[0].mxu0
  %v1701 = vadd.f32 0.0, %v1700
  %v1702 = vpop.f32.mrb[0].mxu0
  %1703 = vmatprep.mubr.f32.mxu0 0.0
  %1704 = vmatmul.mubr.f32.gmra.mrb[0].mxu0 %v1578
  %v1705 = vpop.f32.mrb[0].mxu0
  %v1706 = vadd.f32 0.0, %v1705
  %v1707 = vpop.f32.mrb[0].mxu0
  %1708 = vmatprep.mubr.f32.mxu0 0.0
  %1709 = vmatmul.mubr.f32.gmra.mrb[0].mxu0 %v1581
  %v1710 = vpop.f32.mrb[0].mxu0
  %v1711 = vadd.f32 0.0, %v1710
  %v1712 = vpop.f32.mrb[0].mxu0
  %1713 = vmatprep.mubr.f32.mxu0 0.0
  %1714 = vmatmul.mubr.f32.gmra.mrb[0].mxu0 %v1584
  %v1715 = vpop.f32.mrb[0].mxu0
  %v1716 = vadd.f32 0.0, %v1715
  %v1717 = vpop.f32.mrb[0].mxu0
  %1718 = vmatprep.mubr.f32.mxu0 0.0
  %1719 = vmatmul.mubr.f32.gmra.mrb[0].mxu0 %v1587
  %v1720 = vpop.f32.mrb[0].mxu0
  %v1721 = vadd.f32 0.0, %v1720
  %v1722 = vpop.f32.mrb[0].mxu0
  %1723 = vmatprep.mubr.f32.mxu0 0.0
  %1724 = vmatmul.mubr.f32.gmra.mrb[0].mxu0 %v1590
  %v1725 = vpop.f32.mrb[0].mxu0
  %v1726 = vadd.f32 0.0, %v1725
  %v1727 = vpop.f32.mrb[0].mxu0
  %1728 = vmatprep.mubr.f32.mxu0 0.0
  %1729 = vmatmul.mubr.f32.gmra.mrb[0].mxu0 %v1593
  %v1730 = vpop.f32.mrb[0].mxu0
  %v1731 = vadd.f32 0.0, %v1730
  %v1732 = vpop.f32.mrb[0].mxu0
  %1733 = vmatprep.mubr.f32.mxu0 0.0
  %1734 = vmatmul.mubr.f32.gmra.mrb[0].mxu0 %v1596
  %v1735 = vpop.f32.mrb[0].mxu0
  %v1736 = vadd.f32 0.0, %v1735
  %v1737 = vpop.f32.mrb[0].mxu0
  %1738 = vmatprep.mubr.f32.mxu0 0.0
  %1739 = vmatmul.mubr.f32.gmra.mrb[0].mxu0 %v1599
  %v1740 = vpop.f32.mrb[0].mxu0
  %v1741 = vadd.f32 0.0, %v1740
  %v1742 = vpop.f32.mrb[0].mxu0
  %1743 = vmatprep.mubr.f32.mxu0 0.0
  %1744 = vmatmul.mubr.f32.gmra.mrb[0].mxu0 %v1602
  %v1745 = vpop.f32.mrb[0].mxu0
  %v1746 = vadd.f32 0.0, %v1745
  %v1747 = vpop.f32.mrb[0].mxu0
  %1748 = vdwg.mxu0
  %v1749 = vadd.f32 %v1476, %v1671
  %v1750 = vadd.f32 %v1481, %v1676
  %v1751 = vadd.f32 %v1486, %v1681
  %v1752 = vadd.f32 %v1491, %v1686
  %v1753 = vadd.f32 %v1496, %v1691
  %v1754 = vadd.f32 %v1501, %v1696
  %v1755 = vadd.f32 %v1506, %v1701
  %v1756 = vadd.f32 %v1511, %v1706
  %v1757 = vadd.f32 %v1516, %v1711
  %v1758 = vadd.f32 %v1521, %v1716
  %v1759 = vadd.f32 %v1526, %v1721
  %v1760 = vadd.f32 %v1531, %v1726
  %v1761 = vadd.f32 %v1536, %v1731
  %v1762 = vadd.f32 %v1541, %v1736
  %v1763 = vadd.f32 %v1546, %v1741
  %v1764 = vadd.f32 %v1551, %v1746
  %s1765 = scalar_lea.vmem %s2, 24
  %v1766 = vld [vmem:[%s1765] sm:$0xff]
  %v1768 = vsel %vm945, %v1084, 0
  %v1771 = vsel %vm945, %v1085, 0
  %v1774 = vsel %vm945, %v1086, 0
  %v1777 = vsel %vm945, %v1087, 0
  %v1780 = vsel %vm945, %v1088, 0
  %v1783 = vsel %vm945, %v1089, 0
  %v1786 = vsel %vm945, %v1090, 0
  %v1789 = vsel %vm945, %v1091, 0
  %v1792 = vsel %vm945, %v1092, 0
  %v1795 = vsel %vm945, %v1093, 0
  %v1798 = vsel %vm945, %v1094, 0
  %v1801 = vsel %vm945, %v1095, 0
  %v1804 = vsel %vm945, %v1096, 0
  %v1807 = vsel %vm945, %v1097, 0
  %v1810 = vsel %vm945, %v1098, 0
  %v1813 = vsel %vm945, %v1099, 0
  %1815 = vmatprep.subr.mxu0 0.0
  %1816 = vmatpush1.msra.mxu0 %v1766
  %1817 = vmatprep.subr.mxu0 0.0
  %1818 = vmatpush1.msra.mxu0 0.0
  %1819 = vmatprep.subr.mxu0 0.0
  %1820 = vmatpush1.msra.mxu0 0.0
  %1821 = vmatprep.subr.mxu0 0.0
  %1822 = vmatpush1.msra.mxu0 0.0
  %1823 = vmatprep.subr.mxu0 0.0
  %1824 = vmatpush1.msra.mxu0 0.0
  %1825 = vmatprep.subr.mxu0 0.0
  %1826 = vmatpush1.msra.mxu0 0.0
  %1827 = vmatprep.subr.mxu0 0.0
  %1828 = vmatpush1.msra.mxu0 0.0
  %1829 = vmatprep.subr.mxu0 0.0
  %1830 = vmatpush1.msra.mxu0 0.0
  %1831 = vmatprep.subr.mxu0 0.0
  %1832 = vmatpush1.msra.mxu0 0.0
  %1833 = vmatprep.subr.mxu0 0.0
  %1834 = vmatpush1.msra.mxu0 0.0
  %1835 = vmatprep.subr.mxu0 0.0
  %1836 = vmatpush1.msra.mxu0 0.0
  %1837 = vmatprep.subr.mxu0 0.0
  %1838 = vmatpush1.msra.mxu0 0.0
  %1839 = vmatprep.subr.mxu0 0.0
  %1840 = vmatpush1.msra.mxu0 0.0
  %1841 = vmatprep.subr.mxu0 0.0
  %1842 = vmatpush1.msra.mxu0 0.0
  %1843 = vmatprep.subr.mxu0 0.0
  %1844 = vmatpush1.msra.mxu0 0.0
  %1845 = vmatprep.subr.mxu0 0.0
  %1846 = vmatpush1.msra.mxu0 0.0
  %1847 = vmatprep.subr.mxu0 0.0
  %1848 = vmatpush1.msra.mxu0 0.0
  %1849 = vmatprep.subr.mxu0 0.0
  %1850 = vmatpush1.msra.mxu0 0.0
  %1851 = vmatprep.subr.mxu0 0.0
  %1852 = vmatpush1.msra.mxu0 0.0
  %1853 = vmatprep.subr.mxu0 0.0
  %1854 = vmatpush1.msra.mxu0 0.0
  %1855 = vmatprep.subr.mxu0 0.0
  %1856 = vmatpush1.msra.mxu0 0.0
  %1857 = vmatprep.subr.mxu0 0.0
  %1858 = vmatpush1.msra.mxu0 0.0
  %1859 = vmatprep.subr.mxu0 0.0
  %1860 = vmatpush1.msra.mxu0 0.0
  %1861 = vmatprep.subr.mxu0 0.0
  %1862 = vmatpush1.msra.mxu0 0.0
  %1863 = vmatprep.subr.mxu0 0.0
  %1864 = vmatpush1.msra.mxu0 0.0
  %1865 = vmatprep.subr.mxu0 0.0
  %1866 = vmatpush1.msra.mxu0 0.0
  %1867 = vmatprep.subr.mxu0 0.0
  %1868 = vmatpush1.msra.mxu0 0.0
  %1869 = vmatprep.subr.mxu0 0.0
  %1870 = vmatpush1.msra.mxu0 0.0
  %1871 = vmatprep.subr.mxu0 0.0
  %1872 = vmatpush1.msra.mxu0 0.0
  %1873 = vmatprep.subr.mxu0 0.0
  %1874 = vmatpush1.msra.mxu0 0.0
  %1875 = vmatprep.subr.mxu0 0.0
  %1876 = vmatpush1.msra.mxu0 0.0
  %1877 = vmatprep.subr.mxu0 0.0
  %1878 = vmatpush1.msra.mxu0 0.0
  %1879 = vmatprep.mubr.f32.mxu0 0.0
  %1880 = vmatmul.mubr.f32.gmra.mrb[0].mxu0 %v1768
  %v1881 = vpop.f32.mrb[0].mxu0
  %v1882 = vadd.f32 0.0, %v1881
  %v1883 = vpop.f32.mrb[0].mxu0
  %1884 = vmatprep.mubr.f32.mxu0 0.0
  %1885 = vmatmul.mubr.f32.gmra.mrb[0].mxu0 %v1771
  %v1886 = vpop.f32.mrb[0].mxu0
  %v1887 = vadd.f32 0.0, %v1886
  %v1888 = vpop.f32.mrb[0].mxu0
  %1889 = vmatprep.mubr.f32.mxu0 0.0
  %1890 = vmatmul.mubr.f32.gmra.mrb[0].mxu0 %v1774
  %v1891 = vpop.f32.mrb[0].mxu0
  %v1892 = vadd.f32 0.0, %v1891
  %v1893 = vpop.f32.mrb[0].mxu0
  %1894 = vmatprep.mubr.f32.mxu0 0.0
  %1895 = vmatmul.mubr.f32.gmra.mrb[0].mxu0 %v1777
  %v1896 = vpop.f32.mrb[0].mxu0
  %v1897 = vadd.f32 0.0, %v1896
  %v1898 = vpop.f32.mrb[0].mxu0
  %1899 = vmatprep.mubr.f32.mxu0 0.0
  %1900 = vmatmul.mubr.f32.gmra.mrb[0].mxu0 %v1780
  %v1901 = vpop.f32.mrb[0].mxu0
  %v1902 = vadd.f32 0.0, %v1901
  %v1903 = vpop.f32.mrb[0].mxu0
  %1904 = vmatprep.mubr.f32.mxu0 0.0
  %1905 = vmatmul.mubr.f32.gmra.mrb[0].mxu0 %v1783
  %v1906 = vpop.f32.mrb[0].mxu0
  %v1907 = vadd.f32 0.0, %v1906
  %v1908 = vpop.f32.mrb[0].mxu0
  %1909 = vmatprep.mubr.f32.mxu0 0.0
  %1910 = vmatmul.mubr.f32.gmra.mrb[0].mxu0 %v1786
  %v1911 = vpop.f32.mrb[0].mxu0
  %v1912 = vadd.f32 0.0, %v1911
  %v1913 = vpop.f32.mrb[0].mxu0
  %1914 = vmatprep.mubr.f32.mxu0 0.0
  %1915 = vmatmul.mubr.f32.gmra.mrb[0].mxu0 %v1789
  %v1916 = vpop.f32.mrb[0].mxu0
  %v1917 = vadd.f32 0.0, %v1916
  %v1918 = vpop.f32.mrb[0].mxu0
  %1919 = vmatprep.mubr.f32.mxu0 0.0
  %1920 = vmatmul.mubr.f32.gmra.mrb[0].mxu0 %v1792
  %v1921 = vpop.f32.mrb[0].mxu0
  %v1922 = vadd.f32 0.0, %v1921
  %v1923 = vpop.f32.mrb[0].mxu0
  %1924 = vmatprep.mubr.f32.mxu0 0.0
  %1925 = vmatmul.mubr.f32.gmra.mrb[0].mxu0 %v1795
  %v1926 = vpop.f32.mrb[0].mxu0
  %v1927 = vadd.f32 0.0, %v1926
  %v1928 = vpop.f32.mrb[0].mxu0
  %1929 = vmatprep.mubr.f32.mxu0 0.0
  %1930 = vmatmul.mubr.f32.gmra.mrb[0].mxu0 %v1798
  %v1931 = vpop.f32.mrb[0].mxu0
  %v1932 = vadd.f32 0.0, %v1931
  %v1933 = vpop.f32.mrb[0].mxu0
  %1934 = vmatprep.mubr.f32.mxu0 0.0
  %1935 = vmatmul.mubr.f32.gmra.mrb[0].mxu0 %v1801
  %v1936 = vpop.f32.mrb[0].mxu0
  %v1937 = vadd.f32 0.0, %v1936
  %v1938 = vpop.f32.mrb[0].mxu0
  %1939 = vmatprep.mubr.f32.mxu0 0.0
  %1940 = vmatmul.mubr.f32.gmra.mrb[0].mxu0 %v1804
  %v1941 = vpop.f32.mrb[0].mxu0
  %v1942 = vadd.f32 0.0, %v1941
  %v1943 = vpop.f32.mrb[0].mxu0
  %1944 = vmatprep.mubr.f32.mxu0 0.0
  %1945 = vmatmul.mubr.f32.gmra.mrb[0].mxu0 %v1807
  %v1946 = vpop.f32.mrb[0].mxu0
  %v1947 = vadd.f32 0.0, %v1946
  %v1948 = vpop.f32.mrb[0].mxu0
  %1949 = vmatprep.mubr.f32.mxu0 0.0
  %1950 = vmatmul.mubr.f32.gmra.mrb[0].mxu0 %v1810
  %v1951 = vpop.f32.mrb[0].mxu0
  %v1952 = vadd.f32 0.0, %v1951
  %v1953 = vpop.f32.mrb[0].mxu0
  %1954 = vmatprep.mubr.f32.mxu0 0.0
  %1955 = vmatmul.mubr.f32.gmra.mrb[0].mxu0 %v1813
  %v1956 = vpop.f32.mrb[0].mxu0
  %v1957 = vadd.f32 0.0, %v1956
  %v1958 = vpop.f32.mrb[0].mxu0
  %1959 = vdwg.mxu0
  %v1960 = vadd.f32 %v1749, %v1882
  %v1961 = vadd.f32 %v1750, %v1887
  %v1962 = vadd.f32 %v1751, %v1892
  %v1963 = vadd.f32 %v1752, %v1897
  %v1964 = vadd.f32 %v1753, %v1902
  %v1965 = vadd.f32 %v1754, %v1907
  %v1966 = vadd.f32 %v1755, %v1912
  %v1967 = vadd.f32 %v1756, %v1917
  %v1968 = vadd.f32 %v1757, %v1922
  %v1969 = vadd.f32 %v1758, %v1927
  %v1970 = vadd.f32 %v1759, %v1932
  %v1971 = vadd.f32 %v1760, %v1937
  %v1972 = vadd.f32 %v1761, %v1942
  %v1973 = vadd.f32 %v1762, %v1947
  %v1974 = vadd.f32 %v1763, %v1952
  %v1975 = vadd.f32 %v1764, %v1957
  %s1976 = scalar_lea.vmem %s2, 32
  %v1977 = vld [vmem:[%s1976] sm:$0xff]
  %s1978 = scalar_lea.vmem %s2, 40
  %v1979 = vld [vmem:[%s1978] sm:$0xff]
  %v1981 = vsel %vm945, %v1052, 0
  %v1984 = vsel %vm945, %v1053, 0
  %v1987 = vsel %vm945, %v1054, 0
  %v1990 = vsel %vm945, %v1055, 0
  %v1993 = vsel %vm945, %v1056, 0
  %v1996 = vsel %vm945, %v1057, 0
  %v1999 = vsel %vm945, %v1058, 0
  %v2002 = vsel %vm945, %v1059, 0
  %v2005 = vsel %vm945, %v1060, 0
  %v2008 = vsel %vm945, %v1061, 0
  %v2011 = vsel %vm945, %v1062, 0
  %v2014 = vsel %vm945, %v1063, 0
  %v2017 = vsel %vm945, %v1064, 0
  %v2020 = vsel %vm945, %v1065, 0
  %v2023 = vsel %vm945, %v1066, 0
  %v2026 = vsel %vm945, %v1067, 0
  %2028 = vmatprep.subr.mxu0 0.0
  %2029 = vmatpush1.msra.mxu0 %v1979
  %2030 = vmatprep.subr.mxu0 0.0
  %2031 = vmatpush1.msra.mxu0 0.0
  %2032 = vmatprep.subr.mxu0 0.0
  %2033 = vmatpush1.msra.mxu0 0.0
  %2034 = vmatprep.subr.mxu0 0.0
  %2035 = vmatpush1.msra.mxu0 0.0
  %2036 = vmatprep.subr.mxu0 0.0
  %2037 = vmatpush1.msra.mxu0 0.0
  %2038 = vmatprep.subr.mxu0 0.0
  %2039 = vmatpush1.msra.mxu0 0.0
  %2040 = vmatprep.subr.mxu0 0.0
  %2041 = vmatpush1.msra.mxu0 0.0
  %2042 = vmatprep.subr.mxu0 0.0
  %2043 = vmatpush1.msra.mxu0 0.0
  %2044 = vmatprep.subr.mxu0 0.0
  %2045 = vmatpush1.msra.mxu0 0.0
  %2046 = vmatprep.subr.mxu0 0.0
  %2047 = vmatpush1.msra.mxu0 0.0
  %2048 = vmatprep.subr.mxu0 0.0
  %2049 = vmatpush1.msra.mxu0 0.0
  %2050 = vmatprep.subr.mxu0 0.0
  %2051 = vmatpush1.msra.mxu0 0.0
  %2052 = vmatprep.subr.mxu0 0.0
  %2053 = vmatpush1.msra.mxu0 0.0
  %2054 = vmatprep.subr.mxu0 0.0
  %2055 = vmatpush1.msra.mxu0 0.0
  %2056 = vmatprep.subr.mxu0 0.0
  %2057 = vmatpush1.msra.mxu0 0.0
  %2058 = vmatprep.subr.mxu0 0.0
  %2059 = vmatpush1.msra.mxu0 0.0
  %2060 = vmatprep.subr.mxu0 0.0
  %2061 = vmatpush1.msra.mxu0 0.0
  %2062 = vmatprep.subr.mxu0 0.0
  %2063 = vmatpush1.msra.mxu0 0.0
  %2064 = vmatprep.subr.mxu0 0.0
  %2065 = vmatpush1.msra.mxu0 0.0
  %2066 = vmatprep.subr.mxu0 0.0
  %2067 = vmatpush1.msra.mxu0 0.0
  %2068 = vmatprep.subr.mxu0 0.0
  %2069 = vmatpush1.msra.mxu0 0.0
  %2070 = vmatprep.subr.mxu0 0.0
  %2071 = vmatpush1.msra.mxu0 0.0
  %2072 = vmatprep.subr.mxu0 0.0
  %2073 = vmatpush1.msra.mxu0 0.0
  %2074 = vmatprep.subr.mxu0 0.0
  %2075 = vmatpush1.msra.mxu0 0.0
  %2076 = vmatprep.subr.mxu0 0.0
  %2077 = vmatpush1.msra.mxu0 0.0
  %2078 = vmatprep.subr.mxu0 0.0
  %2079 = vmatpush1.msra.mxu0 0.0
  %2080 = vmatprep.subr.mxu0 0.0
  %2081 = vmatpush1.msra.mxu0 0.0
  %2082 = vmatprep.subr.mxu0 0.0
  %2083 = vmatpush1.msra.mxu0 0.0
  %2084 = vmatprep.subr.mxu0 0.0
  %2085 = vmatpush1.msra.mxu0 0.0
  %2086 = vmatprep.subr.mxu0 0.0
  %2087 = vmatpush1.msra.mxu0 0.0
  %2088 = vmatprep.subr.mxu0 0.0
  %2089 = vmatpush1.msra.mxu0 0.0
  %2090 = vmatprep.subr.mxu0 0.0
  %2091 = vmatpush1.msra.mxu0 0.0
  %2092 = vmatprep.mubr.f32.mxu0 0.0
  %2093 = vmatmul.mubr.f32.gmra.mrb[0].mxu0 %v1981
  %v2094 = vpop.f32.mrb[0].mxu0
  %v2095 = vadd.f32 0.0, %v2094
  %v2096 = vpop.f32.mrb[0].mxu0
  %2097 = vmatprep.mubr.f32.mxu0 0.0
  %2098 = vmatmul.mubr.f32.gmra.mrb[0].mxu0 %v1984
  %v2099 = vpop.f32.mrb[0].mxu0
  %v2100 = vadd.f32 0.0, %v2099
  %v2101 = vpop.f32.mrb[0].mxu0
  %2102 = vmatprep.mubr.f32.mxu0 0.0
  %2103 = vmatmul.mubr.f32.gmra.mrb[0].mxu0 %v1987
  %v2104 = vpop.f32.mrb[0].mxu0
  %v2105 = vadd.f32 0.0, %v2104
  %v2106 = vpop.f32.mrb[0].mxu0
  %2107 = vmatprep.mubr.f32.mxu0 0.0
  %2108 = vmatmul.mubr.f32.gmra.mrb[0].mxu0 %v1990
  %v2109 = vpop.f32.mrb[0].mxu0
  %v2110 = vadd.f32 0.0, %v2109
  %v2111 = vpop.f32.mrb[0].mxu0
  %2112 = vmatprep.mubr.f32.mxu0 0.0
  %2113 = vmatmul.mubr.f32.gmra.mrb[0].mxu0 %v1993
  %v2114 = vpop.f32.mrb[0].mxu0
  %v2115 = vadd.f32 0.0, %v2114
  %v2116 = vpop.f32.mrb[0].mxu0
  %2117 = vmatprep.mubr.f32.mxu0 0.0
  %2118 = vmatmul.mubr.f32.gmra.mrb[0].mxu0 %v1996
  %v2119 = vpop.f32.mrb[0].mxu0
  %v2120 = vadd.f32 0.0, %v2119
  %v2121 = vpop.f32.mrb[0].mxu0
  %2122 = vmatprep.mubr.f32.mxu0 0.0
  %2123 = vmatmul.mubr.f32.gmra.mrb[0].mxu0 %v1999
  %v2124 = vpop.f32.mrb[0].mxu0
  %v2125 = vadd.f32 0.0, %v2124
  %v2126 = vpop.f32.mrb[0].mxu0
  %2127 = vmatprep.mubr.f32.mxu0 0.0
  %2128 = vmatmul.mubr.f32.gmra.mrb[0].mxu0 %v2002
  %v2129 = vpop.f32.mrb[0].mxu0
  %v2130 = vadd.f32 0.0, %v2129
  %v2131 = vpop.f32.mrb[0].mxu0
  %2132 = vmatprep.mubr.f32.mxu0 0.0
  %2133 = vmatmul.mubr.f32.gmra.mrb[0].mxu0 %v2005
  %v2134 = vpop.f32.mrb[0].mxu0
  %v2135 = vadd.f32 0.0, %v2134
  %v2136 = vpop.f32.mrb[0].mxu0
  %2137 = vmatprep.mubr.f32.mxu0 0.0
  %2138 = vmatmul.mubr.f32.gmra.mrb[0].mxu0 %v2008
  %v2139 = vpop.f32.mrb[0].mxu0
  %v2140 = vadd.f32 0.0, %v2139
  %v2141 = vpop.f32.mrb[0].mxu0
  %2142 = vmatprep.mubr.f32.mxu0 0.0
  %2143 = vmatmul.mubr.f32.gmra.mrb[0].mxu0 %v2011
  %v2144 = vpop.f32.mrb[0].mxu0
  %v2145 = vadd.f32 0.0, %v2144
  %v2146 = vpop.f32.mrb[0].mxu0
  %2147 = vmatprep.mubr.f32.mxu0 0.0
  %2148 = vmatmul.mubr.f32.gmra.mrb[0].mxu0 %v2014
  %v2149 = vpop.f32.mrb[0].mxu0
  %v2150 = vadd.f32 0.0, %v2149
  %v2151 = vpop.f32.mrb[0].mxu0
  %2152 = vmatprep.mubr.f32.mxu0 0.0
  %2153 = vmatmul.mubr.f32.gmra.mrb[0].mxu0 %v2017
  %v2154 = vpop.f32.mrb[0].mxu0
  %v2155 = vadd.f32 0.0, %v2154
  %v2156 = vpop.f32.mrb[0].mxu0
  %2157 = vmatprep.mubr.f32.mxu0 0.0
  %2158 = vmatmul.mubr.f32.gmra.mrb[0].mxu0 %v2020
  %v2159 = vpop.f32.mrb[0].mxu0
  %v2160 = vadd.f32 0.0, %v2159
  %v2161 = vpop.f32.mrb[0].mxu0
  %2162 = vmatprep.mubr.f32.mxu0 0.0
  %2163 = vmatmul.mubr.f32.gmra.mrb[0].mxu0 %v2023
  %v2164 = vpop.f32.mrb[0].mxu0
  %v2165 = vadd.f32 0.0, %v2164
  %v2166 = vpop.f32.mrb[0].mxu0
  %2167 = vmatprep.mubr.f32.mxu0 0.0
  %2168 = vmatmul.mubr.f32.gmra.mrb[0].mxu0 %v2026
  %v2169 = vpop.f32.mrb[0].mxu0
  %v2170 = vadd.f32 0.0, %v2169
  %v2171 = vpop.f32.mrb[0].mxu0
  %2172 = vdwg.mxu0
  %2173 = vmatprep.subr.mxu0 0.0
  %2174 = vmatpush1.msra.mxu0 %v1977
  %2175 = vmatprep.subr.mxu0 0.0
  %2176 = vmatpush1.msra.mxu0 0.0
  %2177 = vmatprep.subr.mxu0 0.0
  %2178 = vmatpush1.msra.mxu0 0.0
  %2179 = vmatprep.subr.mxu0 0.0
  %2180 = vmatpush1.msra.mxu0 0.0
  %2181 = vmatprep.subr.mxu0 0.0
  %2182 = vmatpush1.msra.mxu0 0.0
  %2183 = vmatprep.subr.mxu0 0.0
  %2184 = vmatpush1.msra.mxu0 0.0
  %2185 = vmatprep.subr.mxu0 0.0
  %2186 = vmatpush1.msra.mxu0 0.0
  %2187 = vmatprep.subr.mxu0 0.0
  %2188 = vmatpush1.msra.mxu0 0.0
  %2189 = vmatprep.subr.mxu0 0.0
  %2190 = vmatpush1.msra.mxu0 0.0
  %2191 = vmatprep.subr.mxu0 0.0
  %2192 = vmatpush1.msra.mxu0 0.0
  %2193 = vmatprep.subr.mxu0 0.0
  %2194 = vmatpush1.msra.mxu0 0.0
  %2195 = vmatprep.subr.mxu0 0.0
  %2196 = vmatpush1.msra.mxu0 0.0
  %2197 = vmatprep.subr.mxu0 0.0
  %2198 = vmatpush1.msra.mxu0 0.0
  %2199 = vmatprep.subr.mxu0 0.0
  %2200 = vmatpush1.msra.mxu0 0.0
  %2201 = vmatprep.subr.mxu0 0.0
  %2202 = vmatpush1.msra.mxu0 0.0
  %2203 = vmatprep.subr.mxu0 0.0
  %2204 = vmatpush1.msra.mxu0 0.0
  %2205 = vmatprep.subr.mxu0 0.0
  %2206 = vmatpush1.msra.mxu0 0.0
  %2207 = vmatprep.subr.mxu0 0.0
  %2208 = vmatpush1.msra.mxu0 0.0
  %2209 = vmatprep.subr.mxu0 0.0
  %2210 = vmatpush1.msra.mxu0 0.0
  %2211 = vmatprep.subr.mxu0 0.0
  %2212 = vmatpush1.msra.mxu0 0.0
  %2213 = vmatprep.subr.mxu0 0.0
  %2214 = vmatpush1.msra.mxu0 0.0
  %2215 = vmatprep.subr.mxu0 0.0
  %2216 = vmatpush1.msra.mxu0 0.0
  %2217 = vmatprep.subr.mxu0 0.0
  %2218 = vmatpush1.msra.mxu0 0.0
  %2219 = vmatprep.subr.mxu0 0.0
  %2220 = vmatpush1.msra.mxu0 0.0
  %2221 = vmatprep.subr.mxu0 0.0
  %2222 = vmatpush1.msra.mxu0 0.0
  %2223 = vmatprep.subr.mxu0 0.0
  %2224 = vmatpush1.msra.mxu0 0.0
  %2225 = vmatprep.subr.mxu0 0.0
  %2226 = vmatpush1.msra.mxu0 0.0
  %2227 = vmatprep.subr.mxu0 0.0
  %2228 = vmatpush1.msra.mxu0 0.0
  %2229 = vmatprep.subr.mxu0 0.0
  %2230 = vmatpush1.msra.mxu0 0.0
  %2231 = vmatprep.subr.mxu0 0.0
  %2232 = vmatpush1.msra.mxu0 0.0
  %2233 = vmatprep.subr.mxu0 0.0
  %2234 = vmatpush1.msra.mxu0 0.0
  %2235 = vmatprep.subr.mxu0 0.0
  %2236 = vmatpush1.msra.mxu0 0.0
  %2237 = vmatprep.mubr.f32.mxu0 0.0
  %2238 = vmatmul.mubr.f32.gmra.mrb[0].mxu0 %v1169
  %v2239 = vpop.f32.mrb[0].mxu0
  %v2240 = vadd.f32 %v2095, %v2239
  %v2241 = vpop.f32.mrb[0].mxu0
  %2242 = vmatprep.mubr.f32.mxu0 0.0
  %2243 = vmatmul.mubr.f32.gmra.mrb[0].mxu0 %v1172
  %v2244 = vpop.f32.mrb[0].mxu0
  %v2245 = vadd.f32 %v2100, %v2244
  %v2246 = vpop.f32.mrb[0].mxu0
  %2247 = vmatprep.mubr.f32.mxu0 0.0
  %2248 = vmatmul.mubr.f32.gmra.mrb[0].mxu0 %v1175
  %v2249 = vpop.f32.mrb[0].mxu0
  %v2250 = vadd.f32 %v2105, %v2249
  %v2251 = vpop.f32.mrb[0].mxu0
  %2252 = vmatprep.mubr.f32.mxu0 0.0
  %2253 = vmatmul.mubr.f32.gmra.mrb[0].mxu0 %v1178
  %v2254 = vpop.f32.mrb[0].mxu0
  %v2255 = vadd.f32 %v2110, %v2254
  %v2256 = vpop.f32.mrb[0].mxu0
  %2257 = vmatprep.mubr.f32.mxu0 0.0
  %2258 = vmatmul.mubr.f32.gmra.mrb[0].mxu0 %v1181
  %v2259 = vpop.f32.mrb[0].mxu0
  %v2260 = vadd.f32 %v2115, %v2259
  %v2261 = vpop.f32.mrb[0].mxu0
  %2262 = vmatprep.mubr.f32.mxu0 0.0
  %2263 = vmatmul.mubr.f32.gmra.mrb[0].mxu0 %v1184
  %v2264 = vpop.f32.mrb[0].mxu0
  %v2265 = vadd.f32 %v2120, %v2264
  %v2266 = vpop.f32.mrb[0].mxu0
  %2267 = vmatprep.mubr.f32.mxu0 0.0
  %2268 = vmatmul.mubr.f32.gmra.mrb[0].mxu0 %v1187
  %v2269 = vpop.f32.mrb[0].mxu0
  %v2270 = vadd.f32 %v2125, %v2269
  %v2271 = vpop.f32.mrb[0].mxu0
  %2272 = vmatprep.mubr.f32.mxu0 0.0
  %2273 = vmatmul.mubr.f32.gmra.mrb[0].mxu0 %v1190
  %v2274 = vpop.f32.mrb[0].mxu0
  %v2275 = vadd.f32 %v2130, %v2274
  %v2276 = vpop.f32.mrb[0].mxu0
  %2277 = vmatprep.mubr.f32.mxu0 0.0
  %2278 = vmatmul.mubr.f32.gmra.mrb[0].mxu0 %v1193
  %v2279 = vpop.f32.mrb[0].mxu0
  %v2280 = vadd.f32 %v2135, %v2279
  %v2281 = vpop.f32.mrb[0].mxu0
  %2282 = vmatprep.mubr.f32.mxu0 0.0
  %2283 = vmatmul.mubr.f32.gmra.mrb[0].mxu0 %v1196
  %v2284 = vpop.f32.mrb[0].mxu0
  %v2285 = vadd.f32 %v2140, %v2284
  %v2286 = vpop.f32.mrb[0].mxu0
  %2287 = vmatprep.mubr.f32.mxu0 0.0
  %2288 = vmatmul.mubr.f32.gmra.mrb[0].mxu0 %v1199
  %v2289 = vpop.f32.mrb[0].mxu0
  %v2290 = vadd.f32 %v2145, %v2289
  %v2291 = vpop.f32.mrb[0].mxu0
  %2292 = vmatprep.mubr.f32.mxu0 0.0
  %2293 = vmatmul.mubr.f32.gmra.mrb[0].mxu0 %v1202
  %v2294 = vpop.f32.mrb[0].mxu0
  %v2295 = vadd.f32 %v2150, %v2294
  %v2296 = vpop.f32.mrb[0].mxu0
  %2297 = vmatprep.mubr.f32.mxu0 0.0
  %2298 = vmatmul.mubr.f32.gmra.mrb[0].mxu0 %v1205
  %v2299 = vpop.f32.mrb[0].mxu0
  %v2300 = vadd.f32 %v2155, %v2299
  %v2301 = vpop.f32.mrb[0].mxu0
  %2302 = vmatprep.mubr.f32.mxu0 0.0
  %2303 = vmatmul.mubr.f32.gmra.mrb[0].mxu0 %v1208
  %v2304 = vpop.f32.mrb[0].mxu0
  %v2305 = vadd.f32 %v2160, %v2304
  %v2306 = vpop.f32.mrb[0].mxu0
  %2307 = vmatprep.mubr.f32.mxu0 0.0
  %2308 = vmatmul.mubr.f32.gmra.mrb[0].mxu0 %v1211
  %v2309 = vpop.f32.mrb[0].mxu0
  %v2310 = vadd.f32 %v2165, %v2309
  %v2311 = vpop.f32.mrb[0].mxu0
  %2312 = vmatprep.mubr.f32.mxu0 0.0
  %2313 = vmatmul.mubr.f32.gmra.mrb[0].mxu0 %v1214
  %v2314 = vpop.f32.mrb[0].mxu0
  %v2315 = vadd.f32 %v2170, %v2314
  %v2316 = vpop.f32.mrb[0].mxu0
  %2317 = vdwg.mxu0
  %s2318 = scalar_lea.vmem %s2, 48
  %v2319 = vld [vmem:[%s2318] sm:$0xff]
  %2320 = vmatprep.subr.mxu0 0.0
  %2321 = vmatpush1.msra.mxu0 %v2319
  %2322 = vmatprep.subr.mxu0 0.0
  %2323 = vmatpush1.msra.mxu0 0.0
  %2324 = vmatprep.subr.mxu0 0.0
  %2325 = vmatpush1.msra.mxu0 0.0
  %2326 = vmatprep.subr.mxu0 0.0
  %2327 = vmatpush1.msra.mxu0 0.0
  %2328 = vmatprep.subr.mxu0 0.0
  %2329 = vmatpush1.msra.mxu0 0.0
  %2330 = vmatprep.subr.mxu0 0.0
  %2331 = vmatpush1.msra.mxu0 0.0
  %2332 = vmatprep.subr.mxu0 0.0
  %2333 = vmatpush1.msra.mxu0 0.0
  %2334 = vmatprep.subr.mxu0 0.0
  %2335 = vmatpush1.msra.mxu0 0.0
  %2336 = vmatprep.subr.mxu0 0.0
  %2337 = vmatpush1.msra.mxu0 0.0
  %2338 = vmatprep.subr.mxu0 0.0
  %2339 = vmatpush1.msra.mxu0 0.0
  %2340 = vmatprep.subr.mxu0 0.0
  %2341 = vmatpush1.msra.mxu0 0.0
  %2342 = vmatprep.subr.mxu0 0.0
  %2343 = vmatpush1.msra.mxu0 0.0
  %2344 = vmatprep.subr.mxu0 0.0
  %2345 = vmatpush1.msra.mxu0 0.0
  %2346 = vmatprep.subr.mxu0 0.0
  %2347 = vmatpush1.msra.mxu0 0.0
  %2348 = vmatprep.subr.mxu0 0.0
  %2349 = vmatpush1.msra.mxu0 0.0
  %2350 = vmatprep.subr.mxu0 0.0
  %2351 = vmatpush1.msra.mxu0 0.0
  %2352 = vmatprep.subr.mxu0 0.0
  %2353 = vmatpush1.msra.mxu0 0.0
  %2354 = vmatprep.subr.mxu0 0.0
  %2355 = vmatpush1.msra.mxu0 0.0
  %2356 = vmatprep.subr.mxu0 0.0
  %2357 = vmatpush1.msra.mxu0 0.0
  %2358 = vmatprep.subr.mxu0 0.0
  %2359 = vmatpush1.msra.mxu0 0.0
  %2360 = vmatprep.subr.mxu0 0.0
  %2361 = vmatpush1.msra.mxu0 0.0
  %2362 = vmatprep.subr.mxu0 0.0
  %2363 = vmatpush1.msra.mxu0 0.0
  %2364 = vmatprep.subr.mxu0 0.0
  %2365 = vmatpush1.msra.mxu0 0.0
  %2366 = vmatprep.subr.mxu0 0.0
  %2367 = vmatpush1.msra.mxu0 0.0
  %2368 = vmatprep.subr.mxu0 0.0
  %2369 = vmatpush1.msra.mxu0 0.0
  %2370 = vmatprep.subr.mxu0 0.0
  %2371 = vmatpush1.msra.mxu0 0.0
  %2372 = vmatprep.subr.mxu0 0.0
  %2373 = vmatpush1.msra.mxu0 0.0
  %2374 = vmatprep.subr.mxu0 0.0
  %2375 = vmatpush1.msra.mxu0 0.0
  %2376 = vmatprep.subr.mxu0 0.0
  %2377 = vmatpush1.msra.mxu0 0.0
  %2378 = vmatprep.subr.mxu0 0.0
  %2379 = vmatpush1.msra.mxu0 0.0
  %2380 = vmatprep.subr.mxu0 0.0
  %2381 = vmatpush1.msra.mxu0 0.0
  %2382 = vmatprep.subr.mxu0 0.0
  %2383 = vmatpush1.msra.mxu0 0.0
  %2384 = vmatprep.mubr.f32.mxu0 0.0
  %2385 = vmatmul.mubr.f32.gmra.mrb[0].mxu0 %v1768
  %v2386 = vpop.f32.mrb[0].mxu0
  %v2387 = vadd.f32 0.0, %v2386
  %v2388 = vpop.f32.mrb[0].mxu0
  %2389 = vmatprep.mubr.f32.mxu0 0.0
  %2390 = vmatmul.mubr.f32.gmra.mrb[0].mxu0 %v1771
  %v2391 = vpop.f32.mrb[0].mxu0
  %v2392 = vadd.f32 0.0, %v2391
  %v2393 = vpop.f32.mrb[0].mxu0
  %2394 = vmatprep.mubr.f32.mxu0 0.0
  %2395 = vmatmul.mubr.f32.gmra.mrb[0].mxu0 %v1774
  %v2396 = vpop.f32.mrb[0].mxu0
  %v2397 = vadd.f32 0.0, %v2396
  %v2398 = vpop.f32.mrb[0].mxu0
  %2399 = vmatprep.mubr.f32.mxu0 0.0
  %2400 = vmatmul.mubr.f32.gmra.mrb[0].mxu0 %v1777
  %v2401 = vpop.f32.mrb[0].mxu0
  %v2402 = vadd.f32 0.0, %v2401
  %v2403 = vpop.f32.mrb[0].mxu0
  %2404 = vmatprep.mubr.f32.mxu0 0.0
  %2405 = vmatmul.mubr.f32.gmra.mrb[0].mxu0 %v1780
  %v2406 = vpop.f32.mrb[0].mxu0
  %v2407 = vadd.f32 0.0, %v2406
  %v2408 = vpop.f32.mrb[0].mxu0
  %2409 = vmatprep.mubr.f32.mxu0 0.0
  %2410 = vmatmul.mubr.f32.gmra.mrb[0].mxu0 %v1783
  %v2411 = vpop.f32.mrb[0].mxu0
  %v2412 = vadd.f32 0.0, %v2411
  %v2413 = vpop.f32.mrb[0].mxu0
  %2414 = vmatprep.mubr.f32.mxu0 0.0
  %2415 = vmatmul.mubr.f32.gmra.mrb[0].mxu0 %v1786
  %v2416 = vpop.f32.mrb[0].mxu0
  %v2417 = vadd.f32 0.0, %v2416
  %v2418 = vpop.f32.mrb[0].mxu0
  %2419 = vmatprep.mubr.f32.mxu0 0.0
  %2420 = vmatmul.mubr.f32.gmra.mrb[0].mxu0 %v1789
  %v2421 = vpop.f32.mrb[0].mxu0
  %v2422 = vadd.f32 0.0, %v2421
  %v2423 = vpop.f32.mrb[0].mxu0
  %2424 = vmatprep.mubr.f32.mxu0 0.0
  %2425 = vmatmul.mubr.f32.gmra.mrb[0].mxu0 %v1792
  %v2426 = vpop.f32.mrb[0].mxu0
  %v2427 = vadd.f32 0.0, %v2426
  %v2428 = vpop.f32.mrb[0].mxu0
  %2429 = vmatprep.mubr.f32.mxu0 0.0
  %2430 = vmatmul.mubr.f32.gmra.mrb[0].mxu0 %v1795
  %v2431 = vpop.f32.mrb[0].mxu0
  %v2432 = vadd.f32 0.0, %v2431
  %v2433 = vpop.f32.mrb[0].mxu0
  %2434 = vmatprep.mubr.f32.mxu0 0.0
  %2435 = vmatmul.mubr.f32.gmra.mrb[0].mxu0 %v1798
  %v2436 = vpop.f32.mrb[0].mxu0
  %v2437 = vadd.f32 0.0, %v2436
  %v2438 = vpop.f32.mrb[0].mxu0
  %2439 = vmatprep.mubr.f32.mxu0 0.0
  %2440 = vmatmul.mubr.f32.gmra.mrb[0].mxu0 %v1801
  %v2441 = vpop.f32.mrb[0].mxu0
  %v2442 = vadd.f32 0.0, %v2441
  %v2443 = vpop.f32.mrb[0].mxu0
  %2444 = vmatprep.mubr.f32.mxu0 0.0
  %2445 = vmatmul.mubr.f32.gmra.mrb[0].mxu0 %v1804
  %v2446 = vpop.f32.mrb[0].mxu0
  %v2447 = vadd.f32 0.0, %v2446
  %v2448 = vpop.f32.mrb[0].mxu0
  %2449 = vmatprep.mubr.f32.mxu0 0.0
  %2450 = vmatmul.mubr.f32.gmra.mrb[0].mxu0 %v1807
  %v2451 = vpop.f32.mrb[0].mxu0
  %v2452 = vadd.f32 0.0, %v2451
  %v2453 = vpop.f32.mrb[0].mxu0
  %2454 = vmatprep.mubr.f32.mxu0 0.0
  %2455 = vmatmul.mubr.f32.gmra.mrb[0].mxu0 %v1810
  %v2456 = vpop.f32.mrb[0].mxu0
  %v2457 = vadd.f32 0.0, %v2456
  %v2458 = vpop.f32.mrb[0].mxu0
  %2459 = vmatprep.mubr.f32.mxu0 0.0
  %2460 = vmatmul.mubr.f32.gmra.mrb[0].mxu0 %v1813
  %v2461 = vpop.f32.mrb[0].mxu0
  %v2462 = vadd.f32 0.0, %v2461
  %v2463 = vpop.f32.mrb[0].mxu0
  %2464 = vdwg.mxu0
  %v2465 = vadd.f32 %v2240, %v2387
  %v2466 = vadd.f32 %v2245, %v2392
  %v2467 = vadd.f32 %v2250, %v2397
  %v2468 = vadd.f32 %v2255, %v2402
  %v2469 = vadd.f32 %v2260, %v2407
  %v2470 = vadd.f32 %v2265, %v2412
  %v2471 = vadd.f32 %v2270, %v2417
  %v2472 = vadd.f32 %v2275, %v2422
  %v2473 = vadd.f32 %v2280, %v2427
  %v2474 = vadd.f32 %v2285, %v2432
  %v2475 = vadd.f32 %v2290, %v2437
  %v2476 = vadd.f32 %v2295, %v2442
  %v2477 = vadd.f32 %v2300, %v2447
  %v2478 = vadd.f32 %v2305, %v2452
  %v2479 = vadd.f32 %v2310, %v2457
  %v2480 = vadd.f32 %v2315, %v2462
  %s2481 = scalar_lea.vmem %s2, 56
  %v2482 = vld [vmem:[%s2481] sm:$0xff]
  %v2484 = vsel %vm945, %v1100, 0
  %v2487 = vsel %vm945, %v1101, 0
  %v2490 = vsel %vm945, %v1102, 0
  %v2493 = vsel %vm945, %v1103, 0
  %v2496 = vsel %vm945, %v1104, 0
  %v2499 = vsel %vm945, %v1105, 0
  %v2502 = vsel %vm945, %v1106, 0
  %v2505 = vsel %vm945, %v1107, 0
  %v2508 = vsel %vm945, %v1108, 0
  %v2511 = vsel %vm945, %v1109, 0
  %v2514 = vsel %vm945, %v1110, 0
  %v2517 = vsel %vm945, %v1111, 0
  %v2520 = vsel %vm945, %v1112, 0
  %v2523 = vsel %vm945, %v1113, 0
  %v2526 = vsel %vm945, %v1114, 0
  %v2529 = vsel %vm945, %v1115, 0
  %2531 = vmatprep.subr.mxu0 0.0
  %2532 = vmatpush1.msra.mxu0 %v2482
  %2533 = vmatprep.subr.mxu0 0.0
  %2534 = vmatpush1.msra.mxu0 0.0
  %2535 = vmatprep.subr.mxu0 0.0
  %2536 = vmatpush1.msra.mxu0 0.0
  %2537 = vmatprep.subr.mxu0 0.0
  %2538 = vmatpush1.msra.mxu0 0.0
  %2539 = vmatprep.subr.mxu0 0.0
  %2540 = vmatpush1.msra.mxu0 0.0
  %2541 = vmatprep.subr.mxu0 0.0
  %2542 = vmatpush1.msra.mxu0 0.0
  %2543 = vmatprep.subr.mxu0 0.0
  %2544 = vmatpush1.msra.mxu0 0.0
  %2545 = vmatprep.subr.mxu0 0.0
  %2546 = vmatpush1.msra.mxu0 0.0
  %2547 = vmatprep.subr.mxu0 0.0
  %2548 = vmatpush1.msra.mxu0 0.0
  %2549 = vmatprep.subr.mxu0 0.0
  %2550 = vmatpush1.msra.mxu0 0.0
  %2551 = vmatprep.subr.mxu0 0.0
  %2552 = vmatpush1.msra.mxu0 0.0
  %2553 = vmatprep.subr.mxu0 0.0
  %2554 = vmatpush1.msra.mxu0 0.0
  %2555 = vmatprep.subr.mxu0 0.0
  %2556 = vmatpush1.msra.mxu0 0.0
  %2557 = vmatprep.subr.mxu0 0.0
  %2558 = vmatpush1.msra.mxu0 0.0
  %2559 = vmatprep.subr.mxu0 0.0
  %2560 = vmatpush1.msra.mxu0 0.0
  %2561 = vmatprep.subr.mxu0 0.0
  %2562 = vmatpush1.msra.mxu0 0.0
  %2563 = vmatprep.subr.mxu0 0.0
  %2564 = vmatpush1.msra.mxu0 0.0
  %2565 = vmatprep.subr.mxu0 0.0
  %2566 = vmatpush1.msra.mxu0 0.0
  %2567 = vmatprep.subr.mxu0 0.0
  %2568 = vmatpush1.msra.mxu0 0.0
  %2569 = vmatprep.subr.mxu0 0.0
  %2570 = vmatpush1.msra.mxu0 0.0
  %2571 = vmatprep.subr.mxu0 0.0
  %2572 = vmatpush1.msra.mxu0 0.0
  %2573 = vmatprep.subr.mxu0 0.0
  %2574 = vmatpush1.msra.mxu0 0.0
  %2575 = vmatprep.subr.mxu0 0.0
  %2576 = vmatpush1.msra.mxu0 0.0
  %2577 = vmatprep.subr.mxu0 0.0
  %2578 = vmatpush1.msra.mxu0 0.0
  %2579 = vmatprep.subr.mxu0 0.0
  %2580 = vmatpush1.msra.mxu0 0.0
  %2581 = vmatprep.subr.mxu0 0.0
  %2582 = vmatpush1.msra.mxu0 0.0
  %2583 = vmatprep.subr.mxu0 0.0
  %2584 = vmatpush1.msra.mxu0 0.0
  %2585 = vmatprep.subr.mxu0 0.0
  %2586 = vmatpush1.msra.mxu0 0.0
  %2587 = vmatprep.subr.mxu0 0.0
  %2588 = vmatpush1.msra.mxu0 0.0
  %2589 = vmatprep.subr.mxu0 0.0
  %2590 = vmatpush1.msra.mxu0 0.0
  %2591 = vmatprep.subr.mxu0 0.0
  %2592 = vmatpush1.msra.mxu0 0.0
  %2593 = vmatprep.subr.mxu0 0.0
  %2594 = vmatpush1.msra.mxu0 0.0
  %2595 = vmatprep.mubr.f32.mxu0 0.0
  %2596 = vmatmul.mubr.f32.gmra.mrb[0].mxu0 %v2484
  %v2597 = vpop.f32.mrb[0].mxu0
  %v2598 = vadd.f32 0.0, %v2597
  %v2599 = vpop.f32.mrb[0].mxu0
  %2600 = vmatprep.mubr.f32.mxu0 0.0
  %2601 = vmatmul.mubr.f32.gmra.mrb[0].mxu0 %v2487
  %v2602 = vpop.f32.mrb[0].mxu0
  %v2603 = vadd.f32 0.0, %v2602
  %v2604 = vpop.f32.mrb[0].mxu0
  %2605 = vmatprep.mubr.f32.mxu0 0.0
  %2606 = vmatmul.mubr.f32.gmra.mrb[0].mxu0 %v2490
  %v2607 = vpop.f32.mrb[0].mxu0
  %v2608 = vadd.f32 0.0, %v2607
  %v2609 = vpop.f32.mrb[0].mxu0
  %2610 = vmatprep.mubr.f32.mxu0 0.0
  %2611 = vmatmul.mubr.f32.gmra.mrb[0].mxu0 %v2493
  %v2612 = vpop.f32.mrb[0].mxu0
  %v2613 = vadd.f32 0.0, %v2612
  %v2614 = vpop.f32.mrb[0].mxu0
  %2615 = vmatprep.mubr.f32.mxu0 0.0
  %2616 = vmatmul.mubr.f32.gmra.mrb[0].mxu0 %v2496
  %v2617 = vpop.f32.mrb[0].mxu0
  %v2618 = vadd.f32 0.0, %v2617
  %v2619 = vpop.f32.mrb[0].mxu0
  %2620 = vmatprep.mubr.f32.mxu0 0.0
  %2621 = vmatmul.mubr.f32.gmra.mrb[0].mxu0 %v2499
  %v2622 = vpop.f32.mrb[0].mxu0
  %v2623 = vadd.f32 0.0, %v2622
  %v2624 = vpop.f32.mrb[0].mxu0
  %2625 = vmatprep.mubr.f32.mxu0 0.0
  %2626 = vmatmul.mubr.f32.gmra.mrb[0].mxu0 %v2502
  %v2627 = vpop.f32.mrb[0].mxu0
  %v2628 = vadd.f32 0.0, %v2627
  %v2629 = vpop.f32.mrb[0].mxu0
  %2630 = vmatprep.mubr.f32.mxu0 0.0
  %2631 = vmatmul.mubr.f32.gmra.mrb[0].mxu0 %v2505
  %v2632 = vpop.f32.mrb[0].mxu0
  %v2633 = vadd.f32 0.0, %v2632
  %v2634 = vpop.f32.mrb[0].mxu0
  %2635 = vmatprep.mubr.f32.mxu0 0.0
  %2636 = vmatmul.mubr.f32.gmra.mrb[0].mxu0 %v2508
  %v2637 = vpop.f32.mrb[0].mxu0
  %v2638 = vadd.f32 0.0, %v2637
  %v2639 = vpop.f32.mrb[0].mxu0
  %2640 = vmatprep.mubr.f32.mxu0 0.0
  %2641 = vmatmul.mubr.f32.gmra.mrb[0].mxu0 %v2511
  %v2642 = vpop.f32.mrb[0].mxu0
  %v2643 = vadd.f32 0.0, %v2642
  %v2644 = vpop.f32.mrb[0].mxu0
  %2645 = vmatprep.mubr.f32.mxu0 0.0
  %2646 = vmatmul.mubr.f32.gmra.mrb[0].mxu0 %v2514
  %v2647 = vpop.f32.mrb[0].mxu0
  %v2648 = vadd.f32 0.0, %v2647
  %v2649 = vpop.f32.mrb[0].mxu0
  %2650 = vmatprep.mubr.f32.mxu0 0.0
  %2651 = vmatmul.mubr.f32.gmra.mrb[0].mxu0 %v2517
  %v2652 = vpop.f32.mrb[0].mxu0
  %v2653 = vadd.f32 0.0, %v2652
  %v2654 = vpop.f32.mrb[0].mxu0
  %2655 = vmatprep.mubr.f32.mxu0 0.0
  %2656 = vmatmul.mubr.f32.gmra.mrb[0].mxu0 %v2520
  %v2657 = vpop.f32.mrb[0].mxu0
  %v2658 = vadd.f32 0.0, %v2657
  %v2659 = vpop.f32.mrb[0].mxu0
  %2660 = vmatprep.mubr.f32.mxu0 0.0
  %2661 = vmatmul.mubr.f32.gmra.mrb[0].mxu0 %v2523
  %v2662 = vpop.f32.mrb[0].mxu0
  %v2663 = vadd.f32 0.0, %v2662
  %v2664 = vpop.f32.mrb[0].mxu0
  %2665 = vmatprep.mubr.f32.mxu0 0.0
  %2666 = vmatmul.mubr.f32.gmra.mrb[0].mxu0 %v2526
  %v2667 = vpop.f32.mrb[0].mxu0
  %v2668 = vadd.f32 0.0, %v2667
  %v2669 = vpop.f32.mrb[0].mxu0
  %2670 = vmatprep.mubr.f32.mxu0 0.0
  %2671 = vmatmul.mubr.f32.gmra.mrb[0].mxu0 %v2529
  %v2672 = vpop.f32.mrb[0].mxu0
  %v2673 = vadd.f32 0.0, %v2672
  %v2674 = vpop.f32.mrb[0].mxu0
  %2675 = vdwg.mxu0
  %v2676 = vadd.f32 %v2465, %v2598
  %v2677 = vadd.f32 %v2466, %v2603
  %v2678 = vadd.f32 %v2467, %v2608
  %v2679 = vadd.f32 %v2468, %v2613
  %v2680 = vadd.f32 %v2469, %v2618
  %v2681 = vadd.f32 %v2470, %v2623
  %v2682 = vadd.f32 %v2471, %v2628
  %v2683 = vadd.f32 %v2472, %v2633
  %v2684 = vadd.f32 %v2473, %v2638
  %v2685 = vadd.f32 %v2474, %v2643
  %v2686 = vadd.f32 %v2475, %v2648
  %v2687 = vadd.f32 %v2476, %v2653
  %v2688 = vadd.f32 %v2477, %v2658
  %v2689 = vadd.f32 %v2478, %v2663
  %v2690 = vadd.f32 %v2479, %v2668
  %v2691 = vadd.f32 %v2480, %v2673
  %s2692 = scalar_lea.vmem %s2, 64
  %v2693 = vld [vmem:[%s2692] sm:$0xff]
  %s2694 = scalar_lea.vmem %s2, 72
  %v2695 = vld [vmem:[%s2694] sm:$0xff]
  %2696 = vmatprep.subr.mxu0 0.0
  %2697 = vmatpush1.msra.mxu0 %v2695
  %2698 = vmatprep.subr.mxu0 0.0
  %2699 = vmatpush1.msra.mxu0 0.0
  %2700 = vmatprep.subr.mxu0 0.0
  %2701 = vmatpush1.msra.mxu0 0.0
  %2702 = vmatprep.subr.mxu0 0.0
  %2703 = vmatpush1.msra.mxu0 0.0
  %2704 = vmatprep.subr.mxu0 0.0
  %2705 = vmatpush1.msra.mxu0 0.0
  %2706 = vmatprep.subr.mxu0 0.0
  %2707 = vmatpush1.msra.mxu0 0.0
  %2708 = vmatprep.subr.mxu0 0.0
  %2709 = vmatpush1.msra.mxu0 0.0
  %2710 = vmatprep.subr.mxu0 0.0
  %2711 = vmatpush1.msra.mxu0 0.0
  %2712 = vmatprep.subr.mxu0 0.0
  %2713 = vmatpush1.msra.mxu0 0.0
  %2714 = vmatprep.subr.mxu0 0.0
  %2715 = vmatpush1.msra.mxu0 0.0
  %2716 = vmatprep.subr.mxu0 0.0
  %2717 = vmatpush1.msra.mxu0 0.0
  %2718 = vmatprep.subr.mxu0 0.0
  %2719 = vmatpush1.msra.mxu0 0.0
  %2720 = vmatprep.subr.mxu0 0.0
  %2721 = vmatpush1.msra.mxu0 0.0
  %2722 = vmatprep.subr.mxu0 0.0
  %2723 = vmatpush1.msra.mxu0 0.0
  %2724 = vmatprep.subr.mxu0 0.0
  %2725 = vmatpush1.msra.mxu0 0.0
  %2726 = vmatprep.subr.mxu0 0.0
  %2727 = vmatpush1.msra.mxu0 0.0
  %2728 = vmatprep.subr.mxu0 0.0
  %2729 = vmatpush1.msra.mxu0 0.0
  %2730 = vmatprep.subr.mxu0 0.0
  %2731 = vmatpush1.msra.mxu0 0.0
  %2732 = vmatprep.subr.mxu0 0.0
  %2733 = vmatpush1.msra.mxu0 0.0
  %2734 = vmatprep.subr.mxu0 0.0
  %2735 = vmatpush1.msra.mxu0 0.0
  %2736 = vmatprep.subr.mxu0 0.0
  %2737 = vmatpush1.msra.mxu0 0.0
  %2738 = vmatprep.subr.mxu0 0.0
  %2739 = vmatpush1.msra.mxu0 0.0
  %2740 = vmatprep.subr.mxu0 0.0
  %2741 = vmatpush1.msra.mxu0 0.0
  %2742 = vmatprep.subr.mxu0 0.0
  %2743 = vmatpush1.msra.mxu0 0.0
  %2744 = vmatprep.subr.mxu0 0.0
  %2745 = vmatpush1.msra.mxu0 0.0
  %2746 = vmatprep.subr.mxu0 0.0
  %2747 = vmatpush1.msra.mxu0 0.0
  %2748 = vmatprep.subr.mxu0 0.0
  %2749 = vmatpush1.msra.mxu0 0.0
  %2750 = vmatprep.subr.mxu0 0.0
  %2751 = vmatpush1.msra.mxu0 0.0
  %2752 = vmatprep.subr.mxu0 0.0
  %2753 = vmatpush1.msra.mxu0 0.0
  %2754 = vmatprep.subr.mxu0 0.0
  %2755 = vmatpush1.msra.mxu0 0.0
  %2756 = vmatprep.subr.mxu0 0.0
  %2757 = vmatpush1.msra.mxu0 0.0
  %2758 = vmatprep.subr.mxu0 0.0
  %2759 = vmatpush1.msra.mxu0 0.0
  %2760 = vmatprep.mubr.f32.mxu0 0.0
  %2761 = vmatmul.mubr.f32.gmra.mrb[0].mxu0 %v1768
  %v2762 = vpop.f32.mrb[0].mxu0
  %v2763 = vadd.f32 0.0, %v2762
  %v2764 = vpop.f32.mrb[0].mxu0
  %2765 = vmatprep.mubr.f32.mxu0 0.0
  %2766 = vmatmul.mubr.f32.gmra.mrb[0].mxu0 %v1771
  %v2767 = vpop.f32.mrb[0].mxu0
  %v2768 = vadd.f32 0.0, %v2767
  %v2769 = vpop.f32.mrb[0].mxu0
  %2770 = vmatprep.mubr.f32.mxu0 0.0
  %2771 = vmatmul.mubr.f32.gmra.mrb[0].mxu0 %v1774
  %v2772 = vpop.f32.mrb[0].mxu0
  %v2773 = vadd.f32 0.0, %v2772
  %v2774 = vpop.f32.mrb[0].mxu0
  %2775 = vmatprep.mubr.f32.mxu0 0.0
  %2776 = vmatmul.mubr.f32.gmra.mrb[0].mxu0 %v1777
  %v2777 = vpop.f32.mrb[0].mxu0
  %v2778 = vadd.f32 0.0, %v2777
  %v2779 = vpop.f32.mrb[0].mxu0
  %2780 = vmatprep.mubr.f32.mxu0 0.0
  %2781 = vmatmul.mubr.f32.gmra.mrb[0].mxu0 %v1780
  %v2782 = vpop.f32.mrb[0].mxu0
  %v2783 = vadd.f32 0.0, %v2782
  %v2784 = vpop.f32.mrb[0].mxu0
  %2785 = vmatprep.mubr.f32.mxu0 0.0
  %2786 = vmatmul.mubr.f32.gmra.mrb[0].mxu0 %v1783
  %v2787 = vpop.f32.mrb[0].mxu0
  %v2788 = vadd.f32 0.0, %v2787
  %v2789 = vpop.f32.mrb[0].mxu0
  %2790 = vmatprep.mubr.f32.mxu0 0.0
  %2791 = vmatmul.mubr.f32.gmra.mrb[0].mxu0 %v1786
  %v2792 = vpop.f32.mrb[0].mxu0
  %v2793 = vadd.f32 0.0, %v2792
  %v2794 = vpop.f32.mrb[0].mxu0
  %2795 = vmatprep.mubr.f32.mxu0 0.0
  %2796 = vmatmul.mubr.f32.gmra.mrb[0].mxu0 %v1789
  %v2797 = vpop.f32.mrb[0].mxu0
  %v2798 = vadd.f32 0.0, %v2797
  %v2799 = vpop.f32.mrb[0].mxu0
  %2800 = vmatprep.mubr.f32.mxu0 0.0
  %2801 = vmatmul.mubr.f32.gmra.mrb[0].mxu0 %v1792
  %v2802 = vpop.f32.mrb[0].mxu0
  %v2803 = vadd.f32 0.0, %v2802
  %v2804 = vpop.f32.mrb[0].mxu0
  %2805 = vmatprep.mubr.f32.mxu0 0.0
  %2806 = vmatmul.mubr.f32.gmra.mrb[0].mxu0 %v1795
  %v2807 = vpop.f32.mrb[0].mxu0
  %v2808 = vadd.f32 0.0, %v2807
  %v2809 = vpop.f32.mrb[0].mxu0
  %2810 = vmatprep.mubr.f32.mxu0 0.0
  %2811 = vmatmul.mubr.f32.gmra.mrb[0].mxu0 %v1798
  %v2812 = vpop.f32.mrb[0].mxu0
  %v2813 = vadd.f32 0.0, %v2812
  %v2814 = vpop.f32.mrb[0].mxu0
  %2815 = vmatprep.mubr.f32.mxu0 0.0
  %2816 = vmatmul.mubr.f32.gmra.mrb[0].mxu0 %v1801
  %v2817 = vpop.f32.mrb[0].mxu0
  %v2818 = vadd.f32 0.0, %v2817
  %v2819 = vpop.f32.mrb[0].mxu0
  %2820 = vmatprep.mubr.f32.mxu0 0.0
  %2821 = vmatmul.mubr.f32.gmra.mrb[0].mxu0 %v1804
  %v2822 = vpop.f32.mrb[0].mxu0
  %v2823 = vadd.f32 0.0, %v2822
  %v2824 = vpop.f32.mrb[0].mxu0
  %2825 = vmatprep.mubr.f32.mxu0 0.0
  %2826 = vmatmul.mubr.f32.gmra.mrb[0].mxu0 %v1807
  %v2827 = vpop.f32.mrb[0].mxu0
  %v2828 = vadd.f32 0.0, %v2827
  %v2829 = vpop.f32.mrb[0].mxu0
  %2830 = vmatprep.mubr.f32.mxu0 0.0
  %2831 = vmatmul.mubr.f32.gmra.mrb[0].mxu0 %v1810
  %v2832 = vpop.f32.mrb[0].mxu0
  %v2833 = vadd.f32 0.0, %v2832
  %v2834 = vpop.f32.mrb[0].mxu0
  %2835 = vmatprep.mubr.f32.mxu0 0.0
  %2836 = vmatmul.mubr.f32.gmra.mrb[0].mxu0 %v1813
  %v2837 = vpop.f32.mrb[0].mxu0
  %v2838 = vadd.f32 0.0, %v2837
  %v2839 = vpop.f32.mrb[0].mxu0
  %2840 = vdwg.mxu0
  %2841 = vmatprep.subr.mxu0 0.0
  %2842 = vmatpush1.msra.mxu0 %v2693
  %2843 = vmatprep.subr.mxu0 0.0
  %2844 = vmatpush1.msra.mxu0 0.0
  %2845 = vmatprep.subr.mxu0 0.0
  %2846 = vmatpush1.msra.mxu0 0.0
  %2847 = vmatprep.subr.mxu0 0.0
  %2848 = vmatpush1.msra.mxu0 0.0
  %2849 = vmatprep.subr.mxu0 0.0
  %2850 = vmatpush1.msra.mxu0 0.0
  %2851 = vmatprep.subr.mxu0 0.0
  %2852 = vmatpush1.msra.mxu0 0.0
  %2853 = vmatprep.subr.mxu0 0.0
  %2854 = vmatpush1.msra.mxu0 0.0
  %2855 = vmatprep.subr.mxu0 0.0
  %2856 = vmatpush1.msra.mxu0 0.0
  %2857 = vmatprep.subr.mxu0 0.0
  %2858 = vmatpush1.msra.mxu0 0.0
  %2859 = vmatprep.subr.mxu0 0.0
  %2860 = vmatpush1.msra.mxu0 0.0
  %2861 = vmatprep.subr.mxu0 0.0
  %2862 = vmatpush1.msra.mxu0 0.0
  %2863 = vmatprep.subr.mxu0 0.0
  %2864 = vmatpush1.msra.mxu0 0.0
  %2865 = vmatprep.subr.mxu0 0.0
  %2866 = vmatpush1.msra.mxu0 0.0
  %2867 = vmatprep.subr.mxu0 0.0
  %2868 = vmatpush1.msra.mxu0 0.0
  %2869 = vmatprep.subr.mxu0 0.0
  %2870 = vmatpush1.msra.mxu0 0.0
  %2871 = vmatprep.subr.mxu0 0.0
  %2872 = vmatpush1.msra.mxu0 0.0
  %2873 = vmatprep.subr.mxu0 0.0
  %2874 = vmatpush1.msra.mxu0 0.0
  %2875 = vmatprep.subr.mxu0 0.0
  %2876 = vmatpush1.msra.mxu0 0.0
  %2877 = vmatprep.subr.mxu0 0.0
  %2878 = vmatpush1.msra.mxu0 0.0
  %2879 = vmatprep.subr.mxu0 0.0
  %2880 = vmatpush1.msra.mxu0 0.0
  %2881 = vmatprep.subr.mxu0 0.0
  %2882 = vmatpush1.msra.mxu0 0.0
  %2883 = vmatprep.subr.mxu0 0.0
  %2884 = vmatpush1.msra.mxu0 0.0
  %2885 = vmatprep.subr.mxu0 0.0
  %2886 = vmatpush1.msra.mxu0 0.0
  %2887 = vmatprep.subr.mxu0 0.0
  %2888 = vmatpush1.msra.mxu0 0.0
  %2889 = vmatprep.subr.mxu0 0.0
  %2890 = vmatpush1.msra.mxu0 0.0
  %2891 = vmatprep.subr.mxu0 0.0
  %2892 = vmatpush1.msra.mxu0 0.0
  %2893 = vmatprep.subr.mxu0 0.0
  %2894 = vmatpush1.msra.mxu0 0.0
  %2895 = vmatprep.subr.mxu0 0.0
  %2896 = vmatpush1.msra.mxu0 0.0
  %2897 = vmatprep.subr.mxu0 0.0
  %2898 = vmatpush1.msra.mxu0 0.0
  %2899 = vmatprep.subr.mxu0 0.0
  %2900 = vmatpush1.msra.mxu0 0.0
  %2901 = vmatprep.subr.mxu0 0.0
  %2902 = vmatpush1.msra.mxu0 0.0
  %2903 = vmatprep.subr.mxu0 0.0
  %2904 = vmatpush1.msra.mxu0 0.0
  %2905 = vmatprep.mubr.f32.mxu0 0.0
  %2906 = vmatmul.mubr.f32.gmra.mrb[0].mxu0 %v1557
  %v2907 = vpop.f32.mrb[0].mxu0
  %v2908 = vadd.f32 %v2763, %v2907
  %v2909 = vpop.f32.mrb[0].mxu0
  %2910 = vmatprep.mubr.f32.mxu0 0.0
  %2911 = vmatmul.mubr.f32.gmra.mrb[0].mxu0 %v1560
  %v2912 = vpop.f32.mrb[0].mxu0
  %v2913 = vadd.f32 %v2768, %v2912
  %v2914 = vpop.f32.mrb[0].mxu0
  %2915 = vmatprep.mubr.f32.mxu0 0.0
  %2916 = vmatmul.mubr.f32.gmra.mrb[0].mxu0 %v1563
  %v2917 = vpop.f32.mrb[0].mxu0
  %v2918 = vadd.f32 %v2773, %v2917
  %v2919 = vpop.f32.mrb[0].mxu0
  %2920 = vmatprep.mubr.f32.mxu0 0.0
  %2921 = vmatmul.mubr.f32.gmra.mrb[0].mxu0 %v1566
  %v2922 = vpop.f32.mrb[0].mxu0
  %v2923 = vadd.f32 %v2778, %v2922
  %v2924 = vpop.f32.mrb[0].mxu0
  %2925 = vmatprep.mubr.f32.mxu0 0.0
  %2926 = vmatmul.mubr.f32.gmra.mrb[0].mxu0 %v1569
  %v2927 = vpop.f32.mrb[0].mxu0
  %v2928 = vadd.f32 %v2783, %v2927
  %v2929 = vpop.f32.mrb[0].mxu0
  %2930 = vmatprep.mubr.f32.mxu0 0.0
  %2931 = vmatmul.mubr.f32.gmra.mrb[0].mxu0 %v1572
  %v2932 = vpop.f32.mrb[0].mxu0
  %v2933 = vadd.f32 %v2788, %v2932
  %v2934 = vpop.f32.mrb[0].mxu0
  %2935 = vmatprep.mubr.f32.mxu0 0.0
  %2936 = vmatmul.mubr.f32.gmra.mrb[0].mxu0 %v1575
  %v2937 = vpop.f32.mrb[0].mxu0
  %v2938 = vadd.f32 %v2793, %v2937
  %v2939 = vpop.f32.mrb[0].mxu0
  %2940 = vmatprep.mubr.f32.mxu0 0.0
  %2941 = vmatmul.mubr.f32.gmra.mrb[0].mxu0 %v1578
  %v2942 = vpop.f32.mrb[0].mxu0
  %v2943 = vadd.f32 %v2798, %v2942
  %v2944 = vpop.f32.mrb[0].mxu0
  %2945 = vmatprep.mubr.f32.mxu0 0.0
  %2946 = vmatmul.mubr.f32.gmra.mrb[0].mxu0 %v1581
  %v2947 = vpop.f32.mrb[0].mxu0
  %v2948 = vadd.f32 %v2803, %v2947
  %v2949 = vpop.f32.mrb[0].mxu0
  %2950 = vmatprep.mubr.f32.mxu0 0.0
  %2951 = vmatmul.mubr.f32.gmra.mrb[0].mxu0 %v1584
  %v2952 = vpop.f32.mrb[0].mxu0
  %v2953 = vadd.f32 %v2808, %v2952
  %v2954 = vpop.f32.mrb[0].mxu0
  %2955 = vmatprep.mubr.f32.mxu0 0.0
  %2956 = vmatmul.mubr.f32.gmra.mrb[0].mxu0 %v1587
  %v2957 = vpop.f32.mrb[0].mxu0
  %v2958 = vadd.f32 %v2813, %v2957
  %v2959 = vpop.f32.mrb[0].mxu0
  %2960 = vmatprep.mubr.f32.mxu0 0.0
  %2961 = vmatmul.mubr.f32.gmra.mrb[0].mxu0 %v1590
  %v2962 = vpop.f32.mrb[0].mxu0
  %v2963 = vadd.f32 %v2818, %v2962
  %v2964 = vpop.f32.mrb[0].mxu0
  %2965 = vmatprep.mubr.f32.mxu0 0.0
  %2966 = vmatmul.mubr.f32.gmra.mrb[0].mxu0 %v1593
  %v2967 = vpop.f32.mrb[0].mxu0
  %v2968 = vadd.f32 %v2823, %v2967
  %v2969 = vpop.f32.mrb[0].mxu0
  %2970 = vmatprep.mubr.f32.mxu0 0.0
  %2971 = vmatmul.mubr.f32.gmra.mrb[0].mxu0 %v1596
  %v2972 = vpop.f32.mrb[0].mxu0
  %v2973 = vadd.f32 %v2828, %v2972
  %v2974 = vpop.f32.mrb[0].mxu0
  %2975 = vmatprep.mubr.f32.mxu0 0.0
  %2976 = vmatmul.mubr.f32.gmra.mrb[0].mxu0 %v1599
  %v2977 = vpop.f32.mrb[0].mxu0
  %v2978 = vadd.f32 %v2833, %v2977
  %v2979 = vpop.f32.mrb[0].mxu0
  %2980 = vmatprep.mubr.f32.mxu0 0.0
  %2981 = vmatmul.mubr.f32.gmra.mrb[0].mxu0 %v1602
  %v2982 = vpop.f32.mrb[0].mxu0
  %v2983 = vadd.f32 %v2838, %v2982
  %v2984 = vpop.f32.mrb[0].mxu0
  %2985 = vdwg.mxu0
  %s2986 = scalar_lea.vmem %s2, 80
  %v2987 = vld [vmem:[%s2986] sm:$0xff]
  %v2989 = vsel %vm945, %v1117, 0
  %v2992 = vsel %vm945, %v1118, 0
  %v2995 = vsel %vm945, %v1119, 0
  %v2998 = vsel %vm945, %v1120, 0
  %v3001 = vsel %vm945, %v1121, 0
  %v3004 = vsel %vm945, %v1122, 0
  %v3007 = vsel %vm945, %v1123, 0
  %v3010 = vsel %vm945, %v1124, 0
  %v3013 = vsel %vm945, %v1125, 0
  %v3016 = vsel %vm945, %v1126, 0
  %v3019 = vsel %vm945, %v1127, 0
  %v3022 = vsel %vm945, %v1128, 0
  %v3025 = vsel %vm945, %v1129, 0
  %v3028 = vsel %vm945, %v1130, 0
  %v3031 = vsel %vm945, %v1131, 0
  %v3034 = vsel %vm945, %v1132, 0
  %3036 = vmatprep.subr.mxu0 0.0
  %3037 = vmatpush1.msra.mxu0 %v2987
  %3038 = vmatprep.subr.mxu0 0.0
  %3039 = vmatpush1.msra.mxu0 0.0
  %3040 = vmatprep.subr.mxu0 0.0
  %3041 = vmatpush1.msra.mxu0 0.0
  %3042 = vmatprep.subr.mxu0 0.0
  %3043 = vmatpush1.msra.mxu0 0.0
  %3044 = vmatprep.subr.mxu0 0.0
  %3045 = vmatpush1.msra.mxu0 0.0
  %3046 = vmatprep.subr.mxu0 0.0
  %3047 = vmatpush1.msra.mxu0 0.0
  %3048 = vmatprep.subr.mxu0 0.0
  %3049 = vmatpush1.msra.mxu0 0.0
  %3050 = vmatprep.subr.mxu0 0.0
  %3051 = vmatpush1.msra.mxu0 0.0
  %3052 = vmatprep.subr.mxu0 0.0
  %3053 = vmatpush1.msra.mxu0 0.0
  %3054 = vmatprep.subr.mxu0 0.0
  %3055 = vmatpush1.msra.mxu0 0.0
  %3056 = vmatprep.subr.mxu0 0.0
  %3057 = vmatpush1.msra.mxu0 0.0
  %3058 = vmatprep.subr.mxu0 0.0
  %3059 = vmatpush1.msra.mxu0 0.0
  %3060 = vmatprep.subr.mxu0 0.0
  %3061 = vmatpush1.msra.mxu0 0.0
  %3062 = vmatprep.subr.mxu0 0.0
  %3063 = vmatpush1.msra.mxu0 0.0
  %3064 = vmatprep.subr.mxu0 0.0
  %3065 = vmatpush1.msra.mxu0 0.0
  %3066 = vmatprep.subr.mxu0 0.0
  %3067 = vmatpush1.msra.mxu0 0.0
  %3068 = vmatprep.subr.mxu0 0.0
  %3069 = vmatpush1.msra.mxu0 0.0
  %3070 = vmatprep.subr.mxu0 0.0
  %3071 = vmatpush1.msra.mxu0 0.0
  %3072 = vmatprep.subr.mxu0 0.0
  %3073 = vmatpush1.msra.mxu0 0.0
  %3074 = vmatprep.subr.mxu0 0.0
  %3075 = vmatpush1.msra.mxu0 0.0
  %3076 = vmatprep.subr.mxu0 0.0
  %3077 = vmatpush1.msra.mxu0 0.0
  %3078 = vmatprep.subr.mxu0 0.0
  %3079 = vmatpush1.msra.mxu0 0.0
  %3080 = vmatprep.subr.mxu0 0.0
  %3081 = vmatpush1.msra.mxu0 0.0
  %3082 = vmatprep.subr.mxu0 0.0
  %3083 = vmatpush1.msra.mxu0 0.0
  %3084 = vmatprep.subr.mxu0 0.0
  %3085 = vmatpush1.msra.mxu0 0.0
  %3086 = vmatprep.subr.mxu0 0.0
  %3087 = vmatpush1.msra.mxu0 0.0
  %3088 = vmatprep.subr.mxu0 0.0
  %3089 = vmatpush1.msra.mxu0 0.0
  %3090 = vmatprep.subr.mxu0 0.0
  %3091 = vmatpush1.msra.mxu0 0.0
  %3092 = vmatprep.subr.mxu0 0.0
  %3093 = vmatpush1.msra.mxu0 0.0
  %3094 = vmatprep.subr.mxu0 0.0
  %3095 = vmatpush1.msra.mxu0 0.0
  %3096 = vmatprep.subr.mxu0 0.0
  %3097 = vmatpush1.msra.mxu0 0.0
  %3098 = vmatprep.subr.mxu0 0.0
  %3099 = vmatpush1.msra.mxu0 0.0
  %3100 = vmatprep.mubr.f32.mxu0 0.0
  %3101 = vmatmul.mubr.f32.gmra.mrb[0].mxu0 %v2989
  %v3102 = vpop.f32.mrb[0].mxu0
  %v3103 = vadd.f32 0.0, %v3102
  %v3104 = vpop.f32.mrb[0].mxu0
  %3105 = vmatprep.mubr.f32.mxu0 0.0
  %3106 = vmatmul.mubr.f32.gmra.mrb[0].mxu0 %v2992
  %v3107 = vpop.f32.mrb[0].mxu0
  %v3108 = vadd.f32 0.0, %v3107
  %v3109 = vpop.f32.mrb[0].mxu0
  %3110 = vmatprep.mubr.f32.mxu0 0.0
  %3111 = vmatmul.mubr.f32.gmra.mrb[0].mxu0 %v2995
  %v3112 = vpop.f32.mrb[0].mxu0
  %v3113 = vadd.f32 0.0, %v3112
  %v3114 = vpop.f32.mrb[0].mxu0
  %3115 = vmatprep.mubr.f32.mxu0 0.0
  %3116 = vmatmul.mubr.f32.gmra.mrb[0].mxu0 %v2998
  %v3117 = vpop.f32.mrb[0].mxu0
  %v3118 = vadd.f32 0.0, %v3117
  %v3119 = vpop.f32.mrb[0].mxu0
  %3120 = vmatprep.mubr.f32.mxu0 0.0
  %3121 = vmatmul.mubr.f32.gmra.mrb[0].mxu0 %v3001
  %v3122 = vpop.f32.mrb[0].mxu0
  %v3123 = vadd.f32 0.0, %v3122
  %v3124 = vpop.f32.mrb[0].mxu0
  %3125 = vmatprep.mubr.f32.mxu0 0.0
  %3126 = vmatmul.mubr.f32.gmra.mrb[0].mxu0 %v3004
  %v3127 = vpop.f32.mrb[0].mxu0
  %v3128 = vadd.f32 0.0, %v3127
  %v3129 = vpop.f32.mrb[0].mxu0
  %3130 = vmatprep.mubr.f32.mxu0 0.0
  %3131 = vmatmul.mubr.f32.gmra.mrb[0].mxu0 %v3007
  %v3132 = vpop.f32.mrb[0].mxu0
  %v3133 = vadd.f32 0.0, %v3132
  %v3134 = vpop.f32.mrb[0].mxu0
  %3135 = vmatprep.mubr.f32.mxu0 0.0
  %3136 = vmatmul.mubr.f32.gmra.mrb[0].mxu0 %v3010
  %v3137 = vpop.f32.mrb[0].mxu0
  %v3138 = vadd.f32 0.0, %v3137
  %v3139 = vpop.f32.mrb[0].mxu0
  %3140 = vmatprep.mubr.f32.mxu0 0.0
  %3141 = vmatmul.mubr.f32.gmra.mrb[0].mxu0 %v3013
  %v3142 = vpop.f32.mrb[0].mxu0
  %v3143 = vadd.f32 0.0, %v3142
  %v3144 = vpop.f32.mrb[0].mxu0
  %3145 = vmatprep.mubr.f32.mxu0 0.0
  %3146 = vmatmul.mubr.f32.gmra.mrb[0].mxu0 %v3016
  %v3147 = vpop.f32.mrb[0].mxu0
  %v3148 = vadd.f32 0.0, %v3147
  %v3149 = vpop.f32.mrb[0].mxu0
  %3150 = vmatprep.mubr.f32.mxu0 0.0
  %3151 = vmatmul.mubr.f32.gmra.mrb[0].mxu0 %v3019
  %v3152 = vpop.f32.mrb[0].mxu0
  %v3153 = vadd.f32 0.0, %v3152
  %v3154 = vpop.f32.mrb[0].mxu0
  %3155 = vmatprep.mubr.f32.mxu0 0.0
  %3156 = vmatmul.mubr.f32.gmra.mrb[0].mxu0 %v3022
  %v3157 = vpop.f32.mrb[0].mxu0
  %v3158 = vadd.f32 0.0, %v3157
  %v3159 = vpop.f32.mrb[0].mxu0
  %3160 = vmatprep.mubr.f32.mxu0 0.0
  %3161 = vmatmul.mubr.f32.gmra.mrb[0].mxu0 %v3025
  %v3162 = vpop.f32.mrb[0].mxu0
  %v3163 = vadd.f32 0.0, %v3162
  %v3164 = vpop.f32.mrb[0].mxu0
  %3165 = vmatprep.mubr.f32.mxu0 0.0
  %3166 = vmatmul.mubr.f32.gmra.mrb[0].mxu0 %v3028
  %v3167 = vpop.f32.mrb[0].mxu0
  %v3168 = vadd.f32 0.0, %v3167
  %v3169 = vpop.f32.mrb[0].mxu0
  %3170 = vmatprep.mubr.f32.mxu0 0.0
  %3171 = vmatmul.mubr.f32.gmra.mrb[0].mxu0 %v3031
  %v3172 = vpop.f32.mrb[0].mxu0
  %v3173 = vadd.f32 0.0, %v3172
  %v3174 = vpop.f32.mrb[0].mxu0
  %3175 = vmatprep.mubr.f32.mxu0 0.0
  %3176 = vmatmul.mubr.f32.gmra.mrb[0].mxu0 %v3034
  %v3177 = vpop.f32.mrb[0].mxu0
  %v3178 = vadd.f32 0.0, %v3177
  %v3179 = vpop.f32.mrb[0].mxu0
  %3180 = vdwg.mxu0
  %v3181 = vadd.f32 %v2908, %v3103
  %v3182 = vadd.f32 %v2913, %v3108
  %v3183 = vadd.f32 %v2918, %v3113
  %v3184 = vadd.f32 %v2923, %v3118
  %v3185 = vadd.f32 %v2928, %v3123
  %v3186 = vadd.f32 %v2933, %v3128
  %v3187 = vadd.f32 %v2938, %v3133
  %v3188 = vadd.f32 %v2943, %v3138
  %v3189 = vadd.f32 %v2948, %v3143
  %v3190 = vadd.f32 %v2953, %v3148
  %v3191 = vadd.f32 %v2958, %v3153
  %v3192 = vadd.f32 %v2963, %v3158
  %v3193 = vadd.f32 %v2968, %v3163
  %v3194 = vadd.f32 %v2973, %v3168
  %v3195 = vadd.f32 %v2978, %v3173
  %v3196 = vadd.f32 %v2983, %v3178
  %s3197 = scalar_lea.vmem %s2, 88
  %v3198 = vld [vmem:[%s3197] sm:$0xff]
  %v3200 = vsel %vm945, %v1133, 0
  %v3203 = vsel %vm945, %v1134, 0
  %v3206 = vsel %vm945, %v1135, 0
  %v3209 = vsel %vm945, %v1136, 0
  %v3212 = vsel %vm945, %v1137, 0
  %v3215 = vsel %vm945, %v1138, 0
  %v3218 = vsel %vm945, %v1139, 0
  %v3221 = vsel %vm945, %v1140, 0
  %v3224 = vsel %vm945, %v1141, 0
  %v3227 = vsel %vm945, %v1142, 0
  %v3230 = vsel %vm945, %v1143, 0
  %v3233 = vsel %vm945, %v1144, 0
  %v3236 = vsel %vm945, %v1145, 0
  %v3239 = vsel %vm945, %v1146, 0
  %v3242 = vsel %vm945, %v1147, 0
  %v3245 = vsel %vm945, %v1148, 0
  %3247 = vmatprep.subr.mxu0 0.0
  %3248 = vmatpush1.msra.mxu0 %v3198
  %3249 = vmatprep.subr.mxu0 0.0
  %3250 = vmatpush1.msra.mxu0 0.0
  %3251 = vmatprep.subr.mxu0 0.0
  %3252 = vmatpush1.msra.mxu0 0.0
  %3253 = vmatprep.subr.mxu0 0.0
  %3254 = vmatpush1.msra.mxu0 0.0
  %3255 = vmatprep.subr.mxu0 0.0
  %3256 = vmatpush1.msra.mxu0 0.0
  %3257 = vmatprep.subr.mxu0 0.0
  %3258 = vmatpush1.msra.mxu0 0.0
  %3259 = vmatprep.subr.mxu0 0.0
  %3260 = vmatpush1.msra.mxu0 0.0
  %3261 = vmatprep.subr.mxu0 0.0
  %3262 = vmatpush1.msra.mxu0 0.0
  %3263 = vmatprep.subr.mxu0 0.0
  %3264 = vmatpush1.msra.mxu0 0.0
  %3265 = vmatprep.subr.mxu0 0.0
  %3266 = vmatpush1.msra.mxu0 0.0
  %3267 = vmatprep.subr.mxu0 0.0
  %3268 = vmatpush1.msra.mxu0 0.0
  %3269 = vmatprep.subr.mxu0 0.0
  %3270 = vmatpush1.msra.mxu0 0.0
  %3271 = vmatprep.subr.mxu0 0.0
  %3272 = vmatpush1.msra.mxu0 0.0
  %3273 = vmatprep.subr.mxu0 0.0
  %3274 = vmatpush1.msra.mxu0 0.0
  %3275 = vmatprep.subr.mxu0 0.0
  %3276 = vmatpush1.msra.mxu0 0.0
  %3277 = vmatprep.subr.mxu0 0.0
  %3278 = vmatpush1.msra.mxu0 0.0
  %3279 = vmatprep.subr.mxu0 0.0
  %3280 = vmatpush1.msra.mxu0 0.0
  %3281 = vmatprep.subr.mxu0 0.0
  %3282 = vmatpush1.msra.mxu0 0.0
  %3283 = vmatprep.subr.mxu0 0.0
  %3284 = vmatpush1.msra.mxu0 0.0
  %3285 = vmatprep.subr.mxu0 0.0
  %3286 = vmatpush1.msra.mxu0 0.0
  %3287 = vmatprep.subr.mxu0 0.0
  %3288 = vmatpush1.msra.mxu0 0.0
  %3289 = vmatprep.subr.mxu0 0.0
  %3290 = vmatpush1.msra.mxu0 0.0
  %3291 = vmatprep.subr.mxu0 0.0
  %3292 = vmatpush1.msra.mxu0 0.0
  %3293 = vmatprep.subr.mxu0 0.0
  %3294 = vmatpush1.msra.mxu0 0.0
  %3295 = vmatprep.subr.mxu0 0.0
  %3296 = vmatpush1.msra.mxu0 0.0
  %3297 = vmatprep.subr.mxu0 0.0
  %3298 = vmatpush1.msra.mxu0 0.0
  %3299 = vmatprep.subr.mxu0 0.0
  %3300 = vmatpush1.msra.mxu0 0.0
  %3301 = vmatprep.subr.mxu0 0.0
  %3302 = vmatpush1.msra.mxu0 0.0
  %3303 = vmatprep.subr.mxu0 0.0
  %3304 = vmatpush1.msra.mxu0 0.0
  %3305 = vmatprep.subr.mxu0 0.0
  %3306 = vmatpush1.msra.mxu0 0.0
  %3307 = vmatprep.subr.mxu0 0.0
  %3308 = vmatpush1.msra.mxu0 0.0
  %3309 = vmatprep.subr.mxu0 0.0
  %3310 = vmatpush1.msra.mxu0 0.0
  %3311 = vmatprep.mubr.f32.mxu0 0.0
  %3312 = vmatmul.mubr.f32.gmra.mrb[0].mxu0 %v3200
  %v3313 = vpop.f32.mrb[0].mxu0
  %v3314 = vadd.f32 0.0, %v3313
  %v3315 = vpop.f32.mrb[0].mxu0
  %3316 = vmatprep.mubr.f32.mxu0 0.0
  %3317 = vmatmul.mubr.f32.gmra.mrb[0].mxu0 %v3203
  %v3318 = vpop.f32.mrb[0].mxu0
  %v3319 = vadd.f32 0.0, %v3318
  %v3320 = vpop.f32.mrb[0].mxu0
  %3321 = vmatprep.mubr.f32.mxu0 0.0
  %3322 = vmatmul.mubr.f32.gmra.mrb[0].mxu0 %v3206
  %v3323 = vpop.f32.mrb[0].mxu0
  %v3324 = vadd.f32 0.0, %v3323
  %v3325 = vpop.f32.mrb[0].mxu0
  %3326 = vmatprep.mubr.f32.mxu0 0.0
  %3327 = vmatmul.mubr.f32.gmra.mrb[0].mxu0 %v3209
  %v3328 = vpop.f32.mrb[0].mxu0
  %v3329 = vadd.f32 0.0, %v3328
  %v3330 = vpop.f32.mrb[0].mxu0
  %3331 = vmatprep.mubr.f32.mxu0 0.0
  %3332 = vmatmul.mubr.f32.gmra.mrb[0].mxu0 %v3212
  %v3333 = vpop.f32.mrb[0].mxu0
  %v3334 = vadd.f32 0.0, %v3333
  %v3335 = vpop.f32.mrb[0].mxu0
  %3336 = vmatprep.mubr.f32.mxu0 0.0
  %3337 = vmatmul.mubr.f32.gmra.mrb[0].mxu0 %v3215
  %v3338 = vpop.f32.mrb[0].mxu0
  %v3339 = vadd.f32 0.0, %v3338
  %v3340 = vpop.f32.mrb[0].mxu0
  %3341 = vmatprep.mubr.f32.mxu0 0.0
  %3342 = vmatmul.mubr.f32.gmra.mrb[0].mxu0 %v3218
  %v3343 = vpop.f32.mrb[0].mxu0
  %v3344 = vadd.f32 0.0, %v3343
  %v3345 = vpop.f32.mrb[0].mxu0
  %3346 = vmatprep.mubr.f32.mxu0 0.0
  %3347 = vmatmul.mubr.f32.gmra.mrb[0].mxu0 %v3221
  %v3348 = vpop.f32.mrb[0].mxu0
  %v3349 = vadd.f32 0.0, %v3348
  %v3350 = vpop.f32.mrb[0].mxu0
  %3351 = vmatprep.mubr.f32.mxu0 0.0
  %3352 = vmatmul.mubr.f32.gmra.mrb[0].mxu0 %v3224
  %v3353 = vpop.f32.mrb[0].mxu0
  %v3354 = vadd.f32 0.0, %v3353
  %v3355 = vpop.f32.mrb[0].mxu0
  %3356 = vmatprep.mubr.f32.mxu0 0.0
  %3357 = vmatmul.mubr.f32.gmra.mrb[0].mxu0 %v3227
  %v3358 = vpop.f32.mrb[0].mxu0
  %v3359 = vadd.f32 0.0, %v3358
  %v3360 = vpop.f32.mrb[0].mxu0
  %3361 = vmatprep.mubr.f32.mxu0 0.0
  %3362 = vmatmul.mubr.f32.gmra.mrb[0].mxu0 %v3230
  %v3363 = vpop.f32.mrb[0].mxu0
  %v3364 = vadd.f32 0.0, %v3363
  %v3365 = vpop.f32.mrb[0].mxu0
  %3366 = vmatprep.mubr.f32.mxu0 0.0
  %3367 = vmatmul.mubr.f32.gmra.mrb[0].mxu0 %v3233
  %v3368 = vpop.f32.mrb[0].mxu0
  %v3369 = vadd.f32 0.0, %v3368
  %v3370 = vpop.f32.mrb[0].mxu0
  %3371 = vmatprep.mubr.f32.mxu0 0.0
  %3372 = vmatmul.mubr.f32.gmra.mrb[0].mxu0 %v3236
  %v3373 = vpop.f32.mrb[0].mxu0
  %v3374 = vadd.f32 0.0, %v3373
  %v3375 = vpop.f32.mrb[0].mxu0
  %3376 = vmatprep.mubr.f32.mxu0 0.0
  %3377 = vmatmul.mubr.f32.gmra.mrb[0].mxu0 %v3239
  %v3378 = vpop.f32.mrb[0].mxu0
  %v3379 = vadd.f32 0.0, %v3378
  %v3380 = vpop.f32.mrb[0].mxu0
  %3381 = vmatprep.mubr.f32.mxu0 0.0
  %3382 = vmatmul.mubr.f32.gmra.mrb[0].mxu0 %v3242
  %v3383 = vpop.f32.mrb[0].mxu0
  %v3384 = vadd.f32 0.0, %v3383
  %v3385 = vpop.f32.mrb[0].mxu0
  %3386 = vmatprep.mubr.f32.mxu0 0.0
  %3387 = vmatmul.mubr.f32.gmra.mrb[0].mxu0 %v3245
  %v3388 = vpop.f32.mrb[0].mxu0
  %v3389 = vadd.f32 0.0, %v3388
  %v3390 = vpop.f32.mrb[0].mxu0
  %3391 = vdwg.mxu0
  %v3392 = vadd.f32 %v3181, %v3314
  %v3393 = vadd.f32 %v3182, %v3319
  %v3394 = vadd.f32 %v3183, %v3324
  %v3395 = vadd.f32 %v3184, %v3329
  %v3396 = vadd.f32 %v3185, %v3334
  %v3397 = vadd.f32 %v3186, %v3339
  %v3398 = vadd.f32 %v3187, %v3344
  %v3399 = vadd.f32 %v3188, %v3349
  %v3400 = vadd.f32 %v3189, %v3354
  %v3401 = vadd.f32 %v3190, %v3359
  %v3402 = vadd.f32 %v3191, %v3364
  %v3403 = vadd.f32 %v3192, %v3369
  %v3404 = vadd.f32 %v3193, %v3374
  %v3405 = vadd.f32 %v3194, %v3379
  %v3406 = vadd.f32 %v3195, %v3384
  %v3407 = vadd.f32 %v3196, %v3389
  %s3408 = scalar_lea.vmem %s2, 96
  %v3409 = vld [vmem:[%s3408] sm:$0xff]
  %s3410 = scalar_lea.vmem %s2, 104
  %v3411 = vld [vmem:[%s3410] sm:$0xff]
  %3412 = vmatprep.subr.mxu0 0.0
  %3413 = vmatpush1.msra.mxu0 %v3411
  %3414 = vmatprep.subr.mxu0 0.0
  %3415 = vmatpush1.msra.mxu0 0.0
  %3416 = vmatprep.subr.mxu0 0.0
  %3417 = vmatpush1.msra.mxu0 0.0
  %3418 = vmatprep.subr.mxu0 0.0
  %3419 = vmatpush1.msra.mxu0 0.0
  %3420 = vmatprep.subr.mxu0 0.0
  %3421 = vmatpush1.msra.mxu0 0.0
  %3422 = vmatprep.subr.mxu0 0.0
  %3423 = vmatpush1.msra.mxu0 0.0
  %3424 = vmatprep.subr.mxu0 0.0
  %3425 = vmatpush1.msra.mxu0 0.0
  %3426 = vmatprep.subr.mxu0 0.0
  %3427 = vmatpush1.msra.mxu0 0.0
  %3428 = vmatprep.subr.mxu0 0.0
  %3429 = vmatpush1.msra.mxu0 0.0
  %3430 = vmatprep.subr.mxu0 0.0
  %3431 = vmatpush1.msra.mxu0 0.0
  %3432 = vmatprep.subr.mxu0 0.0
  %3433 = vmatpush1.msra.mxu0 0.0
  %3434 = vmatprep.subr.mxu0 0.0
  %3435 = vmatpush1.msra.mxu0 0.0
  %3436 = vmatprep.subr.mxu0 0.0
  %3437 = vmatpush1.msra.mxu0 0.0
  %3438 = vmatprep.subr.mxu0 0.0
  %3439 = vmatpush1.msra.mxu0 0.0
  %3440 = vmatprep.subr.mxu0 0.0
  %3441 = vmatpush1.msra.mxu0 0.0
  %3442 = vmatprep.subr.mxu0 0.0
  %3443 = vmatpush1.msra.mxu0 0.0
  %3444 = vmatprep.subr.mxu0 0.0
  %3445 = vmatpush1.msra.mxu0 0.0
  %3446 = vmatprep.subr.mxu0 0.0
  %3447 = vmatpush1.msra.mxu0 0.0
  %3448 = vmatprep.subr.mxu0 0.0
  %3449 = vmatpush1.msra.mxu0 0.0
  %3450 = vmatprep.subr.mxu0 0.0
  %3451 = vmatpush1.msra.mxu0 0.0
  %3452 = vmatprep.subr.mxu0 0.0
  %3453 = vmatpush1.msra.mxu0 0.0
  %3454 = vmatprep.subr.mxu0 0.0
  %3455 = vmatpush1.msra.mxu0 0.0
  %3456 = vmatprep.subr.mxu0 0.0
  %3457 = vmatpush1.msra.mxu0 0.0
  %3458 = vmatprep.subr.mxu0 0.0
  %3459 = vmatpush1.msra.mxu0 0.0
  %3460 = vmatprep.subr.mxu0 0.0
  %3461 = vmatpush1.msra.mxu0 0.0
  %3462 = vmatprep.subr.mxu0 0.0
  %3463 = vmatpush1.msra.mxu0 0.0
  %3464 = vmatprep.subr.mxu0 0.0
  %3465 = vmatpush1.msra.mxu0 0.0
  %3466 = vmatprep.subr.mxu0 0.0
  %3467 = vmatpush1.msra.mxu0 0.0
  %3468 = vmatprep.subr.mxu0 0.0
  %3469 = vmatpush1.msra.mxu0 0.0
  %3470 = vmatprep.subr.mxu0 0.0
  %3471 = vmatpush1.msra.mxu0 0.0
  %3472 = vmatprep.subr.mxu0 0.0
  %3473 = vmatpush1.msra.mxu0 0.0
  %3474 = vmatprep.subr.mxu0 0.0
  %3475 = vmatpush1.msra.mxu0 0.0
  %3476 = vmatprep.mubr.f32.mxu0 0.0
  %3477 = vmatmul.mubr.f32.gmra.mrb[0].mxu0 %v2484
  %v3478 = vpop.f32.mrb[0].mxu0
  %v3479 = vadd.f32 0.0, %v3478
  %v3480 = vpop.f32.mrb[0].mxu0
  %3481 = vmatprep.mubr.f32.mxu0 0.0
  %3482 = vmatmul.mubr.f32.gmra.mrb[0].mxu0 %v2487
  %v3483 = vpop.f32.mrb[0].mxu0
  %v3484 = vadd.f32 0.0, %v3483
  %v3485 = vpop.f32.mrb[0].mxu0
  %3486 = vmatprep.mubr.f32.mxu0 0.0
  %3487 = vmatmul.mubr.f32.gmra.mrb[0].mxu0 %v2490
  %v3488 = vpop.f32.mrb[0].mxu0
  %v3489 = vadd.f32 0.0, %v3488
  %v3490 = vpop.f32.mrb[0].mxu0
  %3491 = vmatprep.mubr.f32.mxu0 0.0
  %3492 = vmatmul.mubr.f32.gmra.mrb[0].mxu0 %v2493
  %v3493 = vpop.f32.mrb[0].mxu0
  %v3494 = vadd.f32 0.0, %v3493
  %v3495 = vpop.f32.mrb[0].mxu0
  %3496 = vmatprep.mubr.f32.mxu0 0.0
  %3497 = vmatmul.mubr.f32.gmra.mrb[0].mxu0 %v2496
  %v3498 = vpop.f32.mrb[0].mxu0
  %v3499 = vadd.f32 0.0, %v3498
  %v3500 = vpop.f32.mrb[0].mxu0
  %3501 = vmatprep.mubr.f32.mxu0 0.0
  %3502 = vmatmul.mubr.f32.gmra.mrb[0].mxu0 %v2499
  %v3503 = vpop.f32.mrb[0].mxu0
  %v3504 = vadd.f32 0.0, %v3503
  %v3505 = vpop.f32.mrb[0].mxu0
  %3506 = vmatprep.mubr.f32.mxu0 0.0
  %3507 = vmatmul.mubr.f32.gmra.mrb[0].mxu0 %v2502
  %v3508 = vpop.f32.mrb[0].mxu0
  %v3509 = vadd.f32 0.0, %v3508
  %v3510 = vpop.f32.mrb[0].mxu0
  %3511 = vmatprep.mubr.f32.mxu0 0.0
  %3512 = vmatmul.mubr.f32.gmra.mrb[0].mxu0 %v2505
  %v3513 = vpop.f32.mrb[0].mxu0
  %v3514 = vadd.f32 0.0, %v3513
  %v3515 = vpop.f32.mrb[0].mxu0
  %3516 = vmatprep.mubr.f32.mxu0 0.0
  %3517 = vmatmul.mubr.f32.gmra.mrb[0].mxu0 %v2508
  %v3518 = vpop.f32.mrb[0].mxu0
  %v3519 = vadd.f32 0.0, %v3518
  %v3520 = vpop.f32.mrb[0].mxu0
  %3521 = vmatprep.mubr.f32.mxu0 0.0
  %3522 = vmatmul.mubr.f32.gmra.mrb[0].mxu0 %v2511
  %v3523 = vpop.f32.mrb[0].mxu0
  %v3524 = vadd.f32 0.0, %v3523
  %v3525 = vpop.f32.mrb[0].mxu0
  %3526 = vmatprep.mubr.f32.mxu0 0.0
  %3527 = vmatmul.mubr.f32.gmra.mrb[0].mxu0 %v2514
  %v3528 = vpop.f32.mrb[0].mxu0
  %v3529 = vadd.f32 0.0, %v3528
  %v3530 = vpop.f32.mrb[0].mxu0
  %3531 = vmatprep.mubr.f32.mxu0 0.0
  %3532 = vmatmul.mubr.f32.gmra.mrb[0].mxu0 %v2517
  %v3533 = vpop.f32.mrb[0].mxu0
  %v3534 = vadd.f32 0.0, %v3533
  %v3535 = vpop.f32.mrb[0].mxu0
  %3536 = vmatprep.mubr.f32.mxu0 0.0
  %3537 = vmatmul.mubr.f32.gmra.mrb[0].mxu0 %v2520
  %v3538 = vpop.f32.mrb[0].mxu0
  %v3539 = vadd.f32 0.0, %v3538
  %v3540 = vpop.f32.mrb[0].mxu0
  %3541 = vmatprep.mubr.f32.mxu0 0.0
  %3542 = vmatmul.mubr.f32.gmra.mrb[0].mxu0 %v2523
  %v3543 = vpop.f32.mrb[0].mxu0
  %v3544 = vadd.f32 0.0, %v3543
  %v3545 = vpop.f32.mrb[0].mxu0
  %3546 = vmatprep.mubr.f32.mxu0 0.0
  %3547 = vmatmul.mubr.f32.gmra.mrb[0].mxu0 %v2526
  %v3548 = vpop.f32.mrb[0].mxu0
  %v3549 = vadd.f32 0.0, %v3548
  %v3550 = vpop.f32.mrb[0].mxu0
  %3551 = vmatprep.mubr.f32.mxu0 0.0
  %3552 = vmatmul.mubr.f32.gmra.mrb[0].mxu0 %v2529
  %v3553 = vpop.f32.mrb[0].mxu0
  %v3554 = vadd.f32 0.0, %v3553
  %v3555 = vpop.f32.mrb[0].mxu0
  %3556 = vdwg.mxu0
  %3557 = vmatprep.subr.mxu0 0.0
  %3558 = vmatpush1.msra.mxu0 %v3409
  %3559 = vmatprep.subr.mxu0 0.0
  %3560 = vmatpush1.msra.mxu0 0.0
  %3561 = vmatprep.subr.mxu0 0.0
  %3562 = vmatpush1.msra.mxu0 0.0
  %3563 = vmatprep.subr.mxu0 0.0
  %3564 = vmatpush1.msra.mxu0 0.0
  %3565 = vmatprep.subr.mxu0 0.0
  %3566 = vmatpush1.msra.mxu0 0.0
  %3567 = vmatprep.subr.mxu0 0.0
  %3568 = vmatpush1.msra.mxu0 0.0
  %3569 = vmatprep.subr.mxu0 0.0
  %3570 = vmatpush1.msra.mxu0 0.0
  %3571 = vmatprep.subr.mxu0 0.0
  %3572 = vmatpush1.msra.mxu0 0.0
  %3573 = vmatprep.subr.mxu0 0.0
  %3574 = vmatpush1.msra.mxu0 0.0
  %3575 = vmatprep.subr.mxu0 0.0
  %3576 = vmatpush1.msra.mxu0 0.0
  %3577 = vmatprep.subr.mxu0 0.0
  %3578 = vmatpush1.msra.mxu0 0.0
  %3579 = vmatprep.subr.mxu0 0.0
  %3580 = vmatpush1.msra.mxu0 0.0
  %3581 = vmatprep.subr.mxu0 0.0
  %3582 = vmatpush1.msra.mxu0 0.0
  %3583 = vmatprep.subr.mxu0 0.0
  %3584 = vmatpush1.msra.mxu0 0.0
  %3585 = vmatprep.subr.mxu0 0.0
  %3586 = vmatpush1.msra.mxu0 0.0
  %3587 = vmatprep.subr.mxu0 0.0
  %3588 = vmatpush1.msra.mxu0 0.0
  %3589 = vmatprep.subr.mxu0 0.0
  %3590 = vmatpush1.msra.mxu0 0.0
  %3591 = vmatprep.subr.mxu0 0.0
  %3592 = vmatpush1.msra.mxu0 0.0
  %3593 = vmatprep.subr.mxu0 0.0
  %3594 = vmatpush1.msra.mxu0 0.0
  %3595 = vmatprep.subr.mxu0 0.0
  %3596 = vmatpush1.msra.mxu0 0.0
  %3597 = vmatprep.subr.mxu0 0.0
  %3598 = vmatpush1.msra.mxu0 0.0
  %3599 = vmatprep.subr.mxu0 0.0
  %3600 = vmatpush1.msra.mxu0 0.0
  %3601 = vmatprep.subr.mxu0 0.0
  %3602 = vmatpush1.msra.mxu0 0.0
  %3603 = vmatprep.subr.mxu0 0.0
  %3604 = vmatpush1.msra.mxu0 0.0
  %3605 = vmatprep.subr.mxu0 0.0
  %3606 = vmatpush1.msra.mxu0 0.0
  %3607 = vmatprep.subr.mxu0 0.0
  %3608 = vmatpush1.msra.mxu0 0.0
  %3609 = vmatprep.subr.mxu0 0.0
  %3610 = vmatpush1.msra.mxu0 0.0
  %3611 = vmatprep.subr.mxu0 0.0
  %3612 = vmatpush1.msra.mxu0 0.0
  %3613 = vmatprep.subr.mxu0 0.0
  %3614 = vmatpush1.msra.mxu0 0.0
  %3615 = vmatprep.subr.mxu0 0.0
  %3616 = vmatpush1.msra.mxu0 0.0
  %3617 = vmatprep.subr.mxu0 0.0
  %3618 = vmatpush1.msra.mxu0 0.0
  %3619 = vmatprep.subr.mxu0 0.0
  %3620 = vmatpush1.msra.mxu0 0.0
  %3621 = vmatprep.mubr.f32.mxu0 0.0
  %3622 = vmatmul.mubr.f32.gmra.mrb[0].mxu0 %v1768
  %v3623 = vpop.f32.mrb[0].mxu0
  %v3624 = vadd.f32 %v3479, %v3623
  %v3625 = vpop.f32.mrb[0].mxu0
  %3626 = vmatprep.mubr.f32.mxu0 0.0
  %3627 = vmatmul.mubr.f32.gmra.mrb[0].mxu0 %v1771
  %v3628 = vpop.f32.mrb[0].mxu0
  %v3629 = vadd.f32 %v3484, %v3628
  %v3630 = vpop.f32.mrb[0].mxu0
  %3631 = vmatprep.mubr.f32.mxu0 0.0
  %3632 = vmatmul.mubr.f32.gmra.mrb[0].mxu0 %v1774
  %v3633 = vpop.f32.mrb[0].mxu0
  %v3634 = vadd.f32 %v3489, %v3633
  %v3635 = vpop.f32.mrb[0].mxu0
  %3636 = vmatprep.mubr.f32.mxu0 0.0
  %3637 = vmatmul.mubr.f32.gmra.mrb[0].mxu0 %v1777
  %v3638 = vpop.f32.mrb[0].mxu0
  %v3639 = vadd.f32 %v3494, %v3638
  %v3640 = vpop.f32.mrb[0].mxu0
  %3641 = vmatprep.mubr.f32.mxu0 0.0
  %3642 = vmatmul.mubr.f32.gmra.mrb[0].mxu0 %v1780
  %v3643 = vpop.f32.mrb[0].mxu0
  %v3644 = vadd.f32 %v3499, %v3643
  %v3645 = vpop.f32.mrb[0].mxu0
  %3646 = vmatprep.mubr.f32.mxu0 0.0
  %3647 = vmatmul.mubr.f32.gmra.mrb[0].mxu0 %v1783
  %v3648 = vpop.f32.mrb[0].mxu0
  %v3649 = vadd.f32 %v3504, %v3648
  %v3650 = vpop.f32.mrb[0].mxu0
  %3651 = vmatprep.mubr.f32.mxu0 0.0
  %3652 = vmatmul.mubr.f32.gmra.mrb[0].mxu0 %v1786
  %v3653 = vpop.f32.mrb[0].mxu0
  %v3654 = vadd.f32 %v3509, %v3653
  %v3655 = vpop.f32.mrb[0].mxu0
  %3656 = vmatprep.mubr.f32.mxu0 0.0
  %3657 = vmatmul.mubr.f32.gmra.mrb[0].mxu0 %v1789
  %v3658 = vpop.f32.mrb[0].mxu0
  %v3659 = vadd.f32 %v3514, %v3658
  %v3660 = vpop.f32.mrb[0].mxu0
  %3661 = vmatprep.mubr.f32.mxu0 0.0
  %3662 = vmatmul.mubr.f32.gmra.mrb[0].mxu0 %v1792
  %v3663 = vpop.f32.mrb[0].mxu0
  %v3664 = vadd.f32 %v3519, %v3663
  %v3665 = vpop.f32.mrb[0].mxu0
  %3666 = vmatprep.mubr.f32.mxu0 0.0
  %3667 = vmatmul.mubr.f32.gmra.mrb[0].mxu0 %v1795
  %v3668 = vpop.f32.mrb[0].mxu0
  %v3669 = vadd.f32 %v3524, %v3668
  %v3670 = vpop.f32.mrb[0].mxu0
  %3671 = vmatprep.mubr.f32.mxu0 0.0
  %3672 = vmatmul.mubr.f32.gmra.mrb[0].mxu0 %v1798
  %v3673 = vpop.f32.mrb[0].mxu0
  %v3674 = vadd.f32 %v3529, %v3673
  %v3675 = vpop.f32.mrb[0].mxu0
  %3676 = vmatprep.mubr.f32.mxu0 0.0
  %3677 = vmatmul.mubr.f32.gmra.mrb[0].mxu0 %v1801
  %v3678 = vpop.f32.mrb[0].mxu0
  %v3679 = vadd.f32 %v3534, %v3678
  %v3680 = vpop.f32.mrb[0].mxu0
  %3681 = vmatprep.mubr.f32.mxu0 0.0
  %3682 = vmatmul.mubr.f32.gmra.mrb[0].mxu0 %v1804
  %v3683 = vpop.f32.mrb[0].mxu0
  %v3684 = vadd.f32 %v3539, %v3683
  %v3685 = vpop.f32.mrb[0].mxu0
  %3686 = vmatprep.mubr.f32.mxu0 0.0
  %3687 = vmatmul.mubr.f32.gmra.mrb[0].mxu0 %v1807
  %v3688 = vpop.f32.mrb[0].mxu0
  %v3689 = vadd.f32 %v3544, %v3688
  %v3690 = vpop.f32.mrb[0].mxu0
  %3691 = vmatprep.mubr.f32.mxu0 0.0
  %3692 = vmatmul.mubr.f32.gmra.mrb[0].mxu0 %v1810
  %v3693 = vpop.f32.mrb[0].mxu0
  %v3694 = vadd.f32 %v3549, %v3693
  %v3695 = vpop.f32.mrb[0].mxu0
  %3696 = vmatprep.mubr.f32.mxu0 0.0
  %3697 = vmatmul.mubr.f32.gmra.mrb[0].mxu0 %v1813
  %v3698 = vpop.f32.mrb[0].mxu0
  %v3699 = vadd.f32 %v3554, %v3698
  %v3700 = vpop.f32.mrb[0].mxu0
  %3701 = vdwg.mxu0
  %s3702 = scalar_lea.vmem %s2, 112
  %v3703 = vld [vmem:[%s3702] sm:$0xff]
  %3704 = vmatprep.subr.mxu0 0.0
  %3705 = vmatpush1.msra.mxu0 %v3703
  %3706 = vmatprep.subr.mxu0 0.0
  %3707 = vmatpush1.msra.mxu0 0.0
  %3708 = vmatprep.subr.mxu0 0.0
  %3709 = vmatpush1.msra.mxu0 0.0
  %3710 = vmatprep.subr.mxu0 0.0
  %3711 = vmatpush1.msra.mxu0 0.0
  %3712 = vmatprep.subr.mxu0 0.0
  %3713 = vmatpush1.msra.mxu0 0.0
  %3714 = vmatprep.subr.mxu0 0.0
  %3715 = vmatpush1.msra.mxu0 0.0
  %3716 = vmatprep.subr.mxu0 0.0
  %3717 = vmatpush1.msra.mxu0 0.0
  %3718 = vmatprep.subr.mxu0 0.0
  %3719 = vmatpush1.msra.mxu0 0.0
  %3720 = vmatprep.subr.mxu0 0.0
  %3721 = vmatpush1.msra.mxu0 0.0
  %3722 = vmatprep.subr.mxu0 0.0
  %3723 = vmatpush1.msra.mxu0 0.0
  %3724 = vmatprep.subr.mxu0 0.0
  %3725 = vmatpush1.msra.mxu0 0.0
  %3726 = vmatprep.subr.mxu0 0.0
  %3727 = vmatpush1.msra.mxu0 0.0
  %3728 = vmatprep.subr.mxu0 0.0
  %3729 = vmatpush1.msra.mxu0 0.0
  %3730 = vmatprep.subr.mxu0 0.0
  %3731 = vmatpush1.msra.mxu0 0.0
  %3732 = vmatprep.subr.mxu0 0.0
  %3733 = vmatpush1.msra.mxu0 0.0
  %3734 = vmatprep.subr.mxu0 0.0
  %3735 = vmatpush1.msra.mxu0 0.0
  %3736 = vmatprep.subr.mxu0 0.0
  %3737 = vmatpush1.msra.mxu0 0.0
  %3738 = vmatprep.subr.mxu0 0.0
  %3739 = vmatpush1.msra.mxu0 0.0
  %3740 = vmatprep.subr.mxu0 0.0
  %3741 = vmatpush1.msra.mxu0 0.0
  %3742 = vmatprep.subr.mxu0 0.0
  %3743 = vmatpush1.msra.mxu0 0.0
  %3744 = vmatprep.subr.mxu0 0.0
  %3745 = vmatpush1.msra.mxu0 0.0
  %3746 = vmatprep.subr.mxu0 0.0
  %3747 = vmatpush1.msra.mxu0 0.0
  %3748 = vmatprep.subr.mxu0 0.0
  %3749 = vmatpush1.msra.mxu0 0.0
  %3750 = vmatprep.subr.mxu0 0.0
  %3751 = vmatpush1.msra.mxu0 0.0
  %3752 = vmatprep.subr.mxu0 0.0
  %3753 = vmatpush1.msra.mxu0 0.0
  %3754 = vmatprep.subr.mxu0 0.0
  %3755 = vmatpush1.msra.mxu0 0.0
  %3756 = vmatprep.subr.mxu0 0.0
  %3757 = vmatpush1.msra.mxu0 0.0
  %3758 = vmatprep.subr.mxu0 0.0
  %3759 = vmatpush1.msra.mxu0 0.0
  %3760 = vmatprep.subr.mxu0 0.0
  %3761 = vmatpush1.msra.mxu0 0.0
  %3762 = vmatprep.subr.mxu0 0.0
  %3763 = vmatpush1.msra.mxu0 0.0
  %3764 = vmatprep.subr.mxu0 0.0
  %3765 = vmatpush1.msra.mxu0 0.0
  %3766 = vmatprep.subr.mxu0 0.0
  %3767 = vmatpush1.msra.mxu0 0.0
  %3768 = vmatprep.mubr.f32.mxu0 0.0
  %3769 = vmatmul.mubr.f32.gmra.mrb[0].mxu0 %v3200
  %v3770 = vpop.f32.mrb[0].mxu0
  %v3771 = vadd.f32 0.0, %v3770
  %v3772 = vpop.f32.mrb[0].mxu0
  %3773 = vmatprep.mubr.f32.mxu0 0.0
  %3774 = vmatmul.mubr.f32.gmra.mrb[0].mxu0 %v3203
  %v3775 = vpop.f32.mrb[0].mxu0
  %v3776 = vadd.f32 0.0, %v3775
  %v3777 = vpop.f32.mrb[0].mxu0
  %3778 = vmatprep.mubr.f32.mxu0 0.0
  %3779 = vmatmul.mubr.f32.gmra.mrb[0].mxu0 %v3206
  %v3780 = vpop.f32.mrb[0].mxu0
  %v3781 = vadd.f32 0.0, %v3780
  %v3782 = vpop.f32.mrb[0].mxu0
  %3783 = vmatprep.mubr.f32.mxu0 0.0
  %3784 = vmatmul.mubr.f32.gmra.mrb[0].mxu0 %v3209
  %v3785 = vpop.f32.mrb[0].mxu0
  %v3786 = vadd.f32 0.0, %v3785
  %v3787 = vpop.f32.mrb[0].mxu0
  %3788 = vmatprep.mubr.f32.mxu0 0.0
  %3789 = vmatmul.mubr.f32.gmra.mrb[0].mxu0 %v3212
  %v3790 = vpop.f32.mrb[0].mxu0
  %v3791 = vadd.f32 0.0, %v3790
  %v3792 = vpop.f32.mrb[0].mxu0
  %3793 = vmatprep.mubr.f32.mxu0 0.0
  %3794 = vmatmul.mubr.f32.gmra.mrb[0].mxu0 %v3215
  %v3795 = vpop.f32.mrb[0].mxu0
  %v3796 = vadd.f32 0.0, %v3795
  %v3797 = vpop.f32.mrb[0].mxu0
  %3798 = vmatprep.mubr.f32.mxu0 0.0
  %3799 = vmatmul.mubr.f32.gmra.mrb[0].mxu0 %v3218
  %v3800 = vpop.f32.mrb[0].mxu0
  %v3801 = vadd.f32 0.0, %v3800
  %v3802 = vpop.f32.mrb[0].mxu0
  %3803 = vmatprep.mubr.f32.mxu0 0.0
  %3804 = vmatmul.mubr.f32.gmra.mrb[0].mxu0 %v3221
  %v3805 = vpop.f32.mrb[0].mxu0
  %v3806 = vadd.f32 0.0, %v3805
  %v3807 = vpop.f32.mrb[0].mxu0
  %3808 = vmatprep.mubr.f32.mxu0 0.0
  %3809 = vmatmul.mubr.f32.gmra.mrb[0].mxu0 %v3224
  %v3810 = vpop.f32.mrb[0].mxu0
  %v3811 = vadd.f32 0.0, %v3810
  %v3812 = vpop.f32.mrb[0].mxu0
  %3813 = vmatprep.mubr.f32.mxu0 0.0
  %3814 = vmatmul.mubr.f32.gmra.mrb[0].mxu0 %v3227
  %v3815 = vpop.f32.mrb[0].mxu0
  %v3816 = vadd.f32 0.0, %v3815
  %v3817 = vpop.f32.mrb[0].mxu0
  %3818 = vmatprep.mubr.f32.mxu0 0.0
  %3819 = vmatmul.mubr.f32.gmra.mrb[0].mxu0 %v3230
  %v3820 = vpop.f32.mrb[0].mxu0
  %v3821 = vadd.f32 0.0, %v3820
  %v3822 = vpop.f32.mrb[0].mxu0
  %3823 = vmatprep.mubr.f32.mxu0 0.0
  %3824 = vmatmul.mubr.f32.gmra.mrb[0].mxu0 %v3233
  %v3825 = vpop.f32.mrb[0].mxu0
  %v3826 = vadd.f32 0.0, %v3825
  %v3827 = vpop.f32.mrb[0].mxu0
  %3828 = vmatprep.mubr.f32.mxu0 0.0
  %3829 = vmatmul.mubr.f32.gmra.mrb[0].mxu0 %v3236
  %v3830 = vpop.f32.mrb[0].mxu0
  %v3831 = vadd.f32 0.0, %v3830
  %v3832 = vpop.f32.mrb[0].mxu0
  %3833 = vmatprep.mubr.f32.mxu0 0.0
  %3834 = vmatmul.mubr.f32.gmra.mrb[0].mxu0 %v3239
  %v3835 = vpop.f32.mrb[0].mxu0
  %v3836 = vadd.f32 0.0, %v3835
  %v3837 = vpop.f32.mrb[0].mxu0
  %3838 = vmatprep.mubr.f32.mxu0 0.0
  %3839 = vmatmul.mubr.f32.gmra.mrb[0].mxu0 %v3242
  %v3840 = vpop.f32.mrb[0].mxu0
  %v3841 = vadd.f32 0.0, %v3840
  %v3842 = vpop.f32.mrb[0].mxu0
  %3843 = vmatprep.mubr.f32.mxu0 0.0
  %3844 = vmatmul.mubr.f32.gmra.mrb[0].mxu0 %v3245
  %v3845 = vpop.f32.mrb[0].mxu0
  %v3846 = vadd.f32 0.0, %v3845
  %v3847 = vpop.f32.mrb[0].mxu0
  %3848 = vdwg.mxu0
  %v3849 = vadd.f32 %v3624, %v3771
  %v3850 = vadd.f32 %v3629, %v3776
  %v3851 = vadd.f32 %v3634, %v3781
  %v3852 = vadd.f32 %v3639, %v3786
  %v3853 = vadd.f32 %v3644, %v3791
  %v3854 = vadd.f32 %v3649, %v3796
  %v3855 = vadd.f32 %v3654, %v3801
  %v3856 = vadd.f32 %v3659, %v3806
  %v3857 = vadd.f32 %v3664, %v3811
  %v3858 = vadd.f32 %v3669, %v3816
  %v3859 = vadd.f32 %v3674, %v3821
  %v3860 = vadd.f32 %v3679, %v3826
  %v3861 = vadd.f32 %v3684, %v3831
  %v3862 = vadd.f32 %v3689, %v3836
  %v3863 = vadd.f32 %v3694, %v3841
  %v3864 = vadd.f32 %v3699, %v3846
  %s3865 = scalar_lea.vmem %s2, 120
  %v3866 = vld [vmem:[%s3865] sm:$0xff]
  %v3868 = vsel %vm945, %v1149, 0
  %v3871 = vsel %vm945, %v1150, 0
  %v3874 = vsel %vm945, %v1151, 0
  %v3877 = vsel %vm945, %v1152, 0
  %v3880 = vsel %vm945, %v1153, 0
  %v3883 = vsel %vm945, %v1154, 0
  %v3886 = vsel %vm945, %v1155, 0
  %v3889 = vsel %vm945, %v1156, 0
  %v3892 = vsel %vm945, %v1157, 0
  %v3895 = vsel %vm945, %v1158, 0
  %v3898 = vsel %vm945, %v1159, 0
  %v3901 = vsel %vm945, %v1160, 0
  %v3904 = vsel %vm945, %v1161, 0
  %v3907 = vsel %vm945, %v1162, 0
  %v3910 = vsel %vm945, %v1163, 0
  %v3913 = vsel %vm945, %v1164, 0
  %3915 = vmatprep.subr.mxu0 0.0
  %3916 = vmatpush1.msra.mxu0 %v3866
  %3917 = vmatprep.subr.mxu0 0.0
  %3918 = vmatpush1.msra.mxu0 0.0
  %3919 = vmatprep.subr.mxu0 0.0
  %3920 = vmatpush1.msra.mxu0 0.0
  %3921 = vmatprep.subr.mxu0 0.0
  %3922 = vmatpush1.msra.mxu0 0.0
  %3923 = vmatprep.subr.mxu0 0.0
  %3924 = vmatpush1.msra.mxu0 0.0
  %3925 = vmatprep.subr.mxu0 0.0
  %3926 = vmatpush1.msra.mxu0 0.0
  %3927 = vmatprep.subr.mxu0 0.0
  %3928 = vmatpush1.msra.mxu0 0.0
  %3929 = vmatprep.subr.mxu0 0.0
  %3930 = vmatpush1.msra.mxu0 0.0
  %3931 = vmatprep.subr.mxu0 0.0
  %3932 = vmatpush1.msra.mxu0 0.0
  %3933 = vmatprep.subr.mxu0 0.0
  %3934 = vmatpush1.msra.mxu0 0.0
  %3935 = vmatprep.subr.mxu0 0.0
  %3936 = vmatpush1.msra.mxu0 0.0
  %3937 = vmatprep.subr.mxu0 0.0
  %3938 = vmatpush1.msra.mxu0 0.0
  %3939 = vmatprep.subr.mxu0 0.0
  %3940 = vmatpush1.msra.mxu0 0.0
  %3941 = vmatprep.subr.mxu0 0.0
  %3942 = vmatpush1.msra.mxu0 0.0
  %3943 = vmatprep.subr.mxu0 0.0
  %3944 = vmatpush1.msra.mxu0 0.0
  %3945 = vmatprep.subr.mxu0 0.0
  %3946 = vmatpush1.msra.mxu0 0.0
  %3947 = vmatprep.subr.mxu0 0.0
  %3948 = vmatpush1.msra.mxu0 0.0
  %3949 = vmatprep.subr.mxu0 0.0
  %3950 = vmatpush1.msra.mxu0 0.0
  %3951 = vmatprep.subr.mxu0 0.0
  %3952 = vmatpush1.msra.mxu0 0.0
  %3953 = vmatprep.subr.mxu0 0.0
  %3954 = vmatpush1.msra.mxu0 0.0
  %3955 = vmatprep.subr.mxu0 0.0
  %3956 = vmatpush1.msra.mxu0 0.0
  %3957 = vmatprep.subr.mxu0 0.0
  %3958 = vmatpush1.msra.mxu0 0.0
  %3959 = vmatprep.subr.mxu0 0.0
  %3960 = vmatpush1.msra.mxu0 0.0
  %3961 = vmatprep.subr.mxu0 0.0
  %3962 = vmatpush1.msra.mxu0 0.0
  %3963 = vmatprep.subr.mxu0 0.0
  %3964 = vmatpush1.msra.mxu0 0.0
  %3965 = vmatprep.subr.mxu0 0.0
  %3966 = vmatpush1.msra.mxu0 0.0
  %3967 = vmatprep.subr.mxu0 0.0
  %3968 = vmatpush1.msra.mxu0 0.0
  %3969 = vmatprep.subr.mxu0 0.0
  %3970 = vmatpush1.msra.mxu0 0.0
  %3971 = vmatprep.subr.mxu0 0.0
  %3972 = vmatpush1.msra.mxu0 0.0
  %3973 = vmatprep.subr.mxu0 0.0
  %3974 = vmatpush1.msra.mxu0 0.0
  %3975 = vmatprep.subr.mxu0 0.0
  %3976 = vmatpush1.msra.mxu0 0.0
  %3977 = vmatprep.subr.mxu0 0.0
  %3978 = vmatpush1.msra.mxu0 0.0
  %3979 = vmatprep.mubr.f32.mxu0 0.0
  %3980 = vmatmul.mubr.f32.gmra.mrb[0].mxu0 %v3868
  %v3981 = vpop.f32.mrb[0].mxu0
  %v3982 = vadd.f32 0.0, %v3981
  %v3983 = vpop.f32.mrb[0].mxu0
  %3984 = vmatprep.mubr.f32.mxu0 0.0
  %3985 = vmatmul.mubr.f32.gmra.mrb[0].mxu0 %v3871
  %v3986 = vpop.f32.mrb[0].mxu0
  %v3987 = vadd.f32 0.0, %v3986
  %v3988 = vpop.f32.mrb[0].mxu0
  %3989 = vmatprep.mubr.f32.mxu0 0.0
  %3990 = vmatmul.mubr.f32.gmra.mrb[0].mxu0 %v3874
  %v3991 = vpop.f32.mrb[0].mxu0
  %v3992 = vadd.f32 0.0, %v3991
  %v3993 = vpop.f32.mrb[0].mxu0
  %3994 = vmatprep.mubr.f32.mxu0 0.0
  %3995 = vmatmul.mubr.f32.gmra.mrb[0].mxu0 %v3877
  %v3996 = vpop.f32.mrb[0].mxu0
  %v3997 = vadd.f32 0.0, %v3996
  %v3998 = vpop.f32.mrb[0].mxu0
  %3999 = vmatprep.mubr.f32.mxu0 0.0
  %4000 = vmatmul.mubr.f32.gmra.mrb[0].mxu0 %v3880
  %v4001 = vpop.f32.mrb[0].mxu0
  %v4002 = vadd.f32 0.0, %v4001
  %v4003 = vpop.f32.mrb[0].mxu0
  %4004 = vmatprep.mubr.f32.mxu0 0.0
  %4005 = vmatmul.mubr.f32.gmra.mrb[0].mxu0 %v3883
  %v4006 = vpop.f32.mrb[0].mxu0
  %v4007 = vadd.f32 0.0, %v4006
  %v4008 = vpop.f32.mrb[0].mxu0
  %4009 = vmatprep.mubr.f32.mxu0 0.0
  %4010 = vmatmul.mubr.f32.gmra.mrb[0].mxu0 %v3886
  %v4011 = vpop.f32.mrb[0].mxu0
  %v4012 = vadd.f32 0.0, %v4011
  %v4013 = vpop.f32.mrb[0].mxu0
  %4014 = vmatprep.mubr.f32.mxu0 0.0
  %4015 = vmatmul.mubr.f32.gmra.mrb[0].mxu0 %v3889
  %v4016 = vpop.f32.mrb[0].mxu0
  %v4017 = vadd.f32 0.0, %v4016
  %v4018 = vpop.f32.mrb[0].mxu0
  %4019 = vmatprep.mubr.f32.mxu0 0.0
  %4020 = vmatmul.mubr.f32.gmra.mrb[0].mxu0 %v3892
  %v4021 = vpop.f32.mrb[0].mxu0
  %v4022 = vadd.f32 0.0, %v4021
  %v4023 = vpop.f32.mrb[0].mxu0
  %4024 = vmatprep.mubr.f32.mxu0 0.0
  %4025 = vmatmul.mubr.f32.gmra.mrb[0].mxu0 %v3895
  %v4026 = vpop.f32.mrb[0].mxu0
  %v4027 = vadd.f32 0.0, %v4026
  %v4028 = vpop.f32.mrb[0].mxu0
  %4029 = vmatprep.mubr.f32.mxu0 0.0
  %4030 = vmatmul.mubr.f32.gmra.mrb[0].mxu0 %v3898
  %v4031 = vpop.f32.mrb[0].mxu0
  %v4032 = vadd.f32 0.0, %v4031
  %v4033 = vpop.f32.mrb[0].mxu0
  %4034 = vmatprep.mubr.f32.mxu0 0.0
  %4035 = vmatmul.mubr.f32.gmra.mrb[0].mxu0 %v3901
  %v4036 = vpop.f32.mrb[0].mxu0
  %v4037 = vadd.f32 0.0, %v4036
  %v4038 = vpop.f32.mrb[0].mxu0
  %4039 = vmatprep.mubr.f32.mxu0 0.0
  %4040 = vmatmul.mubr.f32.gmra.mrb[0].mxu0 %v3904
  %v4041 = vpop.f32.mrb[0].mxu0
  %v4042 = vadd.f32 0.0, %v4041
  %v4043 = vpop.f32.mrb[0].mxu0
  %4044 = vmatprep.mubr.f32.mxu0 0.0
  %4045 = vmatmul.mubr.f32.gmra.mrb[0].mxu0 %v3907
  %v4046 = vpop.f32.mrb[0].mxu0
  %v4047 = vadd.f32 0.0, %v4046
  %v4048 = vpop.f32.mrb[0].mxu0
  %4049 = vmatprep.mubr.f32.mxu0 0.0
  %4050 = vmatmul.mubr.f32.gmra.mrb[0].mxu0 %v3910
  %v4051 = vpop.f32.mrb[0].mxu0
  %v4052 = vadd.f32 0.0, %v4051
  %v4053 = vpop.f32.mrb[0].mxu0
  %4054 = vmatprep.mubr.f32.mxu0 0.0
  %4055 = vmatmul.mubr.f32.gmra.mrb[0].mxu0 %v3913
  %v4056 = vpop.f32.mrb[0].mxu0
  %v4057 = vadd.f32 0.0, %v4056
  %v4058 = vpop.f32.mrb[0].mxu0
  %4059 = vdwg.mxu0
  %v4060 = vadd.f32 %v3849, %v3982
  %v4061 = vadd.f32 %v3850, %v3987
  %v4062 = vadd.f32 %v3851, %v3992
  %v4063 = vadd.f32 %v3852, %v3997
  %v4064 = vadd.f32 %v3853, %v4002
  %v4065 = vadd.f32 %v3854, %v4007
  %v4066 = vadd.f32 %v3855, %v4012
  %v4067 = vadd.f32 %v3856, %v4017
  %v4068 = vadd.f32 %v3857, %v4022
  %v4069 = vadd.f32 %v3858, %v4027
  %v4070 = vadd.f32 %v3859, %v4032
  %v4071 = vadd.f32 %v3860, %v4037
  %v4072 = vadd.f32 %v3861, %v4042
  %v4073 = vadd.f32 %v3862, %v4047
  %v4074 = vadd.f32 %v3863, %v4052
  %v4075 = vadd.f32 %v3864, %v4057
  %vm4076 = vcmask 31744
  %v4077 = vsel %vm4076, %v1960, 0.0
  %v4078 = vsel %vm4076, %v1961, 0.0
  %v4079 = vadd.f32 %v4077, %v4078
  %v4080 = vsel %vm4076, %v1962, 0.0
  %v4081 = vadd.f32 %v4079, %v4080
  %v4082 = vsel %vm4076, %v1963, 0.0
  %v4083 = vadd.f32 %v4081, %v4082
  %v4084 = vsel %vm4076, %v1964, 0.0
  %v4085 = vadd.f32 %v4083, %v4084
  %v4086 = vsel %vm4076, %v1965, 0.0
  %v4087 = vadd.f32 %v4085, %v4086
  %v4088 = vsel %vm4076, %v1966, 0.0
  %v4089 = vadd.f32 %v4087, %v4088
  %v4090 = vsel %vm4076, %v1967, 0.0
  %v4091 = vadd.f32 %v4089, %v4090
  %v4092 = vsel %vm4076, %v1968, 0.0
  %v4093 = vadd.f32 %v4091, %v4092
  %v4094 = vsel %vm4076, %v1969, 0.0
  %v4095 = vadd.f32 %v4093, %v4094
  %v4096 = vsel %vm4076, %v1970, 0.0
  %v4097 = vadd.f32 %v4095, %v4096
  %v4098 = vsel %vm4076, %v1971, 0.0
  %v4099 = vadd.f32 %v4097, %v4098
  %v4100 = vsel %vm4076, %v1972, 0.0
  %v4101 = vadd.f32 %v4099, %v4100
  %v4102 = vsel %vm4076, %v1973, 0.0
  %v4103 = vadd.f32 %v4101, %v4102
  %v4104 = vsel %vm4076, %v1974, 0.0
  %v4105 = vadd.f32 %v4103, %v4104
  %v4106 = vsel %vm4076, %v1975, 0.0
  %v4107 = vadd.f32 %v4105, %v4106
  %v4108 = vrot.slane %v4107, 4
  %v4109 = vadd.f32 %v4107, %v4108
  %v4110 = vrot.slane %v4109, 2
  %v4111 = vadd.f32 %v4109, %v4110
  %v4112 = vrot.slane %v4111, 1
  %v4113 = vadd.f32 %v4111, %v4112
  %v4114 = vsel %vm4076, %v2676, 0.0
  %v4115 = vsel %vm4076, %v2677, 0.0
  %v4116 = vadd.f32 %v4114, %v4115
  %v4117 = vsel %vm4076, %v2678, 0.0
  %v4118 = vadd.f32 %v4116, %v4117
  %v4119 = vsel %vm4076, %v2679, 0.0
  %v4120 = vadd.f32 %v4118, %v4119
  %v4121 = vsel %vm4076, %v2680, 0.0
  %v4122 = vadd.f32 %v4120, %v4121
  %v4123 = vsel %vm4076, %v2681, 0.0
  %v4124 = vadd.f32 %v4122, %v4123
  %v4125 = vsel %vm4076, %v2682, 0.0
  %v4126 = vadd.f32 %v4124, %v4125
  %v4127 = vsel %vm4076, %v2683, 0.0
  %v4128 = vadd.f32 %v4126, %v4127
  %v4129 = vsel %vm4076, %v2684, 0.0
  %v4130 = vadd.f32 %v4128, %v4129
  %v4131 = vsel %vm4076, %v2685, 0.0
  %v4132 = vadd.f32 %v4130, %v4131
  %v4133 = vsel %vm4076, %v2686, 0.0
  %v4134 = vadd.f32 %v4132, %v4133
  %v4135 = vsel %vm4076, %v2687, 0.0
  %v4136 = vadd.f32 %v4134, %v4135
  %v4137 = vsel %vm4076, %v2688, 0.0
  %v4138 = vadd.f32 %v4136, %v4137
  %v4139 = vsel %vm4076, %v2689, 0.0
  %v4140 = vadd.f32 %v4138, %v4139
  %v4141 = vsel %vm4076, %v2690, 0.0
  %v4142 = vadd.f32 %v4140, %v4141
  %v4143 = vsel %vm4076, %v2691, 0.0
  %v4144 = vadd.f32 %v4142, %v4143
  %v4145 = vrot.slane %v4144, 4
  %v4146 = vadd.f32 %v4144, %v4145
  %v4147 = vrot.slane %v4146, 2
  %v4148 = vadd.f32 %v4146, %v4147
  %v4149 = vrot.slane %v4148, 1
  %v4150 = vadd.f32 %v4148, %v4149
  %v4151 = vadd.f32 %v4113, %v4150
  %v4152 = vsel %vm4076, %v3392, 0.0
  %v4153 = vsel %vm4076, %v3393, 0.0
  %v4154 = vadd.f32 %v4152, %v4153
  %v4155 = vsel %vm4076, %v3394, 0.0
  %v4156 = vadd.f32 %v4154, %v4155
  %v4157 = vsel %vm4076, %v3395, 0.0
  %v4158 = vadd.f32 %v4156, %v4157
  %v4159 = vsel %vm4076, %v3396, 0.0
  %v4160 = vadd.f32 %v4158, %v4159
  %v4161 = vsel %vm4076, %v3397, 0.0
  %v4162 = vadd.f32 %v4160, %v4161
  %v4163 = vsel %vm4076, %v3398, 0.0
  %v4164 = vadd.f32 %v4162, %v4163
  %v4165 = vsel %vm4076, %v3399, 0.0
  %v4166 = vadd.f32 %v4164, %v4165
  %v4167 = vsel %vm4076, %v3400, 0.0
  %v4168 = vadd.f32 %v4166, %v4167
  %v4169 = vsel %vm4076, %v3401, 0.0
  %v4170 = vadd.f32 %v4168, %v4169
  %v4171 = vsel %vm4076, %v3402, 0.0
  %v4172 = vadd.f32 %v4170, %v4171
  %v4173 = vsel %vm4076, %v3403, 0.0
  %v4174 = vadd.f32 %v4172, %v4173
  %v4175 = vsel %vm4076, %v3404, 0.0
  %v4176 = vadd.f32 %v4174, %v4175
  %v4177 = vsel %vm4076, %v3405, 0.0
  %v4178 = vadd.f32 %v4176, %v4177
  %v4179 = vsel %vm4076, %v3406, 0.0
  %v4180 = vadd.f32 %v4178, %v4179
  %v4181 = vsel %vm4076, %v3407, 0.0
  %v4182 = vadd.f32 %v4180, %v4181
  %v4183 = vrot.slane %v4182, 4
  %v4184 = vadd.f32 %v4182, %v4183
  %v4185 = vrot.slane %v4184, 2
  %v4186 = vadd.f32 %v4184, %v4185
  %v4187 = vrot.slane %v4186, 1
  %v4188 = vadd.f32 %v4186, %v4187
  %v4189 = vadd.f32 %v4151, %v4188
  %v4190 = vsel %vm4076, %v4060, 0.0
  %v4191 = vsel %vm4076, %v4061, 0.0
  %v4192 = vadd.f32 %v4190, %v4191
  %v4193 = vsel %vm4076, %v4062, 0.0
  %v4194 = vadd.f32 %v4192, %v4193
  %v4195 = vsel %vm4076, %v4063, 0.0
  %v4196 = vadd.f32 %v4194, %v4195
  %v4197 = vsel %vm4076, %v4064, 0.0
  %v4198 = vadd.f32 %v4196, %v4197
  %v4199 = vsel %vm4076, %v4065, 0.0
  %v4200 = vadd.f32 %v4198, %v4199
  %v4201 = vsel %vm4076, %v4066, 0.0
  %v4202 = vadd.f32 %v4200, %v4201
  %v4203 = vsel %vm4076, %v4067, 0.0
  %v4204 = vadd.f32 %v4202, %v4203
  %v4205 = vsel %vm4076, %v4068, 0.0
  %v4206 = vadd.f32 %v4204, %v4205
  %v4207 = vsel %vm4076, %v4069, 0.0
  %v4208 = vadd.f32 %v4206, %v4207
  %v4209 = vsel %vm4076, %v4070, 0.0
  %v4210 = vadd.f32 %v4208, %v4209
  %v4211 = vsel %vm4076, %v4071, 0.0
  %v4212 = vadd.f32 %v4210, %v4211
  %v4213 = vsel %vm4076, %v4072, 0.0
  %v4214 = vadd.f32 %v4212, %v4213
  %v4215 = vsel %vm4076, %v4073, 0.0
  %v4216 = vadd.f32 %v4214, %v4215
  %v4217 = vsel %vm4076, %v4074, 0.0
  %v4218 = vadd.f32 %v4216, %v4217
  %v4219 = vsel %vm4076, %v4075, 0.0
  %v4220 = vadd.f32 %v4218, %v4219
  %v4221 = vrot.slane %v4220, 4
  %v4222 = vadd.f32 %v4220, %v4221
  %v4223 = vrot.slane %v4222, 2
  %v4224 = vadd.f32 %v4222, %v4223
  %v4225 = vrot.slane %v4224, 1
  %v4226 = vadd.f32 %v4224, %v4225
  %v4227 = vadd.f32 %v4189, %v4226
  %v4228 = vrcp.pop 512.0
  %v4229 = vmul.f32 %v4227, %v4228
  %v4230 = vsub.f32 %v1960, %v4229
  %v4231 = vsub.f32 %v1961, %v4229
  %v4232 = vsub.f32 %v1962, %v4229
  %v4233 = vsub.f32 %v1963, %v4229
  %v4234 = vsub.f32 %v1964, %v4229
  %v4235 = vsub.f32 %v1965, %v4229
  %v4236 = vsub.f32 %v1966, %v4229
  %v4237 = vsub.f32 %v1967, %v4229
  %v4238 = vsub.f32 %v1968, %v4229
  %v4239 = vsub.f32 %v1969, %v4229
  %v4240 = vsub.f32 %v1970, %v4229
  %v4241 = vsub.f32 %v1971, %v4229
  %v4242 = vsub.f32 %v1972, %v4229
  %v4243 = vsub.f32 %v1973, %v4229
  %v4244 = vsub.f32 %v1974, %v4229
  %v4245 = vsub.f32 %v1975, %v4229
  %v4246 = vmul.f32 %v4230, %v4230
  %v4247 = vmul.f32 %v4231, %v4231
  %v4248 = vmul.f32 %v4232, %v4232
  %v4249 = vmul.f32 %v4233, %v4233
  %v4250 = vmul.f32 %v4234, %v4234
  %v4251 = vmul.f32 %v4235, %v4235
  %v4252 = vmul.f32 %v4236, %v4236
  %v4253 = vmul.f32 %v4237, %v4237
  %v4254 = vmul.f32 %v4238, %v4238
  %v4255 = vmul.f32 %v4239, %v4239
  %v4256 = vmul.f32 %v4240, %v4240
  %v4257 = vmul.f32 %v4241, %v4241
  %v4258 = vmul.f32 %v4242, %v4242
  %v4259 = vmul.f32 %v4243, %v4243
  %v4260 = vmul.f32 %v4244, %v4244
  %v4261 = vmul.f32 %v4245, %v4245
  %v4262 = vsel %vm4076, %v4246, 0.0
  %v4263 = vsel %vm4076, %v4247, 0.0
  %v4264 = vadd.f32 %v4262, %v4263
  %v4265 = vsel %vm4076, %v4248, 0.0
  %v4266 = vadd.f32 %v4264, %v4265
  %v4267 = vsel %vm4076, %v4249, 0.0
  %v4268 = vadd.f32 %v4266, %v4267
  %v4269 = vsel %vm4076, %v4250, 0.0
  %v4270 = vadd.f32 %v4268, %v4269
  %v4271 = vsel %vm4076, %v4251, 0.0
  %v4272 = vadd.f32 %v4270, %v4271
  %v4273 = vsel %vm4076, %v4252, 0.0
  %v4274 = vadd.f32 %v4272, %v4273
  %v4275 = vsel %vm4076, %v4253, 0.0
  %v4276 = vadd.f32 %v4274, %v4275
  %v4277 = vsel %vm4076, %v4254, 0.0
  %v4278 = vadd.f32 %v4276, %v4277
  %v4279 = vsel %vm4076, %v4255, 0.0
  %v4280 = vadd.f32 %v4278, %v4279
  %v4281 = vsel %vm4076, %v4256, 0.0
  %v4282 = vadd.f32 %v4280, %v4281
  %v4283 = vsel %vm4076, %v4257, 0.0
  %v4284 = vadd.f32 %v4282, %v4283
  %v4285 = vsel %vm4076, %v4258, 0.0
  %v4286 = vadd.f32 %v4284, %v4285
  %v4287 = vsel %vm4076, %v4259, 0.0
  %v4288 = vadd.f32 %v4286, %v4287
  %v4289 = vsel %vm4076, %v4260, 0.0
  %v4290 = vadd.f32 %v4288, %v4289
  %v4291 = vsel %vm4076, %v4261, 0.0
  %v4292 = vadd.f32 %v4290, %v4291
  %v4293 = vrot.slane %v4292, 4
  %v4294 = vadd.f32 %v4292, %v4293
  %v4295 = vrot.slane %v4294, 2
  %v4296 = vadd.f32 %v4294, %v4295
  %v4297 = vrot.slane %v4296, 1
  %v4298 = vadd.f32 %v4296, %v4297
  %v4299 = vsub.f32 %v2676, %v4229
  %v4300 = vsub.f32 %v2677, %v4229
  %v4301 = vsub.f32 %v2678, %v4229
  %v4302 = vsub.f32 %v2679, %v4229
  %v4303 = vsub.f32 %v2680, %v4229
  %v4304 = vsub.f32 %v2681, %v4229
  %v4305 = vsub.f32 %v2682, %v4229
  %v4306 = vsub.f32 %v2683, %v4229
  %v4307 = vsub.f32 %v2684, %v4229
  %v4308 = vsub.f32 %v2685, %v4229
  %v4309 = vsub.f32 %v2686, %v4229
  %v4310 = vsub.f32 %v2687, %v4229
  %v4311 = vsub.f32 %v2688, %v4229
  %v4312 = vsub.f32 %v2689, %v4229
  %v4313 = vsub.f32 %v2690, %v4229
  %v4314 = vsub.f32 %v2691, %v4229
  %v4315 = vmul.f32 %v4299, %v4299
  %v4316 = vmul.f32 %v4300, %v4300
  %v4317 = vmul.f32 %v4301, %v4301
  %v4318 = vmul.f32 %v4302, %v4302
  %v4319 = vmul.f32 %v4303, %v4303
  %v4320 = vmul.f32 %v4304, %v4304
  %v4321 = vmul.f32 %v4305, %v4305
  %v4322 = vmul.f32 %v4306, %v4306
  %v4323 = vmul.f32 %v4307, %v4307
  %v4324 = vmul.f32 %v4308, %v4308
  %v4325 = vmul.f32 %v4309, %v4309
  %v4326 = vmul.f32 %v4310, %v4310
  %v4327 = vmul.f32 %v4311, %v4311
  %v4328 = vmul.f32 %v4312, %v4312
  %v4329 = vmul.f32 %v4313, %v4313
  %v4330 = vmul.f32 %v4314, %v4314
  %v4331 = vsel %vm4076, %v4315, 0.0
  %v4332 = vsel %vm4076, %v4316, 0.0
  %v4333 = vadd.f32 %v4331, %v4332
  %v4334 = vsel %vm4076, %v4317, 0.0
  %v4335 = vadd.f32 %v4333, %v4334
  %v4336 = vsel %vm4076, %v4318, 0.0
  %v4337 = vadd.f32 %v4335, %v4336
  %v4338 = vsel %vm4076, %v4319, 0.0
  %v4339 = vadd.f32 %v4337, %v4338
  %v4340 = vsel %vm4076, %v4320, 0.0
  %v4341 = vadd.f32 %v4339, %v4340
  %v4342 = vsel %vm4076, %v4321, 0.0
  %v4343 = vadd.f32 %v4341, %v4342
  %v4344 = vsel %vm4076, %v4322, 0.0
  %v4345 = vadd.f32 %v4343, %v4344
  %v4346 = vsel %vm4076, %v4323, 0.0
  %v4347 = vadd.f32 %v4345, %v4346
  %v4348 = vsel %vm4076, %v4324, 0.0
  %v4349 = vadd.f32 %v4347, %v4348
  %v4350 = vsel %vm4076, %v4325, 0.0
  %v4351 = vadd.f32 %v4349, %v4350
  %v4352 = vsel %vm4076, %v4326, 0.0
  %v4353 = vadd.f32 %v4351, %v4352
  %v4354 = vsel %vm4076, %v4327, 0.0
  %v4355 = vadd.f32 %v4353, %v4354
  %v4356 = vsel %vm4076, %v4328, 0.0
  %v4357 = vadd.f32 %v4355, %v4356
  %v4358 = vsel %vm4076, %v4329, 0.0
  %v4359 = vadd.f32 %v4357, %v4358
  %v4360 = vsel %vm4076, %v4330, 0.0
  %v4361 = vadd.f32 %v4359, %v4360
  %v4362 = vrot.slane %v4361, 4
  %v4363 = vadd.f32 %v4361, %v4362
  %v4364 = vrot.slane %v4363, 2
  %v4365 = vadd.f32 %v4363, %v4364
  %v4366 = vrot.slane %v4365, 1
  %v4367 = vadd.f32 %v4365, %v4366
  %v4368 = vadd.f32 %v4298, %v4367
  %v4369 = vsub.f32 %v3392, %v4229
  %v4370 = vsub.f32 %v3393, %v4229
  %v4371 = vsub.f32 %v3394, %v4229
  %v4372 = vsub.f32 %v3395, %v4229
  %v4373 = vsub.f32 %v3396, %v4229
  %v4374 = vsub.f32 %v3397, %v4229
  %v4375 = vsub.f32 %v3398, %v4229
  %v4376 = vsub.f32 %v3399, %v4229
  %v4377 = vsub.f32 %v3400, %v4229
  %v4378 = vsub.f32 %v3401, %v4229
  %v4379 = vsub.f32 %v3402, %v4229
  %v4380 = vsub.f32 %v3403, %v4229
  %v4381 = vsub.f32 %v3404, %v4229
  %v4382 = vsub.f32 %v3405, %v4229
  %v4383 = vsub.f32 %v3406, %v4229
  %v4384 = vsub.f32 %v3407, %v4229
  %v4385 = vmul.f32 %v4369, %v4369
  %v4386 = vmul.f32 %v4370, %v4370
  %v4387 = vmul.f32 %v4371, %v4371
  %v4388 = vmul.f32 %v4372, %v4372
  %v4389 = vmul.f32 %v4373, %v4373
  %v4390 = vmul.f32 %v4374, %v4374
  %v4391 = vmul.f32 %v4375, %v4375
  %v4392 = vmul.f32 %v4376, %v4376
  %v4393 = vmul.f32 %v4377, %v4377
  %v4394 = vmul.f32 %v4378, %v4378
  %v4395 = vmul.f32 %v4379, %v4379
  %v4396 = vmul.f32 %v4380, %v4380
  %v4397 = vmul.f32 %v4381, %v4381
  %v4398 = vmul.f32 %v4382, %v4382
  %v4399 = vmul.f32 %v4383, %v4383
  %v4400 = vmul.f32 %v4384, %v4384
  %v4401 = vsel %vm4076, %v4385, 0.0
  %v4402 = vsel %vm4076, %v4386, 0.0
  %v4403 = vadd.f32 %v4401, %v4402
  %v4404 = vsel %vm4076, %v4387, 0.0
  %v4405 = vadd.f32 %v4403, %v4404
  %v4406 = vsel %vm4076, %v4388, 0.0
  %v4407 = vadd.f32 %v4405, %v4406
  %v4408 = vsel %vm4076, %v4389, 0.0
  %v4409 = vadd.f32 %v4407, %v4408
  %v4410 = vsel %vm4076, %v4390, 0.0
  %v4411 = vadd.f32 %v4409, %v4410
  %v4412 = vsel %vm4076, %v4391, 0.0
  %v4413 = vadd.f32 %v4411, %v4412
  %v4414 = vsel %vm4076, %v4392, 0.0
  %v4415 = vadd.f32 %v4413, %v4414
  %v4416 = vsel %vm4076, %v4393, 0.0
  %v4417 = vadd.f32 %v4415, %v4416
  %v4418 = vsel %vm4076, %v4394, 0.0
  %v4419 = vadd.f32 %v4417, %v4418
  %v4420 = vsel %vm4076, %v4395, 0.0
  %v4421 = vadd.f32 %v4419, %v4420
  %v4422 = vsel %vm4076, %v4396, 0.0
  %v4423 = vadd.f32 %v4421, %v4422
  %v4424 = vsel %vm4076, %v4397, 0.0
  %v4425 = vadd.f32 %v4423, %v4424
  %v4426 = vsel %vm4076, %v4398, 0.0
  %v4427 = vadd.f32 %v4425, %v4426
  %v4428 = vsel %vm4076, %v4399, 0.0
  %v4429 = vadd.f32 %v4427, %v4428
  %v4430 = vsel %vm4076, %v4400, 0.0
  %v4431 = vadd.f32 %v4429, %v4430
  %v4432 = vrot.slane %v4431, 4
  %v4433 = vadd.f32 %v4431, %v4432
  %v4434 = vrot.slane %v4433, 2
  %v4435 = vadd.f32 %v4433, %v4434
  %v4436 = vrot.slane %v4435, 1
  %v4437 = vadd.f32 %v4435, %v4436
  %v4438 = vadd.f32 %v4368, %v4437
  %v4439 = vsub.f32 %v4060, %v4229
  %v4440 = vsub.f32 %v4061, %v4229
  %v4441 = vsub.f32 %v4062, %v4229
  %v4442 = vsub.f32 %v4063, %v4229
  %v4443 = vsub.f32 %v4064, %v4229
  %v4444 = vsub.f32 %v4065, %v4229
  %v4445 = vsub.f32 %v4066, %v4229
  %v4446 = vsub.f32 %v4067, %v4229
  %v4447 = vsub.f32 %v4068, %v4229
  %v4448 = vsub.f32 %v4069, %v4229
  %v4449 = vsub.f32 %v4070, %v4229
  %v4450 = vsub.f32 %v4071, %v4229
  %v4451 = vsub.f32 %v4072, %v4229
  %v4452 = vsub.f32 %v4073, %v4229
  %v4453 = vsub.f32 %v4074, %v4229
  %v4454 = vsub.f32 %v4075, %v4229
  %v4455 = vmul.f32 %v4439, %v4439
  %v4456 = vmul.f32 %v4440, %v4440
  %v4457 = vmul.f32 %v4441, %v4441
  %v4458 = vmul.f32 %v4442, %v4442
  %v4459 = vmul.f32 %v4443, %v4443
  %v4460 = vmul.f32 %v4444, %v4444
  %v4461 = vmul.f32 %v4445, %v4445
  %v4462 = vmul.f32 %v4446, %v4446
  %v4463 = vmul.f32 %v4447, %v4447
  %v4464 = vmul.f32 %v4448, %v4448
  %v4465 = vmul.f32 %v4449, %v4449
  %v4466 = vmul.f32 %v4450, %v4450
  %v4467 = vmul.f32 %v4451, %v4451
  %v4468 = vmul.f32 %v4452, %v4452
  %v4469 = vmul.f32 %v4453, %v4453
  %v4470 = vmul.f32 %v4454, %v4454
  %v4471 = vsel %vm4076, %v4455, 0.0
  %v4472 = vsel %vm4076, %v4456, 0.0
  %v4473 = vadd.f32 %v4471, %v4472
  %v4474 = vsel %vm4076, %v4457, 0.0
  %v4475 = vadd.f32 %v4473, %v4474
  %v4476 = vsel %vm4076, %v4458, 0.0
  %v4477 = vadd.f32 %v4475, %v4476
  %v4478 = vsel %vm4076, %v4459, 0.0
  %v4479 = vadd.f32 %v4477, %v4478
  %v4480 = vsel %vm4076, %v4460, 0.0
  %v4481 = vadd.f32 %v4479, %v4480
  %v4482 = vsel %vm4076, %v4461, 0.0
  %v4483 = vadd.f32 %v4481, %v4482
  %v4484 = vsel %vm4076, %v4462, 0.0
  %v4485 = vadd.f32 %v4483, %v4484
  %v4486 = vsel %vm4076, %v4463, 0.0
  %v4487 = vadd.f32 %v4485, %v4486
  %v4488 = vsel %vm4076, %v4464, 0.0
  %v4489 = vadd.f32 %v4487, %v4488
  %v4490 = vsel %vm4076, %v4465, 0.0
  %v4491 = vadd.f32 %v4489, %v4490
  %v4492 = vsel %vm4076, %v4466, 0.0
  %v4493 = vadd.f32 %v4491, %v4492
  %v4494 = vsel %vm4076, %v4467, 0.0
  %v4495 = vadd.f32 %v4493, %v4494
  %v4496 = vsel %vm4076, %v4468, 0.0
  %v4497 = vadd.f32 %v4495, %v4496
  %v4498 = vsel %vm4076, %v4469, 0.0
  %v4499 = vadd.f32 %v4497, %v4498
  %v4500 = vsel %vm4076, %v4470, 0.0
  %v4501 = vadd.f32 %v4499, %v4500
  %v4502 = vrot.slane %v4501, 4
  %v4503 = vadd.f32 %v4501, %v4502
  %v4504 = vrot.slane %v4503, 2
  %v4505 = vadd.f32 %v4503, %v4504
  %v4506 = vrot.slane %v4505, 1
  %v4507 = vadd.f32 %v4505, %v4506
  %v4508 = vadd.f32 %v4438, %v4507
  %v4509 = vmul.f32 %v4508, %v4228
  %v4510 = vadd.f32 %v4509, 1e-05
  %v4511 = vrsqrt.pop %v4510
  %v4512 = vmul.f32 %v4230, %v4511
  %v4513 = vmul.f32 %v4231, %v4511
  %v4514 = vmul.f32 %v4232, %v4511
  %v4515 = vmul.f32 %v4233, %v4511
  %v4516 = vmul.f32 %v4234, %v4511
  %v4517 = vmul.f32 %v4235, %v4511
  %v4518 = vmul.f32 %v4236, %v4511
  %v4519 = vmul.f32 %v4237, %v4511
  %v4520 = vmul.f32 %v4238, %v4511
  %v4521 = vmul.f32 %v4239, %v4511
  %v4522 = vmul.f32 %v4240, %v4511
  %v4523 = vmul.f32 %v4241, %v4511
  %v4524 = vmul.f32 %v4242, %v4511
  %v4525 = vmul.f32 %v4243, %v4511
  %v4526 = vmul.f32 %v4244, %v4511
  %v4527 = vmul.f32 %v4245, %v4511
  %4528 = vst.msk [vmem:[%s3] sm:$0xff] %vm4076, %v4512
  %4529 = vst.msk [vmem:[%s3 + $0x8] sm:$0xff] %vm4076, %v4513
  %4530 = vst.msk [vmem:[%s3 + $0x10] sm:$0xff] %vm4076, %v4514
  %4531 = vst.msk [vmem:[%s3 + $0x18] sm:$0xff] %vm4076, %v4515
  %4532 = vst.msk [vmem:[%s3 + $0x20] sm:$0xff] %vm4076, %v4516
  %4533 = vst.msk [vmem:[%s3 + $0x28] sm:$0xff] %vm4076, %v4517
  %4534 = vst.msk [vmem:[%s3 + $0x30] sm:$0xff] %vm4076, %v4518
  %4535 = vst.msk [vmem:[%s3 + $0x38] sm:$0xff] %vm4076, %v4519
  %4536 = vst.msk [vmem:[%s3 + $0x40] sm:$0xff] %vm4076, %v4520
  %4537 = vst.msk [vmem:[%s3 + $0x48] sm:$0xff] %vm4076, %v4521
  %4538 = vst.msk [vmem:[%s3 + $0x50] sm:$0xff] %vm4076, %v4522
  %4539 = vst.msk [vmem:[%s3 + $0x58] sm:$0xff] %vm4076, %v4523
  %4540 = vst.msk [vmem:[%s3 + $0x60] sm:$0xff] %vm4076, %v4524
  %4541 = vst.msk [vmem:[%s3 + $0x68] sm:$0xff] %vm4076, %v4525
  %4542 = vst.msk [vmem:[%s3 + $0x70] sm:$0xff] %vm4076, %v4526
  %4543 = vst.msk [vmem:[%s3 + $0x78] sm:$0xff] %vm4076, %v4527
  %v4544 = vmul.f32 %v4299, %v4511
  %v4545 = vmul.f32 %v4300, %v4511
  %v4546 = vmul.f32 %v4301, %v4511
  %v4547 = vmul.f32 %v4302, %v4511
  %v4548 = vmul.f32 %v4303, %v4511
  %v4549 = vmul.f32 %v4304, %v4511
  %v4550 = vmul.f32 %v4305, %v4511
  %v4551 = vmul.f32 %v4306, %v4511
  %v4552 = vmul.f32 %v4307, %v4511
  %v4553 = vmul.f32 %v4308, %v4511
  %v4554 = vmul.f32 %v4309, %v4511
  %v4555 = vmul.f32 %v4310, %v4511
  %v4556 = vmul.f32 %v4311, %v4511
  %v4557 = vmul.f32 %v4312, %v4511
  %v4558 = vmul.f32 %v4313, %v4511
  %v4559 = vmul.f32 %v4314, %v4511
  %s4560 = scalar_lea.vmem %s3, 128
  %4561 = vst.msk [vmem:[%s4560] sm:$0xff] %vm4076, %v4544
  %4562 = vst.msk [vmem:[%s4560 + $0x8] sm:$0xff] %vm4076, %v4545
  %4563 = vst.msk [vmem:[%s4560 + $0x10] sm:$0xff] %vm4076, %v4546
  %4564 = vst.msk [vmem:[%s4560 + $0x18] sm:$0xff] %vm4076, %v4547
  %4565 = vst.msk [vmem:[%s4560 + $0x20] sm:$0xff] %vm4076, %v4548
  %4566 = vst.msk [vmem:[%s4560 + $0x28] sm:$0xff] %vm4076, %v4549
  %4567 = vst.msk [vmem:[%s4560 + $0x30] sm:$0xff] %vm4076, %v4550
  %4568 = vst.msk [vmem:[%s4560 + $0x38] sm:$0xff] %vm4076, %v4551
  %4569 = vst.msk [vmem:[%s4560 + $0x40] sm:$0xff] %vm4076, %v4552
  %4570 = vst.msk [vmem:[%s4560 + $0x48] sm:$0xff] %vm4076, %v4553
  %4571 = vst.msk [vmem:[%s4560 + $0x50] sm:$0xff] %vm4076, %v4554
  %4572 = vst.msk [vmem:[%s4560 + $0x58] sm:$0xff] %vm4076, %v4555
  %4573 = vst.msk [vmem:[%s4560 + $0x60] sm:$0xff] %vm4076, %v4556
  %4574 = vst.msk [vmem:[%s4560 + $0x68] sm:$0xff] %vm4076, %v4557
  %4575 = vst.msk [vmem:[%s4560 + $0x70] sm:$0xff] %vm4076, %v4558
  %4576 = vst.msk [vmem:[%s4560 + $0x78] sm:$0xff] %vm4076, %v4559
  %v4577 = vmul.f32 %v4369, %v4511
  %v4578 = vmul.f32 %v4370, %v4511
  %v4579 = vmul.f32 %v4371, %v4511
  %v4580 = vmul.f32 %v4372, %v4511
  %v4581 = vmul.f32 %v4373, %v4511
  %v4582 = vmul.f32 %v4374, %v4511
  %v4583 = vmul.f32 %v4375, %v4511
  %v4584 = vmul.f32 %v4376, %v4511
  %v4585 = vmul.f32 %v4377, %v4511
  %v4586 = vmul.f32 %v4378, %v4511
  %v4587 = vmul.f32 %v4379, %v4511
  %v4588 = vmul.f32 %v4380, %v4511
  %v4589 = vmul.f32 %v4381, %v4511
  %v4590 = vmul.f32 %v4382, %v4511
  %v4591 = vmul.f32 %v4383, %v4511
  %v4592 = vmul.f32 %v4384, %v4511
  %s4593 = scalar_lea.vmem %s3, 256
  %4594 = vst.msk [vmem:[%s4593] sm:$0xff] %vm4076, %v4577
  %4595 = vst.msk [vmem:[%s4593 + $0x8] sm:$0xff] %vm4076, %v4578
  %4596 = vst.msk [vmem:[%s4593 + $0x10] sm:$0xff] %vm4076, %v4579
  %4597 = vst.msk [vmem:[%s4593 + $0x18] sm:$0xff] %vm4076, %v4580
  %4598 = vst.msk [vmem:[%s4593 + $0x20] sm:$0xff] %vm4076, %v4581
  %4599 = vst.msk [vmem:[%s4593 + $0x28] sm:$0xff] %vm4076, %v4582
  %4600 = vst.msk [vmem:[%s4593 + $0x30] sm:$0xff] %vm4076, %v4583
  %4601 = vst.msk [vmem:[%s4593 + $0x38] sm:$0xff] %vm4076, %v4584
  %4602 = vst.msk [vmem:[%s4593 + $0x40] sm:$0xff] %vm4076, %v4585
  %4603 = vst.msk [vmem:[%s4593 + $0x48] sm:$0xff] %vm4076, %v4586
  %4604 = vst.msk [vmem:[%s4593 + $0x50] sm:$0xff] %vm4076, %v4587
  %4605 = vst.msk [vmem:[%s4593 + $0x58] sm:$0xff] %vm4076, %v4588
  %4606 = vst.msk [vmem:[%s4593 + $0x60] sm:$0xff] %vm4076, %v4589
  %4607 = vst.msk [vmem:[%s4593 + $0x68] sm:$0xff] %vm4076, %v4590
  %4608 = vst.msk [vmem:[%s4593 + $0x70] sm:$0xff] %vm4076, %v4591
  %4609 = vst.msk [vmem:[%s4593 + $0x78] sm:$0xff] %vm4076, %v4592
  %v4610 = vmul.f32 %v4439, %v4511
  %v4611 = vmul.f32 %v4440, %v4511
  %v4612 = vmul.f32 %v4441, %v4511
  %v4613 = vmul.f32 %v4442, %v4511
  %v4614 = vmul.f32 %v4443, %v4511
  %v4615 = vmul.f32 %v4444, %v4511
  %v4616 = vmul.f32 %v4445, %v4511
  %v4617 = vmul.f32 %v4446, %v4511
  %v4618 = vmul.f32 %v4447, %v4511
  %v4619 = vmul.f32 %v4448, %v4511
  %v4620 = vmul.f32 %v4449, %v4511
  %v4621 = vmul.f32 %v4450, %v4511
  %v4622 = vmul.f32 %v4451, %v4511
  %v4623 = vmul.f32 %v4452, %v4511
  %v4624 = vmul.f32 %v4453, %v4511
  %v4625 = vmul.f32 %v4454, %v4511
  %s4626 = scalar_lea.vmem %s3, 384
  %4627 = vst.msk [vmem:[%s4626] sm:$0xff] %vm4076, %v4610
  %4628 = vst.msk [vmem:[%s4626 + $0x8] sm:$0xff] %vm4076, %v4611
  %4629 = vst.msk [vmem:[%s4626 + $0x10] sm:$0xff] %vm4076, %v4612
  %4630 = vst.msk [vmem:[%s4626 + $0x18] sm:$0xff] %vm4076, %v4613
  %4631 = vst.msk [vmem:[%s4626 + $0x20] sm:$0xff] %vm4076, %v4614
  %4632 = vst.msk [vmem:[%s4626 + $0x28] sm:$0xff] %vm4076, %v4615
  %4633 = vst.msk [vmem:[%s4626 + $0x30] sm:$0xff] %vm4076, %v4616
  %4634 = vst.msk [vmem:[%s4626 + $0x38] sm:$0xff] %vm4076, %v4617
  %4635 = vst.msk [vmem:[%s4626 + $0x40] sm:$0xff] %vm4076, %v4618
  %4636 = vst.msk [vmem:[%s4626 + $0x48] sm:$0xff] %vm4076, %v4619
  %4637 = vst.msk [vmem:[%s4626 + $0x50] sm:$0xff] %vm4076, %v4620
  %4638 = vst.msk [vmem:[%s4626 + $0x58] sm:$0xff] %vm4076, %v4621
  %4639 = vst.msk [vmem:[%s4626 + $0x60] sm:$0xff] %vm4076, %v4622
  %4640 = vst.msk [vmem:[%s4626 + $0x68] sm:$0xff] %vm4076, %v4623
  %4641 = vst.msk [vmem:[%s4626 + $0x70] sm:$0xff] %vm4076, %v4624
  %4642 = vst.msk [vmem:[%s4626 + $0x78] sm:$0xff] %vm4076, %v4625
  // Predicated region
  $region14: #{unet_innermost_block.1} parent=0 // pred_check
    _
  $region15: #{unet_innermost_block.1} parent=0 // pred_check_branch
    %4644 = sbr.rel (0) target = $region17
  $region16: #{unet_innermost_block.1} parent=0 // pred_region
    _
  $region17: #{unet_innermost_block.1} parent=0 // pred_fallthru
    _
  // Predicated region
  $region18: #{unet_innermost_block.1} parent=0 // pred_check
    _
  $region19: #{unet_innermost_block.1} parent=0 // pred_check_branch
    %4646 = sbr.rel (0) target = $region21
  $region20: #{unet_innermost_block.1} parent=0 // pred_region
    _
  $region21: #{unet_innermost_block.1} parent=0 // pred_fallthru
    _

</llo_original>
